<compile_context>
chip_gen: v6e
topology: v6e:2x2x1
jax: 0.10.0
libtpu: 0.0.40
codegen_flags: <defaults>
</compile_context>

<pallas_src>
from functools import partial

import jax
import jax.numpy as jnp
import numpy as np
from jax.experimental import pallas as pl
from jax.experimental.pallas import tpu as pltpu


def _gelu_exact(x):
    """Exact (erf-based) GELU = 0.5*x*(1 + erf(x/sqrt(2))).

    erf via Abramowitz & Stegun 7.1.26 (|err| < 1.5e-7); only mul/add/div/exp,
    so it lowers on Mosaic for every TPU generation (f32 VPU + EUP).
    """
    u = x * 0.7071067811865476
    a = jnp.abs(u)
    t = 1.0 / (1.0 + 0.3275911 * a)
    poly = t * (0.254829592
          + t * (-0.284496736
          + t * (1.421413741
          + t * (-1.453152027
          + t * 1.061405429))))
    erf_abs = 1.0 - poly * jnp.exp(-a * a)
    erf_u = jnp.where(u >= 0.0, erf_abs, -erf_abs)
    return 0.5 * x * (1.0 + erf_u)


def _ffn_kernel(x_ref, w_in_ref, b_in_ref, w_dw_ref, b_dw_ref,
                w_out_ref, b_out_ref, o_ref, ypad_ref, *, H, W):
    """Fused project_in -> depthwise 3x3 -> GELU gate -> project_out, one image.

    x_ref:     (1, H*W, dim)   channels-last, flattened spatial
    w_in_ref:  (dim, 2*hidden) 1x1 conv as a matrix
    b_in_ref:  (1, 2*hidden)
    w_dw_ref:  (9, 2*hidden)   depthwise taps, tap t = kh*3 + kw
    b_dw_ref:  (1, 2*hidden)
    w_out_ref: (hidden, dim)
    b_out_ref: (1, dim)
    o_ref:     (1, H*W, dim)
    ypad_ref:  VMEM scratch (H+2, W+2, 2*hidden) f32 -- padded dwconv input
    """
    M, dim = x_ref.shape[1], x_ref.shape[2]
    C2 = w_in_ref.shape[1]
    hidden = C2 // 2

    # --- project_in: single K=dim MXU GEMM, f32 accumulate -------------------
    x = x_ref[0].astype(jnp.float32)                                # (M, dim)
    y = jnp.dot(x, w_in_ref[...], preferred_element_type=jnp.float32)
    y = y + b_in_ref[...]                                           # (M, C2)

    # --- depthwise 3x3 (stride 1, pad 1) on the VPU ---------------------------
    # Zero the padded slab (keeps the 1-pixel halo at zero under any grid/core
    # assignment), then drop the project_in output into the interior.
    ypad_ref[...] = jnp.zeros(ypad_ref.shape, jnp.float32)
    ypad_ref[pl.ds(1, H), pl.ds(1, W), :] = y.reshape(H, W, C2)

    wd = w_dw_ref[...]                                              # (9, C2)
    z = jnp.broadcast_to(b_dw_ref[...].reshape(1, 1, C2), (H, W, C2))
    for kh in range(3):
        for kw in range(3):
            t = kh * 3 + kw
            tap = ypad_ref[pl.ds(kh, H), pl.ds(kw, W), :]           # (H, W, C2)
            z = z + tap * wd[t:t + 1].reshape(1, 1, C2)

    # --- gated GELU -----------------------------------------------------------
    zf = z.reshape(M, C2)
    g = _gelu_exact(zf[:, :hidden]) * zf[:, hidden:]                # (M, hidden)

    # --- project_out: single K=hidden MXU GEMM --------------------------------
    out = jnp.dot(g, w_out_ref[...], preferred_element_type=jnp.float32)
    out = out + b_out_ref[...]                                      # (M, dim)
    o_ref[...] = out.reshape(1, M, dim).astype(o_ref.dtype)


@jax.jit
def feed_forward(x_nchw, params):
    """FeedForward forward pass. Input NCHW, output NCHW (PyTorch semantics)."""
    w_in, b_in, w_dw, b_dw, w_out, b_out = params
    N, dim, H, W = x_nchw.shape
    C2 = w_in.shape[1]
    hidden = C2 // 2
    M = H * W

    # Layout glue only: NCHW -> channels-last flattened (N, H*W, dim).
    x_flat = jnp.transpose(x_nchw, (0, 2, 3, 1)).reshape(N, M, dim)

    kernel = partial(_ffn_kernel, H=H, W=W)
    out = pl.pallas_call(
        kernel,
        out_shape=jax.ShapeDtypeStruct((N, M, dim), x_nchw.dtype),
        grid=(N,),
        in_specs=[
            pl.BlockSpec((1, M, dim), lambda n: (n, 0, 0)),    # per-image input
            pl.BlockSpec((dim, C2), lambda n: (0, 0)),         # resident weights
            pl.BlockSpec((1, C2), lambda n: (0, 0)),
            pl.BlockSpec((9, C2), lambda n: (0, 0)),
            pl.BlockSpec((1, C2), lambda n: (0, 0)),
            pl.BlockSpec((hidden, dim), lambda n: (0, 0)),
            pl.BlockSpec((1, dim), lambda n: (0, 0)),
        ],
        out_specs=pl.BlockSpec((1, M, dim), lambda n: (n, 0, 0)),
        scratch_shapes=[pltpu.VMEM((H + 2, W + 2, C2), jnp.float32)],
        compiler_params=pltpu.CompilerParams(
            dimension_semantics=("parallel",),
            vmem_limit_bytes=32 * 1024 * 1024,
        ),
    )(x_flat, w_in, b_in, w_dw, b_dw, w_out, b_out)

    # Back to PyTorch's NCHW output layout.
    return jnp.transpose(out.reshape(N, H, W, dim), (0, 3, 1, 2))


def init_params(key, dim, ffn_expansion_factor):
    """Deterministic synthetic parameters (shapes match the PyTorch __init__)."""
    hidden = int(dim * ffn_expansion_factor)
    C2 = 2 * hidden
    ks = jax.random.split(key, 6)
    w_in = jax.random.normal(ks[0], (dim, C2), jnp.float32) / np.sqrt(dim)
    b_in = 0.05 * jax.random.normal(ks[1], (1, C2), jnp.float32)
    w_dw = jax.random.normal(ks[2], (9, C2), jnp.float32) / 3.0
    b_dw = 0.05 * jax.random.normal(ks[3], (1, C2), jnp.float32)
    w_out = jax.random.normal(ks[4], (hidden, dim), jnp.float32) / np.sqrt(hidden)
    b_out = 0.05 * jax.random.normal(ks[5], (1, dim), jnp.float32)
    return (w_in, b_in, w_dw, b_dw, w_out, b_out)


def reference_forward(x_nchw, params):
    """Pure-JAX reference mirroring the PyTorch module, for validation."""
    w_in, b_in, w_dw, b_dw, w_out, b_out = params
    dim = x_nchw.shape[1]
    C2 = w_in.shape[1]
    hidden = C2 // 2

    k_in = jnp.transpose(w_in, (1, 0)).reshape(C2, dim, 1, 1)       # OIHW
    y = jax.lax.conv_general_dilated(
        x_nchw, k_in, (1, 1), "VALID",
        dimension_numbers=("NCHW", "OIHW", "NCHW"),
        precision=jax.lax.Precision.HIGHEST) + b_in.reshape(1, C2, 1, 1)

    k_dw = jnp.transpose(w_dw.reshape(3, 3, C2), (2, 0, 1)).reshape(C2, 1, 3, 3)
    y = jax.lax.conv_general_dilated(
        y, k_dw, (1, 1), ((1, 1), (1, 1)),
        dimension_numbers=("NCHW", "OIHW", "NCHW"),
        feature_group_count=C2,
        precision=jax.lax.Precision.HIGHEST) + b_dw.reshape(1, C2, 1, 1)

    y1, y2 = y[:, :hidden], y[:, hidden:]
    g = jax.nn.gelu(y1, approximate=False) * y2                     # exact GELU

    k_out = jnp.transpose(w_out, (1, 0)).reshape(dim, hidden, 1, 1)
    out = jax.lax.conv_general_dilated(
        g, k_out, (1, 1), "VALID",
        dimension_numbers=("NCHW", "OIHW", "NCHW"),
        precision=jax.lax.Precision.HIGHEST) + b_out.reshape(1, dim, 1, 1)
    return out


if __name__ == "__main__":
    key = jax.random.PRNGKey(0)
    kx, kp = jax.random.split(key)

    N, dim, H, W = 2, 32, 16, 16
    ffn_expansion_factor = 2.0          # hidden = 64, hidden*2 = 128 (lane-dense)

    x = jax.random.normal(kx, (N, dim, H, W), jnp.float32)          # NCHW
    params = init_params(kp, dim, ffn_expansion_factor)

    out = feed_forward(x, params)
    out = jax.block_until_ready(out)

    assert out.shape == (N, dim, H, W), out.shape

    ref = reference_forward(x, params)
    np.testing.assert_allclose(np.asarray(out), np.asarray(ref), rtol=1e-2, atol=1e-2)

    print("KERNEL_OK")
</pallas_src>

<mosaic_0001>
module attributes {stable_mosaic.version = 11 : i64} {
  func.func @_ffn_kernel(%arg0: i32, %arg1: memref<1x256x32xf32, #tpu.memory_space<vmem>>, %arg2: memref<32x128xf32, #tpu.memory_space<vmem>>, %arg3: memref<1x128xf32, #tpu.memory_space<vmem>>, %arg4: memref<9x128xf32, #tpu.memory_space<vmem>>, %arg5: memref<1x128xf32, #tpu.memory_space<vmem>>, %arg6: memref<64x32xf32, #tpu.memory_space<vmem>>, %arg7: memref<1x32xf32, #tpu.memory_space<vmem>>, %arg8: memref<1x256x32xf32, #tpu.memory_space<vmem>>, %arg9: memref<18x18x128xf32, #tpu.memory_space<vmem>>) attributes {dimension_semantics = [#tpu.dimension_semantics<parallel>], iteration_bounds = array<i64: 2>, scalar_prefetch = 0 : i64, scratch_operands = 1 : i64, tpu.core_type = #tpu.core_type<tc>, window_params = [{transform_indices = @transform_0, window_bounds = array<i64: 1, 256, 32>}, {pipeline_mode = #tpu.pipeline_mode<synchronous>, transform_indices = @transform_1, window_bounds = array<i64: 32, 128>}, {pipeline_mode = #tpu.pipeline_mode<synchronous>, transform_indices = @transform_2, window_bounds = array<i64: 1, 128>}, {pipeline_mode = #tpu.pipeline_mode<synchronous>, transform_indices = @transform_3, window_bounds = array<i64: 9, 128>}, {pipeline_mode = #tpu.pipeline_mode<synchronous>, transform_indices = @transform_4, window_bounds = array<i64: 1, 128>}, {pipeline_mode = #tpu.pipeline_mode<synchronous>, transform_indices = @transform_5, window_bounds = array<i64: 64, 32>}, {pipeline_mode = #tpu.pipeline_mode<synchronous>, transform_indices = @transform_6, window_bounds = array<i64: 1, 32>}, {transform_indices = @transform_7, window_bounds = array<i64: 1, 256, 32>}]} {
    %c0 = arith.constant 0 : index
    %c0_0 = arith.constant 0 : index
    %c0_1 = arith.constant 0 : index
    %0 = vector.load %arg1[%c0, %c0_0, %c0_1] : memref<1x256x32xf32, #tpu.memory_space<vmem>>, vector<1x256x32xf32>
    %1 = vector.shape_cast %0 : vector<1x256x32xf32> to vector<256x32xf32>
    %c0_2 = arith.constant 0 : index
    %c0_3 = arith.constant 0 : index
    %2 = vector.load %arg2[%c0_2, %c0_3] : memref<32x128xf32, #tpu.memory_space<vmem>>, vector<32x128xf32>
    %cst = arith.constant dense<0.000000e+00> : vector<256x128xf32>
    %3 = tpu.matmul %1, %2, %cst {dimension_numbers = #tpu.dot_dimension_numbers<[1], [0], [0], [1], [0, 0, 1, 1], [], []>} : vector<256x32xf32>, vector<32x128xf32>, vector<256x128xf32> -> vector<256x128xf32>
    %c0_4 = arith.constant 0 : index
    %c0_5 = arith.constant 0 : index
    %4 = vector.load %arg3[%c0_4, %c0_5] : memref<1x128xf32, #tpu.memory_space<vmem>>, vector<1x128xf32>
    %5 = vector.broadcast %4 : vector<1x128xf32> to vector<256x128xf32>
    %6 = arith.addf %3, %5 : vector<256x128xf32>
    %cst_6 = arith.constant 0.000000e+00 : f32
    %7 = vector.broadcast %cst_6 : f32 to vector<18x18x128xf32>
    %c0_7 = arith.constant 0 : index
    %c0_8 = arith.constant 0 : index
    %c0_9 = arith.constant 0 : index
    %8 = vector.load %arg9[%c0_7, %c0_8, %c0_9] : memref<18x18x128xf32, #tpu.memory_space<vmem>>, vector<18x18x128xf32>
    tpu.vector_store %arg9[%c0_7, %c0_8, %c0_9], %7 {strides = array<i32>} : memref<18x18x128xf32, #tpu.memory_space<vmem>>, vector<18x18x128xf32>,
    %9 = vector.shape_cast %6 : vector<256x128xf32> to vector<16x16x128xf32>
    %c1 = arith.constant 1 : index
    %c1_10 = arith.constant 1 : index
    %c0_11 = arith.constant 0 : index
    %10 = vector.load %arg9[%c1, %c1_10, %c0_11] : memref<18x18x128xf32, #tpu.memory_space<vmem>>, vector<16x16x128xf32>
    tpu.vector_store %arg9[%c1, %c1_10, %c0_11], %9 {strides = array<i32>} : memref<18x18x128xf32, #tpu.memory_space<vmem>>, vector<16x16x128xf32>,
    %c0_12 = arith.constant 0 : index
    %c0_13 = arith.constant 0 : index
    %11 = vector.load %arg4[%c0_12, %c0_13] : memref<9x128xf32, #tpu.memory_space<vmem>>, vector<9x128xf32>
    %c0_14 = arith.constant 0 : index
    %c0_15 = arith.constant 0 : index
    %12 = vector.load %arg5[%c0_14, %c0_15] : memref<1x128xf32, #tpu.memory_space<vmem>>, vector<1x128xf32>
    %13 = vector.shape_cast %12 : vector<1x128xf32> to vector<1x1x128xf32>
    %14 = vector.shape_cast %13 : vector<1x1x128xf32> to vector<1x1x128xf32>
    %15 = vector.broadcast %14 : vector<1x1x128xf32> to vector<16x16x128xf32>
    %c0_16 = arith.constant 0 : index
    %c0_17 = arith.constant 0 : index
    %c0_18 = arith.constant 0 : index
    %16 = vector.load %arg9[%c0_16, %c0_17, %c0_18] : memref<18x18x128xf32, #tpu.memory_space<vmem>>, vector<16x16x128xf32>
    %17 = vector.extract_strided_slice %11 {offsets = [0, 0], sizes = [1, 128], strides = [1, 1]} : vector<9x128xf32> to vector<1x128xf32>
    %18 = vector.shape_cast %17 : vector<1x128xf32> to vector<1x1x128xf32>
    %19 = vector.broadcast %18 : vector<1x1x128xf32> to vector<16x16x128xf32>
    %20 = arith.mulf %16, %19 : vector<16x16x128xf32>
    %21 = arith.addf %15, %20 : vector<16x16x128xf32>
    %c0_19 = arith.constant 0 : index
    %c1_20 = arith.constant 1 : index
    %c0_21 = arith.constant 0 : index
    %22 = vector.load %arg9[%c0_19, %c1_20, %c0_21] : memref<18x18x128xf32, #tpu.memory_space<vmem>>, vector<16x16x128xf32>
    %23 = vector.extract_strided_slice %11 {offsets = [1, 0], sizes = [1, 128], strides = [1, 1]} : vector<9x128xf32> to vector<1x128xf32>
    %24 = vector.shape_cast %23 : vector<1x128xf32> to vector<1x1x128xf32>
    %25 = vector.broadcast %24 : vector<1x1x128xf32> to vector<16x16x128xf32>
    %26 = arith.mulf %22, %25 : vector<16x16x128xf32>
    %27 = arith.addf %21, %26 : vector<16x16x128xf32>
    %c0_22 = arith.constant 0 : index
    %c2 = arith.constant 2 : index
    %c0_23 = arith.constant 0 : index
    %28 = vector.load %arg9[%c0_22, %c2, %c0_23] : memref<18x18x128xf32, #tpu.memory_space<vmem>>, vector<16x16x128xf32>
    %29 = vector.extract_strided_slice %11 {offsets = [2, 0], sizes = [1, 128], strides = [1, 1]} : vector<9x128xf32> to vector<1x128xf32>
    %30 = vector.shape_cast %29 : vector<1x128xf32> to vector<1x1x128xf32>
    %31 = vector.broadcast %30 : vector<1x1x128xf32> to vector<16x16x128xf32>
    %32 = arith.mulf %28, %31 : vector<16x16x128xf32>
    %33 = arith.addf %27, %32 : vector<16x16x128xf32>
    %c1_24 = arith.constant 1 : index
    %c0_25 = arith.constant 0 : index
    %c0_26 = arith.constant 0 : index
    %34 = vector.load %arg9[%c1_24, %c0_25, %c0_26] : memref<18x18x128xf32, #tpu.memory_space<vmem>>, vector<16x16x128xf32>
    %35 = vector.extract_strided_slice %11 {offsets = [3, 0], sizes = [1, 128], strides = [1, 1]} : vector<9x128xf32> to vector<1x128xf32>
    %36 = vector.shape_cast %35 : vector<1x128xf32> to vector<1x1x128xf32>
    %37 = vector.broadcast %36 : vector<1x1x128xf32> to vector<16x16x128xf32>
    %38 = arith.mulf %34, %37 : vector<16x16x128xf32>
    %39 = arith.addf %33, %38 : vector<16x16x128xf32>
    %c1_27 = arith.constant 1 : index
    %c1_28 = arith.constant 1 : index
    %c0_29 = arith.constant 0 : index
    %40 = vector.load %arg9[%c1_27, %c1_28, %c0_29] : memref<18x18x128xf32, #tpu.memory_space<vmem>>, vector<16x16x128xf32>
    %41 = vector.extract_strided_slice %11 {offsets = [4, 0], sizes = [1, 128], strides = [1, 1]} : vector<9x128xf32> to vector<1x128xf32>
    %42 = vector.shape_cast %41 : vector<1x128xf32> to vector<1x1x128xf32>
    %43 = vector.broadcast %42 : vector<1x1x128xf32> to vector<16x16x128xf32>
    %44 = arith.mulf %40, %43 : vector<16x16x128xf32>
    %45 = arith.addf %39, %44 : vector<16x16x128xf32>
    %c1_30 = arith.constant 1 : index
    %c2_31 = arith.constant 2 : index
    %c0_32 = arith.constant 0 : index
    %46 = vector.load %arg9[%c1_30, %c2_31, %c0_32] : memref<18x18x128xf32, #tpu.memory_space<vmem>>, vector<16x16x128xf32>
    %47 = vector.extract_strided_slice %11 {offsets = [5, 0], sizes = [1, 128], strides = [1, 1]} : vector<9x128xf32> to vector<1x128xf32>
    %48 = vector.shape_cast %47 : vector<1x128xf32> to vector<1x1x128xf32>
    %49 = vector.broadcast %48 : vector<1x1x128xf32> to vector<16x16x128xf32>
    %50 = arith.mulf %46, %49 : vector<16x16x128xf32>
    %51 = arith.addf %45, %50 : vector<16x16x128xf32>
    %c2_33 = arith.constant 2 : index
    %c0_34 = arith.constant 0 : index
    %c0_35 = arith.constant 0 : index
    %52 = vector.load %arg9[%c2_33, %c0_34, %c0_35] : memref<18x18x128xf32, #tpu.memory_space<vmem>>, vector<16x16x128xf32>
    %53 = vector.extract_strided_slice %11 {offsets = [6, 0], sizes = [1, 128], strides = [1, 1]} : vector<9x128xf32> to vector<1x128xf32>
    %54 = vector.shape_cast %53 : vector<1x128xf32> to vector<1x1x128xf32>
    %55 = vector.broadcast %54 : vector<1x1x128xf32> to vector<16x16x128xf32>
    %56 = arith.mulf %52, %55 : vector<16x16x128xf32>
    %57 = arith.addf %51, %56 : vector<16x16x128xf32>
    %c2_36 = arith.constant 2 : index
    %c1_37 = arith.constant 1 : index
    %c0_38 = arith.constant 0 : index
    %58 = vector.load %arg9[%c2_36, %c1_37, %c0_38] : memref<18x18x128xf32, #tpu.memory_space<vmem>>, vector<16x16x128xf32>
    %59 = vector.extract_strided_slice %11 {offsets = [7, 0], sizes = [1, 128], strides = [1, 1]} : vector<9x128xf32> to vector<1x128xf32>
    %60 = vector.shape_cast %59 : vector<1x128xf32> to vector<1x1x128xf32>
    %61 = vector.broadcast %60 : vector<1x1x128xf32> to vector<16x16x128xf32>
    %62 = arith.mulf %58, %61 : vector<16x16x128xf32>
    %63 = arith.addf %57, %62 : vector<16x16x128xf32>
    %c2_39 = arith.constant 2 : index
    %c2_40 = arith.constant 2 : index
    %c0_41 = arith.constant 0 : index
    %64 = vector.load %arg9[%c2_39, %c2_40, %c0_41] : memref<18x18x128xf32, #tpu.memory_space<vmem>>, vector<16x16x128xf32>
    %65 = vector.extract_strided_slice %11 {offsets = [8, 0], sizes = [1, 128], strides = [1, 1]} : vector<9x128xf32> to vector<1x128xf32>
    %66 = vector.shape_cast %65 : vector<1x128xf32> to vector<1x1x128xf32>
    %67 = vector.broadcast %66 : vector<1x1x128xf32> to vector<16x16x128xf32>
    %68 = arith.mulf %64, %67 : vector<16x16x128xf32>
    %69 = arith.addf %63, %68 : vector<16x16x128xf32>
    %70 = vector.shape_cast %69 : vector<16x16x128xf32> to vector<256x128xf32>
    %71 = vector.extract_strided_slice %70 {offsets = [0, 0], sizes = [256, 64], strides = [1, 1]} : vector<256x128xf32> to vector<256x64xf32>
    %cst_42 = arith.constant 0.707106769 : f32
    %72 = vector.broadcast %cst_42 : f32 to vector<256x64xf32>
    %73 = arith.mulf %71, %72 : vector<256x64xf32>
    %74 = math.absf %73 : vector<256x64xf32>
    %cst_43 = arith.constant 0.327591091 : f32
    %75 = vector.broadcast %cst_43 : f32 to vector<256x64xf32>
    %76 = arith.mulf %75, %74 : vector<256x64xf32>
    %cst_44 = arith.constant 1.000000e+00 : f32
    %77 = vector.broadcast %cst_44 : f32 to vector<256x64xf32>
    %78 = arith.addf %77, %76 : vector<256x64xf32>
    %cst_45 = arith.constant 1.000000e+00 : f32
    %79 = vector.broadcast %cst_45 : f32 to vector<256x64xf32>
    %80 = arith.divf %79, %78 : vector<256x64xf32>
    %cst_46 = arith.constant 1.06140542 : f32
    %81 = vector.broadcast %cst_46 : f32 to vector<256x64xf32>
    %82 = arith.mulf %80, %81 : vector<256x64xf32>
    %cst_47 = arith.constant -1.45315206 : f32
    %83 = vector.broadcast %cst_47 : f32 to vector<256x64xf32>
    %84 = arith.addf %83, %82 : vector<256x64xf32>
    %85 = arith.mulf %80, %84 : vector<256x64xf32>
    %cst_48 = arith.constant 1.42141378 : f32
    %86 = vector.broadcast %cst_48 : f32 to vector<256x64xf32>
    %87 = arith.addf %86, %85 : vector<256x64xf32>
    %88 = arith.mulf %80, %87 : vector<256x64xf32>
    %cst_49 = arith.constant -0.284496725 : f32
    %89 = vector.broadcast %cst_49 : f32 to vector<256x64xf32>
    %90 = arith.addf %89, %88 : vector<256x64xf32>
    %91 = arith.mulf %80, %90 : vector<256x64xf32>
    %cst_50 = arith.constant 0.254829586 : f32
    %92 = vector.broadcast %cst_50 : f32 to vector<256x64xf32>
    %93 = arith.addf %92, %91 : vector<256x64xf32>
    %94 = arith.mulf %80, %93 : vector<256x64xf32>
    %cst_51 = arith.constant 0.000000e+00 : f32
    %95 = vector.broadcast %cst_51 : f32 to vector<256x64xf32>
    %96 = arith.subf %95, %74 : vector<256x64xf32>
    %97 = arith.mulf %96, %74 : vector<256x64xf32>
    %98 = math.exp %97 : vector<256x64xf32>
    %99 = arith.mulf %94, %98 : vector<256x64xf32>
    %cst_52 = arith.constant 1.000000e+00 : f32
    %100 = vector.broadcast %cst_52 : f32 to vector<256x64xf32>
    %101 = arith.subf %100, %99 : vector<256x64xf32>
    %cst_53 = arith.constant 0.000000e+00 : f32
    %102 = vector.broadcast %cst_53 : f32 to vector<256x64xf32>
    %103 = arith.cmpf oge, %73, %102 : vector<256x64xf32>
    %cst_54 = arith.constant 0.000000e+00 : f32
    %104 = vector.broadcast %cst_54 : f32 to vector<256x64xf32>
    %105 = arith.subf %104, %101 : vector<256x64xf32>
    %106 = arith.select %103, %101, %105 : vector<256x64xi1>, vector<256x64xf32>
    %cst_55 = arith.constant 5.000000e-01 : f32
    %107 = vector.broadcast %cst_55 : f32 to vector<256x64xf32>
    %108 = arith.mulf %107, %71 : vector<256x64xf32>
    %cst_56 = arith.constant 1.000000e+00 : f32
    %109 = vector.broadcast %cst_56 : f32 to vector<256x64xf32>
    %110 = arith.addf %109, %106 : vector<256x64xf32>
    %111 = arith.mulf %108, %110 : vector<256x64xf32>
    %112 = vector.extract_strided_slice %70 {offsets = [0, 64], sizes = [256, 64], strides = [1, 1]} : vector<256x128xf32> to vector<256x64xf32>
    %113 = arith.mulf %111, %112 : vector<256x64xf32>
    %c0_57 = arith.constant 0 : index
    %c0_58 = arith.constant 0 : index
    %114 = vector.load %arg6[%c0_57, %c0_58] : memref<64x32xf32, #tpu.memory_space<vmem>>, vector<64x32xf32>
    %cst_59 = arith.constant dense<0.000000e+00> : vector<256x32xf32>
    %115 = tpu.matmul %113, %114, %cst_59 {dimension_numbers = #tpu.dot_dimension_numbers<[1], [0], [0], [1], [0, 0, 1, 1], [], []>} : vector<256x64xf32>, vector<64x32xf32>, vector<256x32xf32> -> vector<256x32xf32>
    %c0_60 = arith.constant 0 : index
    %c0_61 = arith.constant 0 : index
    %116 = vector.load %arg7[%c0_60, %c0_61] : memref<1x32xf32, #tpu.memory_space<vmem>>, vector<1x32xf32>
    %117 = vector.broadcast %116 : vector<1x32xf32> to vector<256x32xf32>
    %118 = arith.addf %115, %117 : vector<256x32xf32>
    %119 = vector.shape_cast %118 : vector<256x32xf32> to vector<1x256x32xf32>
    %c0_62 = arith.constant 0 : index
    %c0_63 = arith.constant 0 : index
    %c0_64 = arith.constant 0 : index
    %120 = vector.load %arg8[%c0_62, %c0_63, %c0_64] : memref<1x256x32xf32, #tpu.memory_space<vmem>>, vector<1x256x32xf32>
    tpu.vector_store %arg8[%c0_62, %c0_63, %c0_64], %119 {strides = array<i32>} : memref<1x256x32xf32, #tpu.memory_space<vmem>>, vector<1x256x32xf32>,
    return
  }
  func.func @transform_0(%arg0: i32) -> (i32, i32, i32) {
    %c0_i32 = arith.constant 0 : i32
    %c0_i32_0 = arith.constant 0 : i32
    %c0_i32_1 = arith.constant 0 : i32
    return %arg0, %c0_i32, %c0_i32_0 : i32, i32, i32
  }
  func.func @transform_1(%arg0: i32) -> (i32, i32) {
    %c0_i32 = arith.constant 0 : i32
    %c0_i32_0 = arith.constant 0 : i32
    %c0_i32_1 = arith.constant 0 : i32
    return %c0_i32, %c0_i32_0 : i32, i32
  }
  func.func @transform_2(%arg0: i32) -> (i32, i32) {
    %c0_i32 = arith.constant 0 : i32
    %c0_i32_0 = arith.constant 0 : i32
    %c0_i32_1 = arith.constant 0 : i32
    return %c0_i32, %c0_i32_0 : i32, i32
  }
  func.func @transform_3(%arg0: i32) -> (i32, i32) {
    %c0_i32 = arith.constant 0 : i32
    %c0_i32_0 = arith.constant 0 : i32
    %c0_i32_1 = arith.constant 0 : i32
    return %c0_i32, %c0_i32_0 : i32, i32
  }
  func.func @transform_4(%arg0: i32) -> (i32, i32) {
    %c0_i32 = arith.constant 0 : i32
    %c0_i32_0 = arith.constant 0 : i32
    %c0_i32_1 = arith.constant 0 : i32
    return %c0_i32, %c0_i32_0 : i32, i32
  }
  func.func @transform_5(%arg0: i32) -> (i32, i32) {
    %c0_i32 = arith.constant 0 : i32
    %c0_i32_0 = arith.constant 0 : i32
    %c0_i32_1 = arith.constant 0 : i32
    return %c0_i32, %c0_i32_0 : i32, i32
  }
  func.func @transform_6(%arg0: i32) -> (i32, i32) {
    %c0_i32 = arith.constant 0 : i32
    %c0_i32_0 = arith.constant 0 : i32
    %c0_i32_1 = arith.constant 0 : i32
    return %c0_i32, %c0_i32_0 : i32, i32
  }
  func.func @transform_7(%arg0: i32) -> (i32, i32, i32) {
    %c0_i32 = arith.constant 0 : i32
    %c0_i32_0 = arith.constant 0 : i32
    %c0_i32_1 = arith.constant 0 : i32
    return %arg0, %c0_i32, %c0_i32_0 : i32, i32, i32
  }
}

</mosaic_0001>

<llo_original>
// kernel: feed_forward.1
$region0: #{feed_forward.1}
  #allocation0 [shape = 'u32[]', space=smem, size = 0x4, offset = 0x4, fixed_abs, tag = 'smem constant byte address 0x4 - core index']
  #allocation1 [shape = 'u32[144,128]{1,0:T(1,128)}', space=vmem, size = 0x12000, scoped, tag = 'internal scratch']
  #allocation2 [shape = 'f32[18,18,128]{2,1,0:T(8,128)}', space=vmem, size = 0x36000, scoped, tag = 'scratch operand']
  %s0 = inlined_call_operand.hbm [shape: f32[2,256,32], index: 0, kind: input, shape index: {}]
  %s1 = inlined_call_operand.vmem [shape: f32[32,128], index: 1, kind: input, shape index: {}]
  %s2 = inlined_call_operand.vmem [shape: f32[1,128], index: 2, kind: input, shape index: {}]
  %s3 = inlined_call_operand.vmem [shape: f32[9,128], index: 3, kind: input, shape index: {}]
  %s4 = inlined_call_operand.vmem [shape: f32[1,128], index: 4, kind: input, shape index: {}]
  %s5 = inlined_call_operand.vmem [shape: f32[64,32], index: 5, kind: input, shape index: {}]
  %s6 = inlined_call_operand.vmem [shape: f32[1,32], index: 6, kind: input, shape index: {}]
  %s7 = inlined_call_operand.hbm [shape: f32[2,256,32], index: 7, kind: output, shape index: {}]
  %s8 = sld [smem:[#allocation0]]
  $region65: #{feed_forward.1} parent=0
    _
  %s10 = ssub.s32 1, %s8
  %s11 = scalar_select 0, %s10, %s8
  $region1: #{feed_forward.1} parent=0
    #allocation3 [shape = 'u8[262144]{0}', space=vmem, size = 0x40000, scoped, tag = 'input window, operand 0']
    #allocation4 [shape = 's32[2]{0}', space=sflag, size = 0x8, scoped, tag = 'scoped memory for feed_forward.1']
    #allocation5 [shape = 's32[2]{0}', space=sflag, size = 0x8, scoped, tag = 'scoped memory for feed_forward.1']
    #allocation6 [shape = 'u8[262144]{0}', space=vmem, size = 0x40000, scoped, tag = 'output window, operand 0']
    %12 = vsyncpa [#allocation4], 0
    %s13 = scalar_lea.sflag [#allocation4], 1
    %14 = vsyncpa %s13, 0
    %15 = vsyncpa [#allocation5], 0
    %s16 = scalar_lea.sflag [#allocation5], 1
    %17 = vsyncpa %s16, 0
    loop: start=0, step=1, limit=4
    $region2: #{feed_forward.1} parent=1 // loop_pre_header
      _
    $region3: #{feed_forward.1} parent=1 // loop_header
      %s19 = sphi 0, %s23
      %p20 = scmp.ge.s32.totalorder %s19, 4
      %s29 = sphi 0, %s31
      %s32 = sphi 0, %s29
      %s33 = sphi 0, %s32
      %s49 = sphi 0, %s33
      %s53 = sphi 0, %s53
      %s55 = sphi 0, %s53
      %s56 = sphi 0, %s55
      %s70 = sphi 0, %s56
      %s74 = sphi 0, %s74
      %s76 = sphi 0, %s74
      %s77 = sphi 0, %s76
      %s91 = sphi 0, %s77
      %s95 = sphi 0, %s95
      %s97 = sphi 0, %s95
      %s98 = sphi 0, %s97
      %s112 = sphi 0, %s98
      %s116 = sphi 0, %s116
      %s118 = sphi 0, %s116
      %s119 = sphi 0, %s118
      %s133 = sphi 0, %s119
      %s137 = sphi 0, %s137
      %s139 = sphi 0, %s137
      %s140 = sphi 0, %s139
      %s154 = sphi 0, %s140
      %s158 = sphi 0, %s158
      %s160 = sphi 0, %s158
      %s161 = sphi 0, %s160
      %s175 = sphi 0, %s161
      %s181 = sphi 0, %s183
      %s184 = sphi 0, %s181
      %s185 = sphi 0, %s184
      %s201 = sphi 0, %s185
    $region4: #{feed_forward.1} parent=1 // loop_header_branch
      %22 = sbr.rel (%p20) target = $region8
    $region5: #{feed_forward.1} parent=1 // loop_body
      %s24 = ssub.s32 %s19, 1
      %s25 = ssub.s32 %s19, 2
      %s26 = sadd.s32 %s19, 1
      %s27 = ssub.s32 %s19, %s26
      %p28 = scmp.eq.s32.totalorder %s27, 0
      %s30 = sadd.s32 %s29, 1
      %s31 = scalar_select %p28, %s29, %s30
      %p34 = pneg %p28
      %p35 = scmp.eq.s32.totalorder %s19, 1
      %p36 = por %p34, %p35
      %p37 = scmp.ne.s32.totalorder %s29, %s32
      %p38 = scmp.eq.s32.totalorder %s19, 0
      %p39 = por %p37, %p38
      %p40 = scmp.ne.s32.totalorder %s29, %s32
      %p41 = scmp.eq.s32.totalorder %s24, 1
      %p42 = por %p40, %p41
      %p43 = scmp.ne.s32.totalorder %s32, %s33
      %p44 = scmp.eq.s32.totalorder %s24, 0
      %p45 = por %p43, %p44
      %p46 = scmp.ne.s32.totalorder %s32, %s33
      %p47 = scmp.eq.s32.totalorder %s25, 1
      %p48 = por %p46, %p47
      %p50 = scmp.ne.s32.totalorder %s33, %s49
      %p51 = scmp.eq.s32.totalorder %s25, 0
      %p52 = por %p50, %p51
      %s54 = sadd.s32 %s53, 1
      %p57 = scmp.eq.s32.totalorder %s19, 1
      %p58 = scmp.ne.s32.totalorder %s53, %s55
      %p59 = scmp.eq.s32.totalorder %s19, 0
      %p60 = por %p58, %p59
      %p61 = scmp.ne.s32.totalorder %s53, %s55
      %p62 = scmp.eq.s32.totalorder %s24, 1
      %p63 = por %p61, %p62
      %p64 = scmp.ne.s32.totalorder %s55, %s56
      %p65 = scmp.eq.s32.totalorder %s24, 0
      %p66 = por %p64, %p65
      %p67 = scmp.ne.s32.totalorder %s55, %s56
      %p68 = scmp.eq.s32.totalorder %s25, 1
      %p69 = por %p67, %p68
      %p71 = scmp.ne.s32.totalorder %s56, %s70
      %p72 = scmp.eq.s32.totalorder %s25, 0
      %p73 = por %p71, %p72
      %s75 = sadd.s32 %s74, 1
      %p78 = scmp.eq.s32.totalorder %s19, 1
      %p79 = scmp.ne.s32.totalorder %s74, %s76
      %p80 = scmp.eq.s32.totalorder %s19, 0
      %p81 = por %p79, %p80
      %p82 = scmp.ne.s32.totalorder %s74, %s76
      %p83 = scmp.eq.s32.totalorder %s24, 1
      %p84 = por %p82, %p83
      %p85 = scmp.ne.s32.totalorder %s76, %s77
      %p86 = scmp.eq.s32.totalorder %s24, 0
      %p87 = por %p85, %p86
      %p88 = scmp.ne.s32.totalorder %s76, %s77
      %p89 = scmp.eq.s32.totalorder %s25, 1
      %p90 = por %p88, %p89
      %p92 = scmp.ne.s32.totalorder %s77, %s91
      %p93 = scmp.eq.s32.totalorder %s25, 0
      %p94 = por %p92, %p93
      %s96 = sadd.s32 %s95, 1
      %p99 = scmp.eq.s32.totalorder %s19, 1
      %p100 = scmp.ne.s32.totalorder %s95, %s97
      %p101 = scmp.eq.s32.totalorder %s19, 0
      %p102 = por %p100, %p101
      %p103 = scmp.ne.s32.totalorder %s95, %s97
      %p104 = scmp.eq.s32.totalorder %s24, 1
      %p105 = por %p103, %p104
      %p106 = scmp.ne.s32.totalorder %s97, %s98
      %p107 = scmp.eq.s32.totalorder %s24, 0
      %p108 = por %p106, %p107
      %p109 = scmp.ne.s32.totalorder %s97, %s98
      %p110 = scmp.eq.s32.totalorder %s25, 1
      %p111 = por %p109, %p110
      %p113 = scmp.ne.s32.totalorder %s98, %s112
      %p114 = scmp.eq.s32.totalorder %s25, 0
      %p115 = por %p113, %p114
      %s117 = sadd.s32 %s116, 1
      %p120 = scmp.eq.s32.totalorder %s19, 1
      %p121 = scmp.ne.s32.totalorder %s116, %s118
      %p122 = scmp.eq.s32.totalorder %s19, 0
      %p123 = por %p121, %p122
      %p124 = scmp.ne.s32.totalorder %s116, %s118
      %p125 = scmp.eq.s32.totalorder %s24, 1
      %p126 = por %p124, %p125
      %p127 = scmp.ne.s32.totalorder %s118, %s119
      %p128 = scmp.eq.s32.totalorder %s24, 0
      %p129 = por %p127, %p128
      %p130 = scmp.ne.s32.totalorder %s118, %s119
      %p131 = scmp.eq.s32.totalorder %s25, 1
      %p132 = por %p130, %p131
      %p134 = scmp.ne.s32.totalorder %s119, %s133
      %p135 = scmp.eq.s32.totalorder %s25, 0
      %p136 = por %p134, %p135
      %s138 = sadd.s32 %s137, 1
      %p141 = scmp.eq.s32.totalorder %s19, 1
      %p142 = scmp.ne.s32.totalorder %s137, %s139
      %p143 = scmp.eq.s32.totalorder %s19, 0
      %p144 = por %p142, %p143
      %p145 = scmp.ne.s32.totalorder %s137, %s139
      %p146 = scmp.eq.s32.totalorder %s24, 1
      %p147 = por %p145, %p146
      %p148 = scmp.ne.s32.totalorder %s139, %s140
      %p149 = scmp.eq.s32.totalorder %s24, 0
      %p150 = por %p148, %p149
      %p151 = scmp.ne.s32.totalorder %s139, %s140
      %p152 = scmp.eq.s32.totalorder %s25, 1
      %p153 = por %p151, %p152
      %p155 = scmp.ne.s32.totalorder %s140, %s154
      %p156 = scmp.eq.s32.totalorder %s25, 0
      %p157 = por %p155, %p156
      %s159 = sadd.s32 %s158, 1
      %p162 = scmp.eq.s32.totalorder %s19, 1
      %p163 = scmp.ne.s32.totalorder %s158, %s160
      %p164 = scmp.eq.s32.totalorder %s19, 0
      %p165 = por %p163, %p164
      %p166 = scmp.ne.s32.totalorder %s158, %s160
      %p167 = scmp.eq.s32.totalorder %s24, 1
      %p168 = por %p166, %p167
      %p169 = scmp.ne.s32.totalorder %s160, %s161
      %p170 = scmp.eq.s32.totalorder %s24, 0
      %p171 = por %p169, %p170
      %p172 = scmp.ne.s32.totalorder %s160, %s161
      %p173 = scmp.eq.s32.totalorder %s25, 1
      %p174 = por %p172, %p173
      %p176 = scmp.ne.s32.totalorder %s161, %s175
      %p177 = scmp.eq.s32.totalorder %s25, 0
      %p178 = por %p176, %p177
      %s179 = ssub.s32 %s19, %s26
      %p180 = scmp.eq.s32.totalorder %s179, 0
      %s182 = sadd.s32 %s181, 1
      %s183 = scalar_select %p180, %s181, %s182
      %p186 = pneg %p180
      %p187 = scmp.eq.s32.totalorder %s19, 1
      %p188 = por %p186, %p187
      %p189 = scmp.ne.s32.totalorder %s181, %s184
      %p190 = scmp.eq.s32.totalorder %s19, 0
      %p191 = por %p189, %p190
      %p192 = scmp.ne.s32.totalorder %s181, %s184
      %p193 = scmp.eq.s32.totalorder %s24, 1
      %p194 = por %p192, %p193
      %p195 = scmp.ne.s32.totalorder %s184, %s185
      %p196 = scmp.eq.s32.totalorder %s24, 0
      %p197 = por %p195, %p196
      %p198 = scmp.ne.s32.totalorder %s184, %s185
      %p199 = scmp.eq.s32.totalorder %s25, 1
      %p200 = por %p198, %p199
      %p202 = scmp.ne.s32.totalorder %s185, %s201
      %p203 = scmp.eq.s32.totalorder %s25, 0
      %p204 = por %p202, %p203
      %p205 = scmp.le.s32.totalorder 1, %s19
      %p206 = scmp.lt.s32.totalorder %s19, 3
      %p207 = pnand %p205, %p206
      %p208 = pneg %p207
      // Predicated region
      $region9: #{feed_forward.1} parent=5 // pred_check
        _
      $region10: #{feed_forward.1} parent=5 // pred_check_branch
        %210 = sbr.rel (%p207) target = $region12
      $region11: #{feed_forward.1} parent=5 // pred_region
        %s211 = ssub.s32 %s19, 1
        // Predicated region
        $region13: #{feed_forward.1} parent=11 // pred_check
          %p212 = pneg %p66
        $region14: #{feed_forward.1} parent=11 // pred_check_branch
          %214 = sbr.rel (%p212) target = $region16
        $region15: #{feed_forward.1} parent=11 // pred_region
          _
        $region16: #{feed_forward.1} parent=11 // pred_fallthru
          _
        // Predicated region
        $region17: #{feed_forward.1} parent=11 // pred_check
          %p215 = pneg %p87
        $region18: #{feed_forward.1} parent=11 // pred_check_branch
          %217 = sbr.rel (%p215) target = $region20
        $region19: #{feed_forward.1} parent=11 // pred_region
          _
        $region20: #{feed_forward.1} parent=11 // pred_fallthru
          _
        // Predicated region
        $region21: #{feed_forward.1} parent=11 // pred_check
          %p218 = pneg %p108
        $region22: #{feed_forward.1} parent=11 // pred_check_branch
          %220 = sbr.rel (%p218) target = $region24
        $region23: #{feed_forward.1} parent=11 // pred_region
          _
        $region24: #{feed_forward.1} parent=11 // pred_fallthru
          _
        // Predicated region
        $region25: #{feed_forward.1} parent=11 // pred_check
          %p221 = pneg %p129
        $region26: #{feed_forward.1} parent=11 // pred_check_branch
          %223 = sbr.rel (%p221) target = $region28
        $region27: #{feed_forward.1} parent=11 // pred_region
          _
        $region28: #{feed_forward.1} parent=11 // pred_fallthru
          _
        // Predicated region
        $region29: #{feed_forward.1} parent=11 // pred_check
          %p224 = pneg %p150
        $region30: #{feed_forward.1} parent=11 // pred_check_branch
          %226 = sbr.rel (%p224) target = $region32
        $region31: #{feed_forward.1} parent=11 // pred_region
          _
        $region32: #{feed_forward.1} parent=11 // pred_fallthru
          _
        // Predicated region
        $region33: #{feed_forward.1} parent=11 // pred_check
          %p227 = pneg %p171
        $region34: #{feed_forward.1} parent=11 // pred_check_branch
          %229 = sbr.rel (%p227) target = $region36
        $region35: #{feed_forward.1} parent=11 // pred_region
          _
        $region36: #{feed_forward.1} parent=11 // pred_fallthru
          _
      $region12: #{feed_forward.1} parent=5 // pred_fallthru
        _
      %p230 = scmp.lt.s32.totalorder %s19, 2
      // Predicated region
      $region37: #{feed_forward.1} parent=5 // pred_check
        %p231 = pneg %p230
      $region38: #{feed_forward.1} parent=5 // pred_check_branch
        %233 = sbr.rel (%p231) target = $region40
      $region39: #{feed_forward.1} parent=5 // pred_region
        // Predicated region
        $region41: #{feed_forward.1} parent=39 // pred_check
          %p234 = pneg %p39
        $region42: #{feed_forward.1} parent=39 // pred_check_branch
          %236 = sbr.rel (%p234) target = $region44
        $region43: #{feed_forward.1} parent=39 // pred_region
          %s237 = sand.u32 %s29, 1
          %s238 = scalar_lea.sflag [#allocation4], %s237
          %s239 = sand.u32 %s29, 1
          %s240 = smul.addr %s239, 256
          %s241 = scalar_lea.vmem [#allocation3], %s240
          %s243 = ssub.s32 4096, 4096
          %244 = vsyncadd %s238, %s243
          %s245 = smul.addr %s19, 32
          %s246 = smul.addr %s245, 128
          %s247 = scalar_lea.hbm %s0, %s246
          %s248 = sshll.u32 %s241, 4
          %s249 = int_to_ptr.vmem [resolvable:$true] %s248
          %254 = dma.hbm_to_vmem [thread:$0]  %s247, 4096, %s249, %s238, 128, 128, 8
        $region44: #{feed_forward.1} parent=39 // pred_fallthru
          _
      $region40: #{feed_forward.1} parent=5 // pred_fallthru
        _
      %p255 = scmp.le.s32.totalorder 1, %s19
      %p256 = scmp.lt.s32.totalorder %s19, 3
      %p257 = pnand %p255, %p256
      %p258 = pneg %p257
      // Predicated region
      $region45: #{feed_forward.1} parent=5 // pred_check
        _
      $region46: #{feed_forward.1} parent=5 // pred_check_branch
        %260 = sbr.rel (%p257) target = $region48
      $region47: #{feed_forward.1} parent=5 // pred_region
        %s261 = ssub.s32 %s19, 1
        %s262 = sand.u32 %s32, 1
        %s263 = scalar_lea.sflag [#allocation4], %s262
        %s264 = sand.u32 %s32, 1
        %s265 = smul.addr %s264, 256
        %s266 = scalar_lea.vmem [#allocation3], %s265
        // Predicated region
        $region49: #{feed_forward.1} parent=47 // pred_check
          %p267 = pneg %p45
        $region50: #{feed_forward.1} parent=47 // pred_check_branch
          %269 = sbr.rel (%p267) target = $region52
        $region51: #{feed_forward.1} parent=47 // pred_region
          %270 = dma.done %s263, 4096
        $region52: #{feed_forward.1} parent=47 // pred_fallthru
          _
        %s271 = sand.u32 %s32, 1
        %s272 = scalar_lea.sflag [#allocation4], %s271
        %s273 = sand.u32 %s32, 1
        %s274 = smul.addr %s273, 256
        %s275 = scalar_lea.vmem [#allocation3], %s274
        %p276 = pneg %p45
        %p277 = pneg %p42
        %p278 = pneg %p66
        %p279 = pneg %p63
        %p280 = pneg %p87
        %p281 = pneg %p84
        %p282 = pneg %p108
        %p283 = pneg %p105
        %p284 = pneg %p129
        %p285 = pneg %p126
        %p286 = pneg %p150
        %p287 = pneg %p147
        %p288 = pneg %p171
        %p289 = pneg %p168
        %p290 = pneg %p197
        %p291 = pneg %p194
        %s292 = sand.u32 %s184, 1
        %s293 = scalar_lea.sflag [#allocation5], %s292
        %s294 = sand.u32 %s184, 1
        %s295 = smul.addr %s294, 256
        %s296 = scalar_lea.vmem [#allocation6], %s295
        %v297 = vld [vmem:[%s266] sm:$0xff]
        %v298 = vld [vmem:[%s266 + $0x8] sm:$0xff]
        %v299 = vld [vmem:[%s266 + $0x10] sm:$0xff]
        %v300 = vld [vmem:[%s266 + $0x18] sm:$0xff]
        %v301 = vld [vmem:[%s266 + $0x20] sm:$0xff]
        %v302 = vld [vmem:[%s266 + $0x28] sm:$0xff]
        %v303 = vld [vmem:[%s266 + $0x30] sm:$0xff]
        %v304 = vld [vmem:[%s266 + $0x38] sm:$0xff]
        %v305 = vld [vmem:[%s266 + $0x40] sm:$0xff]
        %v306 = vld [vmem:[%s266 + $0x48] sm:$0xff]
        %v307 = vld [vmem:[%s266 + $0x50] sm:$0xff]
        %v308 = vld [vmem:[%s266 + $0x58] sm:$0xff]
        %v309 = vld [vmem:[%s266 + $0x60] sm:$0xff]
        %v310 = vld [vmem:[%s266 + $0x68] sm:$0xff]
        %v311 = vld [vmem:[%s266 + $0x70] sm:$0xff]
        %v312 = vld [vmem:[%s266 + $0x78] sm:$0xff]
        %v313 = vld [vmem:[%s266 + $0x80] sm:$0xff]
        %v314 = vld [vmem:[%s266 + $0x88] sm:$0xff]
        %v315 = vld [vmem:[%s266 + $0x90] sm:$0xff]
        %v316 = vld [vmem:[%s266 + $0x98] sm:$0xff]
        %v317 = vld [vmem:[%s266 + $0xa0] sm:$0xff]
        %v318 = vld [vmem:[%s266 + $0xa8] sm:$0xff]
        %v319 = vld [vmem:[%s266 + $0xb0] sm:$0xff]
        %v320 = vld [vmem:[%s266 + $0xb8] sm:$0xff]
        %v321 = vld [vmem:[%s266 + $0xc0] sm:$0xff]
        %v322 = vld [vmem:[%s266 + $0xc8] sm:$0xff]
        %v323 = vld [vmem:[%s266 + $0xd0] sm:$0xff]
        %v324 = vld [vmem:[%s266 + $0xd8] sm:$0xff]
        %v325 = vld [vmem:[%s266 + $0xe0] sm:$0xff]
        %v326 = vld [vmem:[%s266 + $0xe8] sm:$0xff]
        %v327 = vld [vmem:[%s266 + $0xf0] sm:$0xff]
        %v328 = vld [vmem:[%s266 + $0xf8] sm:$0xff]
        %v329 = vld [vmem:[%s1] sm:$0xff]
        %v330 = vld [vmem:[%s1 + $0x8] sm:$0xff]
        %v331 = vld [vmem:[%s1 + $0x10] sm:$0xff]
        %v332 = vld [vmem:[%s1 + $0x18] sm:$0xff]
        %v333 = vld [vmem:[%s2] sm:$0x1]
        %v335 = vlaneseq
        %v336 = vshrl.u32 %v335, 7
        %v337 = vsub.s32 0, %v336
        %v338 = vrot.slane %v333, %v337
        %vm340 = vcmask 261120
        %v342 = vsel %vm340, %v297, 0
        %v345 = vsel %vm340, %v298, 0
        %v348 = vsel %vm340, %v299, 0
        %v351 = vsel %vm340, %v300, 0
        %v354 = vsel %vm340, %v301, 0
        %v357 = vsel %vm340, %v302, 0
        %v360 = vsel %vm340, %v303, 0
        %v363 = vsel %vm340, %v304, 0
        %v366 = vsel %vm340, %v305, 0
        %v369 = vsel %vm340, %v306, 0
        %v372 = vsel %vm340, %v307, 0
        %v375 = vsel %vm340, %v308, 0
        %v378 = vsel %vm340, %v309, 0
        %v381 = vsel %vm340, %v310, 0
        %v384 = vsel %vm340, %v311, 0
        %v387 = vsel %vm340, %v312, 0
        %v390 = vsel %vm340, %v313, 0
        %v393 = vsel %vm340, %v314, 0
        %v396 = vsel %vm340, %v315, 0
        %v399 = vsel %vm340, %v316, 0
        %v402 = vsel %vm340, %v317, 0
        %v405 = vsel %vm340, %v318, 0
        %v408 = vsel %vm340, %v319, 0
        %v411 = vsel %vm340, %v320, 0
        %v414 = vsel %vm340, %v321, 0
        %v417 = vsel %vm340, %v322, 0
        %v420 = vsel %vm340, %v323, 0
        %v423 = vsel %vm340, %v324, 0
        %v426 = vsel %vm340, %v325, 0
        %v429 = vsel %vm340, %v326, 0
        %v432 = vsel %vm340, %v327, 0
        %v435 = vsel %vm340, %v328, 0
        %437 = vmatprep.subr.mxu0 0.0
        %438 = vmatpush1.msra.mxu0 0.0
        %439 = vmatprep.subr.mxu0 0.0
        %440 = vmatpush1.msra.mxu0 0.0
        %441 = vmatprep.subr.mxu0 0.0
        %442 = vmatpush1.msra.mxu0 0.0
        %443 = vmatprep.subr.mxu0 0.0
        %444 = vmatpush1.msra.mxu0 0.0
        %445 = vmatprep.subr.mxu0 0.0
        %446 = vmatpush1.msra.mxu0 0.0
        %447 = vmatprep.subr.mxu0 0.0
        %448 = vmatpush1.msra.mxu0 0.0
        %449 = vmatprep.subr.mxu0 0.0
        %450 = vmatpush1.msra.mxu0 0.0
        %451 = vmatprep.subr.mxu0 0.0
        %452 = vmatpush1.msra.mxu0 0.0
        %453 = vmatprep.subr.mxu0 0.0
        %454 = vmatpush1.msra.mxu0 0.0
        %455 = vmatprep.subr.mxu0 0.0
        %456 = vmatpush1.msra.mxu0 0.0
        %457 = vmatprep.subr.mxu0 0.0
        %458 = vmatpush1.msra.mxu0 0.0
        %459 = vmatprep.subr.mxu0 0.0
        %460 = vmatpush1.msra.mxu0 0.0
        %461 = vmatprep.subr.mxu0 0.0
        %462 = vmatpush1.msra.mxu0 %v332
        %463 = vmatprep.subr.mxu0 0.0
        %464 = vmatpush1.msra.mxu0 %v331
        %465 = vmatprep.subr.mxu0 0.0
        %466 = vmatpush1.msra.mxu0 %v330
        %467 = vmatprep.subr.mxu0 0.0
        %468 = vmatpush1.msra.mxu0 %v329
        %469 = vmatprep.subr.mxu0 0.0
        %470 = vmatpush2.msra.mxu0 0.0
        %471 = vmatprep.subr.mxu0 0.0
        %472 = vmatpush2.msra.mxu0 0.0
        %473 = vmatprep.subr.mxu0 0.0
        %474 = vmatpush2.msra.mxu0 0.0
        %475 = vmatprep.subr.mxu0 0.0
        %476 = vmatpush2.msra.mxu0 0.0
        %477 = vmatprep.subr.mxu0 0.0
        %478 = vmatpush2.msra.mxu0 0.0
        %479 = vmatprep.subr.mxu0 0.0
        %480 = vmatpush2.msra.mxu0 0.0
        %481 = vmatprep.subr.mxu0 0.0
        %482 = vmatpush2.msra.mxu0 0.0
        %483 = vmatprep.subr.mxu0 0.0
        %484 = vmatpush2.msra.mxu0 0.0
        %485 = vmatprep.subr.mxu0 0.0
        %486 = vmatpush2.msra.mxu0 0.0
        %487 = vmatprep.subr.mxu0 0.0
        %488 = vmatpush2.msra.mxu0 0.0
        %489 = vmatprep.subr.mxu0 0.0
        %490 = vmatpush2.msra.mxu0 0.0
        %491 = vmatprep.subr.mxu0 0.0
        %492 = vmatpush2.msra.mxu0 0.0
        %493 = vmatprep.subr.mxu0 0.0
        %494 = vmatpush2.msra.mxu0 0.0
        %495 = vmatprep.subr.mxu0 0.0
        %496 = vmatpush2.msra.mxu0 0.0
        %497 = vmatprep.subr.mxu0 0.0
        %498 = vmatpush2.msra.mxu0 0.0
        %499 = vmatprep.subr.mxu0 0.0
        %500 = vmatpush2.msra.mxu0 0.0
        %501 = vmatprep.mubr.f32.mxu0 0.0
        %502 = vmatmul.mubr.f32.gmra.mxu0 %v342
        %v503 = vpop.f32.mrf.mxu0
        %v504 = vadd.f32 %v338, %v503
        %v505 = vpop.f32.mrf.mxu0
        %506 = vmatprep.mubr.f32.mxu0 0.0
        %507 = vmatmul.mubr.f32.gmra.mxu0 %v345
        %v508 = vpop.f32.mrf.mxu0
        %v509 = vadd.f32 %v338, %v508
        %v510 = vpop.f32.mrf.mxu0
        %511 = vmatprep.mubr.f32.mxu0 0.0
        %512 = vmatmul.mubr.f32.gmra.mxu0 %v348
        %v513 = vpop.f32.mrf.mxu0
        %v514 = vadd.f32 %v338, %v513
        %v515 = vpop.f32.mrf.mxu0
        %516 = vmatprep.mubr.f32.mxu0 0.0
        %517 = vmatmul.mubr.f32.gmra.mxu0 %v351
        %v518 = vpop.f32.mrf.mxu0
        %v519 = vadd.f32 %v338, %v518
        %v520 = vpop.f32.mrf.mxu0
        %521 = vmatprep.mubr.f32.mxu0 0.0
        %522 = vmatmul.mubr.f32.gmra.mxu0 %v354
        %v523 = vpop.f32.mrf.mxu0
        %v524 = vadd.f32 %v338, %v523
        %v525 = vpop.f32.mrf.mxu0
        %526 = vmatprep.mubr.f32.mxu0 0.0
        %527 = vmatmul.mubr.f32.gmra.mxu0 %v357
        %v528 = vpop.f32.mrf.mxu0
        %v529 = vadd.f32 %v338, %v528
        %v530 = vpop.f32.mrf.mxu0
        %531 = vmatprep.mubr.f32.mxu0 0.0
        %532 = vmatmul.mubr.f32.gmra.mxu0 %v360
        %v533 = vpop.f32.mrf.mxu0
        %v534 = vadd.f32 %v338, %v533
        %v535 = vpop.f32.mrf.mxu0
        %536 = vmatprep.mubr.f32.mxu0 0.0
        %537 = vmatmul.mubr.f32.gmra.mxu0 %v363
        %v538 = vpop.f32.mrf.mxu0
        %v539 = vadd.f32 %v338, %v538
        %v540 = vpop.f32.mrf.mxu0
        %541 = vmatprep.mubr.f32.mxu0 0.0
        %542 = vmatmul.mubr.f32.gmra.mxu0 %v366
        %v543 = vpop.f32.mrf.mxu0
        %v544 = vadd.f32 %v338, %v543
        %v545 = vpop.f32.mrf.mxu0
        %546 = vmatprep.mubr.f32.mxu0 0.0
        %547 = vmatmul.mubr.f32.gmra.mxu0 %v369
        %v548 = vpop.f32.mrf.mxu0
        %v549 = vadd.f32 %v338, %v548
        %v550 = vpop.f32.mrf.mxu0
        %551 = vmatprep.mubr.f32.mxu0 0.0
        %552 = vmatmul.mubr.f32.gmra.mxu0 %v372
        %v553 = vpop.f32.mrf.mxu0
        %v554 = vadd.f32 %v338, %v553
        %v555 = vpop.f32.mrf.mxu0
        %556 = vmatprep.mubr.f32.mxu0 0.0
        %557 = vmatmul.mubr.f32.gmra.mxu0 %v375
        %v558 = vpop.f32.mrf.mxu0
        %v559 = vadd.f32 %v338, %v558
        %v560 = vpop.f32.mrf.mxu0
        %561 = vmatprep.mubr.f32.mxu0 0.0
        %562 = vmatmul.mubr.f32.gmra.mxu0 %v378
        %v563 = vpop.f32.mrf.mxu0
        %v564 = vadd.f32 %v338, %v563
        %v565 = vpop.f32.mrf.mxu0
        %566 = vmatprep.mubr.f32.mxu0 0.0
        %567 = vmatmul.mubr.f32.gmra.mxu0 %v381
        %v568 = vpop.f32.mrf.mxu0
        %v569 = vadd.f32 %v338, %v568
        %v570 = vpop.f32.mrf.mxu0
        %571 = vmatprep.mubr.f32.mxu0 0.0
        %572 = vmatmul.mubr.f32.gmra.mxu0 %v384
        %v573 = vpop.f32.mrf.mxu0
        %v574 = vadd.f32 %v338, %v573
        %v575 = vpop.f32.mrf.mxu0
        %576 = vmatprep.mubr.f32.mxu0 0.0
        %577 = vmatmul.mubr.f32.gmra.mxu0 %v387
        %v578 = vpop.f32.mrf.mxu0
        %v579 = vadd.f32 %v338, %v578
        %v580 = vpop.f32.mrf.mxu0
        %581 = vmatprep.mubr.f32.mxu0 0.0
        %582 = vmatmul.mubr.f32.gmra.mxu0 %v390
        %v583 = vpop.f32.mrf.mxu0
        %v584 = vadd.f32 %v338, %v583
        %v585 = vpop.f32.mrf.mxu0
        %586 = vmatprep.mubr.f32.mxu0 0.0
        %587 = vmatmul.mubr.f32.gmra.mxu0 %v393
        %v588 = vpop.f32.mrf.mxu0
        %v589 = vadd.f32 %v338, %v588
        %v590 = vpop.f32.mrf.mxu0
        %591 = vmatprep.mubr.f32.mxu0 0.0
        %592 = vmatmul.mubr.f32.gmra.mxu0 %v396
        %v593 = vpop.f32.mrf.mxu0
        %v594 = vadd.f32 %v338, %v593
        %v595 = vpop.f32.mrf.mxu0
        %596 = vmatprep.mubr.f32.mxu0 0.0
        %597 = vmatmul.mubr.f32.gmra.mxu0 %v399
        %v598 = vpop.f32.mrf.mxu0
        %v599 = vadd.f32 %v338, %v598
        %v600 = vpop.f32.mrf.mxu0
        %601 = vmatprep.mubr.f32.mxu0 0.0
        %602 = vmatmul.mubr.f32.gmra.mxu0 %v402
        %v603 = vpop.f32.mrf.mxu0
        %v604 = vadd.f32 %v338, %v603
        %v605 = vpop.f32.mrf.mxu0
        %606 = vmatprep.mubr.f32.mxu0 0.0
        %607 = vmatmul.mubr.f32.gmra.mxu0 %v405
        %v608 = vpop.f32.mrf.mxu0
        %v609 = vadd.f32 %v338, %v608
        %v610 = vpop.f32.mrf.mxu0
        %611 = vmatprep.mubr.f32.mxu0 0.0
        %612 = vmatmul.mubr.f32.gmra.mxu0 %v408
        %v613 = vpop.f32.mrf.mxu0
        %v614 = vadd.f32 %v338, %v613
        %v615 = vpop.f32.mrf.mxu0
        %616 = vmatprep.mubr.f32.mxu0 0.0
        %617 = vmatmul.mubr.f32.gmra.mxu0 %v411
        %v618 = vpop.f32.mrf.mxu0
        %v619 = vadd.f32 %v338, %v618
        %v620 = vpop.f32.mrf.mxu0
        %621 = vmatprep.mubr.f32.mxu0 0.0
        %622 = vmatmul.mubr.f32.gmra.mxu0 %v414
        %v623 = vpop.f32.mrf.mxu0
        %v624 = vadd.f32 %v338, %v623
        %v625 = vpop.f32.mrf.mxu0
        %626 = vmatprep.mubr.f32.mxu0 0.0
        %627 = vmatmul.mubr.f32.gmra.mxu0 %v417
        %v628 = vpop.f32.mrf.mxu0
        %v629 = vadd.f32 %v338, %v628
        %v630 = vpop.f32.mrf.mxu0
        %631 = vmatprep.mubr.f32.mxu0 0.0
        %632 = vmatmul.mubr.f32.gmra.mxu0 %v420
        %v633 = vpop.f32.mrf.mxu0
        %v634 = vadd.f32 %v338, %v633
        %v635 = vpop.f32.mrf.mxu0
        %636 = vmatprep.mubr.f32.mxu0 0.0
        %637 = vmatmul.mubr.f32.gmra.mxu0 %v423
        %v638 = vpop.f32.mrf.mxu0
        %v639 = vadd.f32 %v338, %v638
        %v640 = vpop.f32.mrf.mxu0
        %641 = vmatprep.mubr.f32.mxu0 0.0
        %642 = vmatmul.mubr.f32.gmra.mxu0 %v426
        %v643 = vpop.f32.mrf.mxu0
        %v644 = vadd.f32 %v338, %v643
        %v645 = vpop.f32.mrf.mxu0
        %646 = vmatprep.mubr.f32.mxu0 0.0
        %647 = vmatmul.mubr.f32.gmra.mxu0 %v429
        %v648 = vpop.f32.mrf.mxu0
        %v649 = vadd.f32 %v338, %v648
        %v650 = vpop.f32.mrf.mxu0
        %651 = vmatprep.mubr.f32.mxu0 0.0
        %652 = vmatmul.mubr.f32.gmra.mxu0 %v432
        %v653 = vpop.f32.mrf.mxu0
        %v654 = vadd.f32 %v338, %v653
        %v655 = vpop.f32.mrf.mxu0
        %656 = vmatprep.mubr.f32.mxu0 0.0
        %657 = vmatmul.mubr.f32.gmra.mxu0 %v435
        %v658 = vpop.f32.mrf.mxu0
        %v659 = vadd.f32 %v338, %v658
        %v660 = vpop.f32.mrf.mxu0
        %661 = vdwg.mxu0
        %662 = vst [vmem:[#allocation2] sm:$0xff] 0.0
        %663 = vst [vmem:[#allocation2 + $0x8] sm:$0xff] 0.0
        %664 = vst [vmem:[#allocation2 + $0x10] sm:$0x3] 0.0
        %665 = vst [vmem:[#allocation2 + $0x18] sm:$0xff] 0.0
        %666 = vst [vmem:[#allocation2 + $0x20] sm:$0xff] 0.0
        %667 = vst [vmem:[#allocation2 + $0x28] sm:$0x3] 0.0
        %668 = vst [vmem:[#allocation2 + $0x30] sm:$0xff] 0.0
        %669 = vst [vmem:[#allocation2 + $0x38] sm:$0xff] 0.0
        %670 = vst [vmem:[#allocation2 + $0x40] sm:$0x3] 0.0
        %671 = vst [vmem:[#allocation2 + $0x48] sm:$0xff] 0.0
        %672 = vst [vmem:[#allocation2 + $0x50] sm:$0xff] 0.0
        %673 = vst [vmem:[#allocation2 + $0x58] sm:$0x3] 0.0
        %674 = vst [vmem:[#allocation2 + $0x60] sm:$0xff] 0.0
        %675 = vst [vmem:[#allocation2 + $0x68] sm:$0xff] 0.0
        %676 = vst [vmem:[#allocation2 + $0x70] sm:$0x3] 0.0
        %677 = vst [vmem:[#allocation2 + $0x78] sm:$0xff] 0.0
        %678 = vst [vmem:[#allocation2 + $0x80] sm:$0xff] 0.0
        %679 = vst [vmem:[#allocation2 + $0x88] sm:$0x3] 0.0
        %680 = vst [vmem:[#allocation2 + $0x90] sm:$0xff] 0.0
        %681 = vst [vmem:[#allocation2 + $0x98] sm:$0xff] 0.0
        %682 = vst [vmem:[#allocation2 + $0xa0] sm:$0x3] 0.0
        %683 = vst [vmem:[#allocation2 + $0xa8] sm:$0xff] 0.0
        %684 = vst [vmem:[#allocation2 + $0xb0] sm:$0xff] 0.0
        %685 = vst [vmem:[#allocation2 + $0xb8] sm:$0x3] 0.0
        %686 = vst [vmem:[#allocation2 + $0xc0] sm:$0xff] 0.0
        %687 = vst [vmem:[#allocation2 + $0xc8] sm:$0xff] 0.0
        %688 = vst [vmem:[#allocation2 + $0xd0] sm:$0x3] 0.0
        %689 = vst [vmem:[#allocation2 + $0xd8] sm:$0xff] 0.0
        %690 = vst [vmem:[#allocation2 + $0xe0] sm:$0xff] 0.0
        %691 = vst [vmem:[#allocation2 + $0xe8] sm:$0x3] 0.0
        %692 = vst [vmem:[#allocation2 + $0xf0] sm:$0xff] 0.0
        %693 = vst [vmem:[#allocation2 + $0xf8] sm:$0xff] 0.0
        %694 = vst [vmem:[#allocation2 + $0x100] sm:$0x3] 0.0
        %695 = vst [vmem:[#allocation2 + $0x108] sm:$0xff] 0.0
        %696 = vst [vmem:[#allocation2 + $0x110] sm:$0xff] 0.0
        %697 = vst [vmem:[#allocation2 + $0x118] sm:$0x3] 0.0
        %698 = vst [vmem:[#allocation2 + $0x120] sm:$0xff] 0.0
        %699 = vst [vmem:[#allocation2 + $0x128] sm:$0xff] 0.0
        %700 = vst [vmem:[#allocation2 + $0x130] sm:$0x3] 0.0
        %701 = vst [vmem:[#allocation2 + $0x138] sm:$0xff] 0.0
        %702 = vst [vmem:[#allocation2 + $0x140] sm:$0xff] 0.0
        %703 = vst [vmem:[#allocation2 + $0x148] sm:$0x3] 0.0
        %704 = vst [vmem:[#allocation2 + $0x150] sm:$0xff] 0.0
        %705 = vst [vmem:[#allocation2 + $0x158] sm:$0xff] 0.0
        %706 = vst [vmem:[#allocation2 + $0x160] sm:$0x3] 0.0
        %707 = vst [vmem:[#allocation2 + $0x168] sm:$0xff] 0.0
        %708 = vst [vmem:[#allocation2 + $0x170] sm:$0xff] 0.0
        %709 = vst [vmem:[#allocation2 + $0x178] sm:$0x3] 0.0
        %710 = vst [vmem:[#allocation2 + $0x180] sm:$0xff] 0.0
        %711 = vst [vmem:[#allocation2 + $0x188] sm:$0xff] 0.0
        %712 = vst [vmem:[#allocation2 + $0x190] sm:$0x3] 0.0
        %713 = vst [vmem:[#allocation2 + $0x198] sm:$0xff] 0.0
        %714 = vst [vmem:[#allocation2 + $0x1a0] sm:$0xff] 0.0
        %715 = vst [vmem:[#allocation2 + $0x1a8] sm:$0x3] 0.0
        %s716 = scalar_lea.vmem [#allocation2], 24
        %717 = vst [vmem:[%s716 + $0x1] sm:$0xff] %v504
        %718 = vst [vmem:[%s716 + $0x9] sm:$0xff] %v509
        %719 = vst [vmem:[%s716 + $0x19] sm:$0xff] %v514
        %720 = vst [vmem:[%s716 + $0x21] sm:$0xff] %v519
        %721 = vst [vmem:[%s716 + $0x31] sm:$0xff] %v524
        %722 = vst [vmem:[%s716 + $0x39] sm:$0xff] %v529
        %723 = vst [vmem:[%s716 + $0x49] sm:$0xff] %v534
        %724 = vst [vmem:[%s716 + $0x51] sm:$0xff] %v539
        %725 = vst [vmem:[%s716 + $0x61] sm:$0xff] %v544
        %726 = vst [vmem:[%s716 + $0x69] sm:$0xff] %v549
        %727 = vst [vmem:[%s716 + $0x79] sm:$0xff] %v554
        %728 = vst [vmem:[%s716 + $0x81] sm:$0xff] %v559
        %729 = vst [vmem:[%s716 + $0x91] sm:$0xff] %v564
        %730 = vst [vmem:[%s716 + $0x99] sm:$0xff] %v569
        %731 = vst [vmem:[%s716 + $0xa9] sm:$0xff] %v574
        %732 = vst [vmem:[%s716 + $0xb1] sm:$0xff] %v579
        %733 = vst [vmem:[%s716 + $0xc1] sm:$0xff] %v584
        %734 = vst [vmem:[%s716 + $0xc9] sm:$0xff] %v589
        %735 = vst [vmem:[%s716 + $0xd9] sm:$0xff] %v594
        %736 = vst [vmem:[%s716 + $0xe1] sm:$0xff] %v599
        %737 = vst [vmem:[%s716 + $0xf1] sm:$0xff] %v604
        %738 = vst [vmem:[%s716 + $0xf9] sm:$0xff] %v609
        %739 = vst [vmem:[%s716 + $0x109] sm:$0xff] %v614
        %740 = vst [vmem:[%s716 + $0x111] sm:$0xff] %v619
        %741 = vst [vmem:[%s716 + $0x121] sm:$0xff] %v624
        %742 = vst [vmem:[%s716 + $0x129] sm:$0xff] %v629
        %743 = vst [vmem:[%s716 + $0x139] sm:$0xff] %v634
        %744 = vst [vmem:[%s716 + $0x141] sm:$0xff] %v639
        %745 = vst [vmem:[%s716 + $0x151] sm:$0xff] %v644
        %746 = vst [vmem:[%s716 + $0x159] sm:$0xff] %v649
        %747 = vst [vmem:[%s716 + $0x169] sm:$0xff] %v654
        %748 = vst [vmem:[%s716 + $0x171] sm:$0xff] %v659
        %v749 = vld [vmem:[%s3] sm:$0xff]
        %v750 = vld [vmem:[%s3 + $0x8] sm:$0x1]
        %v751 = vld [vmem:[%s4] sm:$0x1]
        %v753 = vlaneseq
        %v754 = vshrl.u32 %v753, 7
        %v755 = vsub.s32 0, %v754
        %v756 = vrot.slane %v751, %v755
        %v758 = vld [vmem:[#allocation2] sm:$0xff]
        %v759 = vld [vmem:[#allocation2 + $0x8] sm:$0xff]
        %v760 = vld [vmem:[#allocation2 + $0x18] sm:$0xff]
        %v761 = vld [vmem:[#allocation2 + $0x20] sm:$0xff]
        %v762 = vld [vmem:[#allocation2 + $0x30] sm:$0xff]
        %v763 = vld [vmem:[#allocation2 + $0x38] sm:$0xff]
        %v764 = vld [vmem:[#allocation2 + $0x48] sm:$0xff]
        %v765 = vld [vmem:[#allocation2 + $0x50] sm:$0xff]
        %v766 = vld [vmem:[#allocation2 + $0x60] sm:$0xff]
        %v767 = vld [vmem:[#allocation2 + $0x68] sm:$0xff]
        %v768 = vld [vmem:[#allocation2 + $0x78] sm:$0xff]
        %v769 = vld [vmem:[#allocation2 + $0x80] sm:$0xff]
        %v770 = vld [vmem:[#allocation2 + $0x90] sm:$0xff]
        %v771 = vld [vmem:[#allocation2 + $0x98] sm:$0xff]
        %v772 = vld [vmem:[#allocation2 + $0xa8] sm:$0xff]
        %v773 = vld [vmem:[#allocation2 + $0xb0] sm:$0xff]
        %v774 = vld [vmem:[#allocation2 + $0xc0] sm:$0xff]
        %v775 = vld [vmem:[#allocation2 + $0xc8] sm:$0xff]
        %v776 = vld [vmem:[#allocation2 + $0xd8] sm:$0xff]
        %v777 = vld [vmem:[#allocation2 + $0xe0] sm:$0xff]
        %v778 = vld [vmem:[#allocation2 + $0xf0] sm:$0xff]
        %v779 = vld [vmem:[#allocation2 + $0xf8] sm:$0xff]
        %v780 = vld [vmem:[#allocation2 + $0x108] sm:$0xff]
        %v781 = vld [vmem:[#allocation2 + $0x110] sm:$0xff]
        %v782 = vld [vmem:[#allocation2 + $0x120] sm:$0xff]
        %v783 = vld [vmem:[#allocation2 + $0x128] sm:$0xff]
        %v784 = vld [vmem:[#allocation2 + $0x138] sm:$0xff]
        %v785 = vld [vmem:[#allocation2 + $0x140] sm:$0xff]
        %v786 = vld [vmem:[#allocation2 + $0x150] sm:$0xff]
        %v787 = vld [vmem:[#allocation2 + $0x158] sm:$0xff]
        %v788 = vld [vmem:[#allocation2 + $0x168] sm:$0xff]
        %v789 = vld [vmem:[#allocation2 + $0x170] sm:$0xff]
        %v790 = vlaneseq
        %v791 = vshrl.u32 %v790, 7
        %v792 = vsub.s32 0, %v791
        %v793 = vrot.slane %v749, %v792
        %v794 = vmul.f32 %v758, %v793
        %v795 = vmul.f32 %v759, %v793
        %v796 = vmul.f32 %v760, %v793
        %v797 = vmul.f32 %v761, %v793
        %v798 = vmul.f32 %v762, %v793
        %v799 = vmul.f32 %v763, %v793
        %v800 = vmul.f32 %v764, %v793
        %v801 = vmul.f32 %v765, %v793
        %v802 = vmul.f32 %v766, %v793
        %v803 = vmul.f32 %v767, %v793
        %v804 = vmul.f32 %v768, %v793
        %v805 = vmul.f32 %v769, %v793
        %v806 = vmul.f32 %v770, %v793
        %v807 = vmul.f32 %v771, %v793
        %v808 = vmul.f32 %v772, %v793
        %v809 = vmul.f32 %v773, %v793
        %v810 = vmul.f32 %v774, %v793
        %v811 = vmul.f32 %v775, %v793
        %v812 = vmul.f32 %v776, %v793
        %v813 = vmul.f32 %v777, %v793
        %v814 = vmul.f32 %v778, %v793
        %v815 = vmul.f32 %v779, %v793
        %v816 = vmul.f32 %v780, %v793
        %v817 = vmul.f32 %v781, %v793
        %v818 = vmul.f32 %v782, %v793
        %v819 = vmul.f32 %v783, %v793
        %v820 = vmul.f32 %v784, %v793
        %v821 = vmul.f32 %v785, %v793
        %v822 = vmul.f32 %v786, %v793
        %v823 = vmul.f32 %v787, %v793
        %v824 = vmul.f32 %v788, %v793
        %v825 = vmul.f32 %v789, %v793
        %v826 = vadd.f32 %v756, %v794
        %v827 = vadd.f32 %v756, %v795
        %v828 = vadd.f32 %v756, %v796
        %v829 = vadd.f32 %v756, %v797
        %v830 = vadd.f32 %v756, %v798
        %v831 = vadd.f32 %v756, %v799
        %v832 = vadd.f32 %v756, %v800
        %v833 = vadd.f32 %v756, %v801
        %v834 = vadd.f32 %v756, %v802
        %v835 = vadd.f32 %v756, %v803
        %v836 = vadd.f32 %v756, %v804
        %v837 = vadd.f32 %v756, %v805
        %v838 = vadd.f32 %v756, %v806
        %v839 = vadd.f32 %v756, %v807
        %v840 = vadd.f32 %v756, %v808
        %v841 = vadd.f32 %v756, %v809
        %v842 = vadd.f32 %v756, %v810
        %v843 = vadd.f32 %v756, %v811
        %v844 = vadd.f32 %v756, %v812
        %v845 = vadd.f32 %v756, %v813
        %v846 = vadd.f32 %v756, %v814
        %v847 = vadd.f32 %v756, %v815
        %v848 = vadd.f32 %v756, %v816
        %v849 = vadd.f32 %v756, %v817
        %v850 = vadd.f32 %v756, %v818
        %v851 = vadd.f32 %v756, %v819
        %v852 = vadd.f32 %v756, %v820
        %v853 = vadd.f32 %v756, %v821
        %v854 = vadd.f32 %v756, %v822
        %v855 = vadd.f32 %v756, %v823
        %v856 = vadd.f32 %v756, %v824
        %v857 = vadd.f32 %v756, %v825
        %v858 = vld [vmem:[#allocation2 + $0x1] sm:$0xff]
        %v859 = vld [vmem:[#allocation2 + $0x9] sm:$0xff]
        %v860 = vld [vmem:[#allocation2 + $0x19] sm:$0xff]
        %v861 = vld [vmem:[#allocation2 + $0x21] sm:$0xff]
        %v862 = vld [vmem:[#allocation2 + $0x31] sm:$0xff]
        %v863 = vld [vmem:[#allocation2 + $0x39] sm:$0xff]
        %v864 = vld [vmem:[#allocation2 + $0x49] sm:$0xff]
        %v865 = vld [vmem:[#allocation2 + $0x51] sm:$0xff]
        %v866 = vld [vmem:[#allocation2 + $0x61] sm:$0xff]
        %v867 = vld [vmem:[#allocation2 + $0x69] sm:$0xff]
        %v868 = vld [vmem:[#allocation2 + $0x79] sm:$0xff]
        %v869 = vld [vmem:[#allocation2 + $0x81] sm:$0xff]
        %v870 = vld [vmem:[#allocation2 + $0x91] sm:$0xff]
        %v871 = vld [vmem:[#allocation2 + $0x99] sm:$0xff]
        %v872 = vld [vmem:[#allocation2 + $0xa9] sm:$0xff]
        %v873 = vld [vmem:[#allocation2 + $0xb1] sm:$0xff]
        %v874 = vld [vmem:[#allocation2 + $0xc1] sm:$0xff]
        %v875 = vld [vmem:[#allocation2 + $0xc9] sm:$0xff]
        %v876 = vld [vmem:[#allocation2 + $0xd9] sm:$0xff]
        %v877 = vld [vmem:[#allocation2 + $0xe1] sm:$0xff]
        %v878 = vld [vmem:[#allocation2 + $0xf1] sm:$0xff]
        %v879 = vld [vmem:[#allocation2 + $0xf9] sm:$0xff]
        %v880 = vld [vmem:[#allocation2 + $0x109] sm:$0xff]
        %v881 = vld [vmem:[#allocation2 + $0x111] sm:$0xff]
        %v882 = vld [vmem:[#allocation2 + $0x121] sm:$0xff]
        %v883 = vld [vmem:[#allocation2 + $0x129] sm:$0xff]
        %v884 = vld [vmem:[#allocation2 + $0x139] sm:$0xff]
        %v885 = vld [vmem:[#allocation2 + $0x141] sm:$0xff]
        %v886 = vld [vmem:[#allocation2 + $0x151] sm:$0xff]
        %v887 = vld [vmem:[#allocation2 + $0x159] sm:$0xff]
        %v888 = vld [vmem:[#allocation2 + $0x169] sm:$0xff]
        %v889 = vld [vmem:[#allocation2 + $0x171] sm:$0xff]
        %v890 = vlaneseq
        %v891 = vshrl.u32 %v890, 7
        %v892 = vsub.s32 1, %v891
        %v893 = vrot.slane %v749, %v892
        %v894 = vmul.f32 %v858, %v893
        %v895 = vmul.f32 %v859, %v893
        %v896 = vmul.f32 %v860, %v893
        %v897 = vmul.f32 %v861, %v893
        %v898 = vmul.f32 %v862, %v893
        %v899 = vmul.f32 %v863, %v893
        %v900 = vmul.f32 %v864, %v893
        %v901 = vmul.f32 %v865, %v893
        %v902 = vmul.f32 %v866, %v893
        %v903 = vmul.f32 %v867, %v893
        %v904 = vmul.f32 %v868, %v893
        %v905 = vmul.f32 %v869, %v893
        %v906 = vmul.f32 %v870, %v893
        %v907 = vmul.f32 %v871, %v893
        %v908 = vmul.f32 %v872, %v893
        %v909 = vmul.f32 %v873, %v893
        %v910 = vmul.f32 %v874, %v893
        %v911 = vmul.f32 %v875, %v893
        %v912 = vmul.f32 %v876, %v893
        %v913 = vmul.f32 %v877, %v893
        %v914 = vmul.f32 %v878, %v893
        %v915 = vmul.f32 %v879, %v893
        %v916 = vmul.f32 %v880, %v893
        %v917 = vmul.f32 %v881, %v893
        %v918 = vmul.f32 %v882, %v893
        %v919 = vmul.f32 %v883, %v893
        %v920 = vmul.f32 %v884, %v893
        %v921 = vmul.f32 %v885, %v893
        %v922 = vmul.f32 %v886, %v893
        %v923 = vmul.f32 %v887, %v893
        %v924 = vmul.f32 %v888, %v893
        %v925 = vmul.f32 %v889, %v893
        %v926 = vadd.f32 %v826, %v894
        %v927 = vadd.f32 %v827, %v895
        %v928 = vadd.f32 %v828, %v896
        %v929 = vadd.f32 %v829, %v897
        %v930 = vadd.f32 %v830, %v898
        %v931 = vadd.f32 %v831, %v899
        %v932 = vadd.f32 %v832, %v900
        %v933 = vadd.f32 %v833, %v901
        %v934 = vadd.f32 %v834, %v902
        %v935 = vadd.f32 %v835, %v903
        %v936 = vadd.f32 %v836, %v904
        %v937 = vadd.f32 %v837, %v905
        %v938 = vadd.f32 %v838, %v906
        %v939 = vadd.f32 %v839, %v907
        %v940 = vadd.f32 %v840, %v908
        %v941 = vadd.f32 %v841, %v909
        %v942 = vadd.f32 %v842, %v910
        %v943 = vadd.f32 %v843, %v911
        %v944 = vadd.f32 %v844, %v912
        %v945 = vadd.f32 %v845, %v913
        %v946 = vadd.f32 %v846, %v914
        %v947 = vadd.f32 %v847, %v915
        %v948 = vadd.f32 %v848, %v916
        %v949 = vadd.f32 %v849, %v917
        %v950 = vadd.f32 %v850, %v918
        %v951 = vadd.f32 %v851, %v919
        %v952 = vadd.f32 %v852, %v920
        %v953 = vadd.f32 %v853, %v921
        %v954 = vadd.f32 %v854, %v922
        %v955 = vadd.f32 %v855, %v923
        %v956 = vadd.f32 %v856, %v924
        %v957 = vadd.f32 %v857, %v925
        %v958 = vld [vmem:[#allocation2 + $0x2] sm:$0xff]
        %v959 = vld [vmem:[#allocation2 + $0xa] sm:$0xff]
        %v960 = vld [vmem:[#allocation2 + $0x1a] sm:$0xff]
        %v961 = vld [vmem:[#allocation2 + $0x22] sm:$0xff]
        %v962 = vld [vmem:[#allocation2 + $0x32] sm:$0xff]
        %v963 = vld [vmem:[#allocation2 + $0x3a] sm:$0xff]
        %v964 = vld [vmem:[#allocation2 + $0x4a] sm:$0xff]
        %v965 = vld [vmem:[#allocation2 + $0x52] sm:$0xff]
        %v966 = vld [vmem:[#allocation2 + $0x62] sm:$0xff]
        %v967 = vld [vmem:[#allocation2 + $0x6a] sm:$0xff]
        %v968 = vld [vmem:[#allocation2 + $0x7a] sm:$0xff]
        %v969 = vld [vmem:[#allocation2 + $0x82] sm:$0xff]
        %v970 = vld [vmem:[#allocation2 + $0x92] sm:$0xff]
        %v971 = vld [vmem:[#allocation2 + $0x9a] sm:$0xff]
        %v972 = vld [vmem:[#allocation2 + $0xaa] sm:$0xff]
        %v973 = vld [vmem:[#allocation2 + $0xb2] sm:$0xff]
        %v974 = vld [vmem:[#allocation2 + $0xc2] sm:$0xff]
        %v975 = vld [vmem:[#allocation2 + $0xca] sm:$0xff]
        %v976 = vld [vmem:[#allocation2 + $0xda] sm:$0xff]
        %v977 = vld [vmem:[#allocation2 + $0xe2] sm:$0xff]
        %v978 = vld [vmem:[#allocation2 + $0xf2] sm:$0xff]
        %v979 = vld [vmem:[#allocation2 + $0xfa] sm:$0xff]
        %v980 = vld [vmem:[#allocation2 + $0x10a] sm:$0xff]
        %v981 = vld [vmem:[#allocation2 + $0x112] sm:$0xff]
        %v982 = vld [vmem:[#allocation2 + $0x122] sm:$0xff]
        %v983 = vld [vmem:[#allocation2 + $0x12a] sm:$0xff]
        %v984 = vld [vmem:[#allocation2 + $0x13a] sm:$0xff]
        %v985 = vld [vmem:[#allocation2 + $0x142] sm:$0xff]
        %v986 = vld [vmem:[#allocation2 + $0x152] sm:$0xff]
        %v987 = vld [vmem:[#allocation2 + $0x15a] sm:$0xff]
        %v988 = vld [vmem:[#allocation2 + $0x16a] sm:$0xff]
        %v989 = vld [vmem:[#allocation2 + $0x172] sm:$0xff]
        %v990 = vlaneseq
        %v991 = vshrl.u32 %v990, 7
        %v992 = vsub.s32 2, %v991
        %v993 = vrot.slane %v749, %v992
        %v994 = vmul.f32 %v958, %v993
        %v995 = vmul.f32 %v959, %v993
        %v996 = vmul.f32 %v960, %v993
        %v997 = vmul.f32 %v961, %v993
        %v998 = vmul.f32 %v962, %v993
        %v999 = vmul.f32 %v963, %v993
        %v1000 = vmul.f32 %v964, %v993
        %v1001 = vmul.f32 %v965, %v993
        %v1002 = vmul.f32 %v966, %v993
        %v1003 = vmul.f32 %v967, %v993
        %v1004 = vmul.f32 %v968, %v993
        %v1005 = vmul.f32 %v969, %v993
        %v1006 = vmul.f32 %v970, %v993
        %v1007 = vmul.f32 %v971, %v993
        %v1008 = vmul.f32 %v972, %v993
        %v1009 = vmul.f32 %v973, %v993
        %v1010 = vmul.f32 %v974, %v993
        %v1011 = vmul.f32 %v975, %v993
        %v1012 = vmul.f32 %v976, %v993
        %v1013 = vmul.f32 %v977, %v993
        %v1014 = vmul.f32 %v978, %v993
        %v1015 = vmul.f32 %v979, %v993
        %v1016 = vmul.f32 %v980, %v993
        %v1017 = vmul.f32 %v981, %v993
        %v1018 = vmul.f32 %v982, %v993
        %v1019 = vmul.f32 %v983, %v993
        %v1020 = vmul.f32 %v984, %v993
        %v1021 = vmul.f32 %v985, %v993
        %v1022 = vmul.f32 %v986, %v993
        %v1023 = vmul.f32 %v987, %v993
        %v1024 = vmul.f32 %v988, %v993
        %v1025 = vmul.f32 %v989, %v993
        %v1026 = vadd.f32 %v926, %v994
        %v1027 = vadd.f32 %v927, %v995
        %v1028 = vadd.f32 %v928, %v996
        %v1029 = vadd.f32 %v929, %v997
        %v1030 = vadd.f32 %v930, %v998
        %v1031 = vadd.f32 %v931, %v999
        %v1032 = vadd.f32 %v932, %v1000
        %v1033 = vadd.f32 %v933, %v1001
        %v1034 = vadd.f32 %v934, %v1002
        %v1035 = vadd.f32 %v935, %v1003
        %v1036 = vadd.f32 %v936, %v1004
        %v1037 = vadd.f32 %v937, %v1005
        %v1038 = vadd.f32 %v938, %v1006
        %v1039 = vadd.f32 %v939, %v1007
        %v1040 = vadd.f32 %v940, %v1008
        %v1041 = vadd.f32 %v941, %v1009
        %v1042 = vadd.f32 %v942, %v1010
        %v1043 = vadd.f32 %v943, %v1011
        %v1044 = vadd.f32 %v944, %v1012
        %v1045 = vadd.f32 %v945, %v1013
        %v1046 = vadd.f32 %v946, %v1014
        %v1047 = vadd.f32 %v947, %v1015
        %v1048 = vadd.f32 %v948, %v1016
        %v1049 = vadd.f32 %v949, %v1017
        %v1050 = vadd.f32 %v950, %v1018
        %v1051 = vadd.f32 %v951, %v1019
        %v1052 = vadd.f32 %v952, %v1020
        %v1053 = vadd.f32 %v953, %v1021
        %v1054 = vadd.f32 %v954, %v1022
        %v1055 = vadd.f32 %v955, %v1023
        %v1056 = vadd.f32 %v956, %v1024
        %v1057 = vadd.f32 %v957, %v1025
        %v1058 = vld [vmem:[%s716] sm:$0xff]
        %v1059 = vld [vmem:[%s716 + $0x8] sm:$0xff]
        %v1060 = vld [vmem:[%s716 + $0x18] sm:$0xff]
        %v1061 = vld [vmem:[%s716 + $0x20] sm:$0xff]
        %v1062 = vld [vmem:[%s716 + $0x30] sm:$0xff]
        %v1063 = vld [vmem:[%s716 + $0x38] sm:$0xff]
        %v1064 = vld [vmem:[%s716 + $0x48] sm:$0xff]
        %v1065 = vld [vmem:[%s716 + $0x50] sm:$0xff]
        %v1066 = vld [vmem:[%s716 + $0x60] sm:$0xff]
        %v1067 = vld [vmem:[%s716 + $0x68] sm:$0xff]
        %v1068 = vld [vmem:[%s716 + $0x78] sm:$0xff]
        %v1069 = vld [vmem:[%s716 + $0x80] sm:$0xff]
        %v1070 = vld [vmem:[%s716 + $0x90] sm:$0xff]
        %v1071 = vld [vmem:[%s716 + $0x98] sm:$0xff]
        %v1072 = vld [vmem:[%s716 + $0xa8] sm:$0xff]
        %v1073 = vld [vmem:[%s716 + $0xb0] sm:$0xff]
        %v1074 = vld [vmem:[%s716 + $0xc0] sm:$0xff]
        %v1075 = vld [vmem:[%s716 + $0xc8] sm:$0xff]
        %v1076 = vld [vmem:[%s716 + $0xd8] sm:$0xff]
        %v1077 = vld [vmem:[%s716 + $0xe0] sm:$0xff]
        %v1078 = vld [vmem:[%s716 + $0xf0] sm:$0xff]
        %v1079 = vld [vmem:[%s716 + $0xf8] sm:$0xff]
        %v1080 = vld [vmem:[%s716 + $0x108] sm:$0xff]
        %v1081 = vld [vmem:[%s716 + $0x110] sm:$0xff]
        %v1082 = vld [vmem:[%s716 + $0x120] sm:$0xff]
        %v1083 = vld [vmem:[%s716 + $0x128] sm:$0xff]
        %v1084 = vld [vmem:[%s716 + $0x138] sm:$0xff]
        %v1085 = vld [vmem:[%s716 + $0x140] sm:$0xff]
        %v1086 = vld [vmem:[%s716 + $0x150] sm:$0xff]
        %v1087 = vld [vmem:[%s716 + $0x158] sm:$0xff]
        %v1088 = vld [vmem:[%s716 + $0x168] sm:$0xff]
        %v1089 = vld [vmem:[%s716 + $0x170] sm:$0xff]
        %v1090 = vlaneseq
        %v1091 = vshrl.u32 %v1090, 7
        %v1092 = vsub.s32 3, %v1091
        %v1093 = vrot.slane %v749, %v1092
        %v1094 = vmul.f32 %v1058, %v1093
        %v1095 = vmul.f32 %v1059, %v1093
        %v1096 = vmul.f32 %v1060, %v1093
        %v1097 = vmul.f32 %v1061, %v1093
        %v1098 = vmul.f32 %v1062, %v1093
        %v1099 = vmul.f32 %v1063, %v1093
        %v1100 = vmul.f32 %v1064, %v1093
        %v1101 = vmul.f32 %v1065, %v1093
        %v1102 = vmul.f32 %v1066, %v1093
        %v1103 = vmul.f32 %v1067, %v1093
        %v1104 = vmul.f32 %v1068, %v1093
        %v1105 = vmul.f32 %v1069, %v1093
        %v1106 = vmul.f32 %v1070, %v1093
        %v1107 = vmul.f32 %v1071, %v1093
        %v1108 = vmul.f32 %v1072, %v1093
        %v1109 = vmul.f32 %v1073, %v1093
        %v1110 = vmul.f32 %v1074, %v1093
        %v1111 = vmul.f32 %v1075, %v1093
        %v1112 = vmul.f32 %v1076, %v1093
        %v1113 = vmul.f32 %v1077, %v1093
        %v1114 = vmul.f32 %v1078, %v1093
        %v1115 = vmul.f32 %v1079, %v1093
        %v1116 = vmul.f32 %v1080, %v1093
        %v1117 = vmul.f32 %v1081, %v1093
        %v1118 = vmul.f32 %v1082, %v1093
        %v1119 = vmul.f32 %v1083, %v1093
        %v1120 = vmul.f32 %v1084, %v1093
        %v1121 = vmul.f32 %v1085, %v1093
        %v1122 = vmul.f32 %v1086, %v1093
        %v1123 = vmul.f32 %v1087, %v1093
        %v1124 = vmul.f32 %v1088, %v1093
        %v1125 = vmul.f32 %v1089, %v1093
        %v1126 = vadd.f32 %v1026, %v1094
        %v1127 = vadd.f32 %v1027, %v1095
        %v1128 = vadd.f32 %v1028, %v1096
        %v1129 = vadd.f32 %v1029, %v1097
        %v1130 = vadd.f32 %v1030, %v1098
        %v1131 = vadd.f32 %v1031, %v1099
        %v1132 = vadd.f32 %v1032, %v1100
        %v1133 = vadd.f32 %v1033, %v1101
        %v1134 = vadd.f32 %v1034, %v1102
        %v1135 = vadd.f32 %v1035, %v1103
        %v1136 = vadd.f32 %v1036, %v1104
        %v1137 = vadd.f32 %v1037, %v1105
        %v1138 = vadd.f32 %v1038, %v1106
        %v1139 = vadd.f32 %v1039, %v1107
        %v1140 = vadd.f32 %v1040, %v1108
        %v1141 = vadd.f32 %v1041, %v1109
        %v1142 = vadd.f32 %v1042, %v1110
        %v1143 = vadd.f32 %v1043, %v1111
        %v1144 = vadd.f32 %v1044, %v1112
        %v1145 = vadd.f32 %v1045, %v1113
        %v1146 = vadd.f32 %v1046, %v1114
        %v1147 = vadd.f32 %v1047, %v1115
        %v1148 = vadd.f32 %v1048, %v1116
        %v1149 = vadd.f32 %v1049, %v1117
        %v1150 = vadd.f32 %v1050, %v1118
        %v1151 = vadd.f32 %v1051, %v1119
        %v1152 = vadd.f32 %v1052, %v1120
        %v1153 = vadd.f32 %v1053, %v1121
        %v1154 = vadd.f32 %v1054, %v1122
        %v1155 = vadd.f32 %v1055, %v1123
        %v1156 = vadd.f32 %v1056, %v1124
        %v1157 = vadd.f32 %v1057, %v1125
        %v1158 = vld [vmem:[%s716 + $0x1] sm:$0xff]
        %v1159 = vld [vmem:[%s716 + $0x9] sm:$0xff]
        %v1160 = vld [vmem:[%s716 + $0x19] sm:$0xff]
        %v1161 = vld [vmem:[%s716 + $0x21] sm:$0xff]
        %v1162 = vld [vmem:[%s716 + $0x31] sm:$0xff]
        %v1163 = vld [vmem:[%s716 + $0x39] sm:$0xff]
        %v1164 = vld [vmem:[%s716 + $0x49] sm:$0xff]
        %v1165 = vld [vmem:[%s716 + $0x51] sm:$0xff]
        %v1166 = vld [vmem:[%s716 + $0x61] sm:$0xff]
        %v1167 = vld [vmem:[%s716 + $0x69] sm:$0xff]
        %v1168 = vld [vmem:[%s716 + $0x79] sm:$0xff]
        %v1169 = vld [vmem:[%s716 + $0x81] sm:$0xff]
        %v1170 = vld [vmem:[%s716 + $0x91] sm:$0xff]
        %v1171 = vld [vmem:[%s716 + $0x99] sm:$0xff]
        %v1172 = vld [vmem:[%s716 + $0xa9] sm:$0xff]
        %v1173 = vld [vmem:[%s716 + $0xb1] sm:$0xff]
        %v1174 = vld [vmem:[%s716 + $0xc1] sm:$0xff]
        %v1175 = vld [vmem:[%s716 + $0xc9] sm:$0xff]
        %v1176 = vld [vmem:[%s716 + $0xd9] sm:$0xff]
        %v1177 = vld [vmem:[%s716 + $0xe1] sm:$0xff]
        %v1178 = vld [vmem:[%s716 + $0xf1] sm:$0xff]
        %v1179 = vld [vmem:[%s716 + $0xf9] sm:$0xff]
        %v1180 = vld [vmem:[%s716 + $0x109] sm:$0xff]
        %v1181 = vld [vmem:[%s716 + $0x111] sm:$0xff]
        %v1182 = vld [vmem:[%s716 + $0x121] sm:$0xff]
        %v1183 = vld [vmem:[%s716 + $0x129] sm:$0xff]
        %v1184 = vld [vmem:[%s716 + $0x139] sm:$0xff]
        %v1185 = vld [vmem:[%s716 + $0x141] sm:$0xff]
        %v1186 = vld [vmem:[%s716 + $0x151] sm:$0xff]
        %v1187 = vld [vmem:[%s716 + $0x159] sm:$0xff]
        %v1188 = vld [vmem:[%s716 + $0x169] sm:$0xff]
        %v1189 = vld [vmem:[%s716 + $0x171] sm:$0xff]
        %v1190 = vlaneseq
        %v1191 = vshrl.u32 %v1190, 7
        %v1192 = vsub.s32 4, %v1191
        %v1193 = vrot.slane %v749, %v1192
        %v1194 = vmul.f32 %v1158, %v1193
        %v1195 = vmul.f32 %v1159, %v1193
        %v1196 = vmul.f32 %v1160, %v1193
        %v1197 = vmul.f32 %v1161, %v1193
        %v1198 = vmul.f32 %v1162, %v1193
        %v1199 = vmul.f32 %v1163, %v1193
        %v1200 = vmul.f32 %v1164, %v1193
        %v1201 = vmul.f32 %v1165, %v1193
        %v1202 = vmul.f32 %v1166, %v1193
        %v1203 = vmul.f32 %v1167, %v1193
        %v1204 = vmul.f32 %v1168, %v1193
        %v1205 = vmul.f32 %v1169, %v1193
        %v1206 = vmul.f32 %v1170, %v1193
        %v1207 = vmul.f32 %v1171, %v1193
        %v1208 = vmul.f32 %v1172, %v1193
        %v1209 = vmul.f32 %v1173, %v1193
        %v1210 = vmul.f32 %v1174, %v1193
        %v1211 = vmul.f32 %v1175, %v1193
        %v1212 = vmul.f32 %v1176, %v1193
        %v1213 = vmul.f32 %v1177, %v1193
        %v1214 = vmul.f32 %v1178, %v1193
        %v1215 = vmul.f32 %v1179, %v1193
        %v1216 = vmul.f32 %v1180, %v1193
        %v1217 = vmul.f32 %v1181, %v1193
        %v1218 = vmul.f32 %v1182, %v1193
        %v1219 = vmul.f32 %v1183, %v1193
        %v1220 = vmul.f32 %v1184, %v1193
        %v1221 = vmul.f32 %v1185, %v1193
        %v1222 = vmul.f32 %v1186, %v1193
        %v1223 = vmul.f32 %v1187, %v1193
        %v1224 = vmul.f32 %v1188, %v1193
        %v1225 = vmul.f32 %v1189, %v1193
        %v1226 = vadd.f32 %v1126, %v1194
        %v1227 = vadd.f32 %v1127, %v1195
        %v1228 = vadd.f32 %v1128, %v1196
        %v1229 = vadd.f32 %v1129, %v1197
        %v1230 = vadd.f32 %v1130, %v1198
        %v1231 = vadd.f32 %v1131, %v1199
        %v1232 = vadd.f32 %v1132, %v1200
        %v1233 = vadd.f32 %v1133, %v1201
        %v1234 = vadd.f32 %v1134, %v1202
        %v1235 = vadd.f32 %v1135, %v1203
        %v1236 = vadd.f32 %v1136, %v1204
        %v1237 = vadd.f32 %v1137, %v1205
        %v1238 = vadd.f32 %v1138, %v1206
        %v1239 = vadd.f32 %v1139, %v1207
        %v1240 = vadd.f32 %v1140, %v1208
        %v1241 = vadd.f32 %v1141, %v1209
        %v1242 = vadd.f32 %v1142, %v1210
        %v1243 = vadd.f32 %v1143, %v1211
        %v1244 = vadd.f32 %v1144, %v1212
        %v1245 = vadd.f32 %v1145, %v1213
        %v1246 = vadd.f32 %v1146, %v1214
        %v1247 = vadd.f32 %v1147, %v1215
        %v1248 = vadd.f32 %v1148, %v1216
        %v1249 = vadd.f32 %v1149, %v1217
        %v1250 = vadd.f32 %v1150, %v1218
        %v1251 = vadd.f32 %v1151, %v1219
        %v1252 = vadd.f32 %v1152, %v1220
        %v1253 = vadd.f32 %v1153, %v1221
        %v1254 = vadd.f32 %v1154, %v1222
        %v1255 = vadd.f32 %v1155, %v1223
        %v1256 = vadd.f32 %v1156, %v1224
        %v1257 = vadd.f32 %v1157, %v1225
        %v1258 = vld [vmem:[%s716 + $0x2] sm:$0xff]
        %v1259 = vld [vmem:[%s716 + $0xa] sm:$0xff]
        %v1260 = vld [vmem:[%s716 + $0x1a] sm:$0xff]
        %v1261 = vld [vmem:[%s716 + $0x22] sm:$0xff]
        %v1262 = vld [vmem:[%s716 + $0x32] sm:$0xff]
        %v1263 = vld [vmem:[%s716 + $0x3a] sm:$0xff]
        %v1264 = vld [vmem:[%s716 + $0x4a] sm:$0xff]
        %v1265 = vld [vmem:[%s716 + $0x52] sm:$0xff]
        %v1266 = vld [vmem:[%s716 + $0x62] sm:$0xff]
        %v1267 = vld [vmem:[%s716 + $0x6a] sm:$0xff]
        %v1268 = vld [vmem:[%s716 + $0x7a] sm:$0xff]
        %v1269 = vld [vmem:[%s716 + $0x82] sm:$0xff]
        %v1270 = vld [vmem:[%s716 + $0x92] sm:$0xff]
        %v1271 = vld [vmem:[%s716 + $0x9a] sm:$0xff]
        %v1272 = vld [vmem:[%s716 + $0xaa] sm:$0xff]
        %v1273 = vld [vmem:[%s716 + $0xb2] sm:$0xff]
        %v1274 = vld [vmem:[%s716 + $0xc2] sm:$0xff]
        %v1275 = vld [vmem:[%s716 + $0xca] sm:$0xff]
        %v1276 = vld [vmem:[%s716 + $0xda] sm:$0xff]
        %v1277 = vld [vmem:[%s716 + $0xe2] sm:$0xff]
        %v1278 = vld [vmem:[%s716 + $0xf2] sm:$0xff]
        %v1279 = vld [vmem:[%s716 + $0xfa] sm:$0xff]
        %v1280 = vld [vmem:[%s716 + $0x10a] sm:$0xff]
        %v1281 = vld [vmem:[%s716 + $0x112] sm:$0xff]
        %v1282 = vld [vmem:[%s716 + $0x122] sm:$0xff]
        %v1283 = vld [vmem:[%s716 + $0x12a] sm:$0xff]
        %v1284 = vld [vmem:[%s716 + $0x13a] sm:$0xff]
        %v1285 = vld [vmem:[%s716 + $0x142] sm:$0xff]
        %v1286 = vld [vmem:[%s716 + $0x152] sm:$0xff]
        %v1287 = vld [vmem:[%s716 + $0x15a] sm:$0xff]
        %v1288 = vld [vmem:[%s716 + $0x16a] sm:$0xff]
        %v1289 = vld [vmem:[%s716 + $0x172] sm:$0xff]
        %v1290 = vlaneseq
        %v1291 = vshrl.u32 %v1290, 7
        %v1292 = vsub.s32 5, %v1291
        %v1293 = vrot.slane %v749, %v1292
        %v1294 = vmul.f32 %v1258, %v1293
        %v1295 = vmul.f32 %v1259, %v1293
        %v1296 = vmul.f32 %v1260, %v1293
        %v1297 = vmul.f32 %v1261, %v1293
        %v1298 = vmul.f32 %v1262, %v1293
        %v1299 = vmul.f32 %v1263, %v1293
        %v1300 = vmul.f32 %v1264, %v1293
        %v1301 = vmul.f32 %v1265, %v1293
        %v1302 = vmul.f32 %v1266, %v1293
        %v1303 = vmul.f32 %v1267, %v1293
        %v1304 = vmul.f32 %v1268, %v1293
        %v1305 = vmul.f32 %v1269, %v1293
        %v1306 = vmul.f32 %v1270, %v1293
        %v1307 = vmul.f32 %v1271, %v1293
        %v1308 = vmul.f32 %v1272, %v1293
        %v1309 = vmul.f32 %v1273, %v1293
        %v1310 = vmul.f32 %v1274, %v1293
        %v1311 = vmul.f32 %v1275, %v1293
        %v1312 = vmul.f32 %v1276, %v1293
        %v1313 = vmul.f32 %v1277, %v1293
        %v1314 = vmul.f32 %v1278, %v1293
        %v1315 = vmul.f32 %v1279, %v1293
        %v1316 = vmul.f32 %v1280, %v1293
        %v1317 = vmul.f32 %v1281, %v1293
        %v1318 = vmul.f32 %v1282, %v1293
        %v1319 = vmul.f32 %v1283, %v1293
        %v1320 = vmul.f32 %v1284, %v1293
        %v1321 = vmul.f32 %v1285, %v1293
        %v1322 = vmul.f32 %v1286, %v1293
        %v1323 = vmul.f32 %v1287, %v1293
        %v1324 = vmul.f32 %v1288, %v1293
        %v1325 = vmul.f32 %v1289, %v1293
        %v1326 = vadd.f32 %v1226, %v1294
        %v1327 = vadd.f32 %v1227, %v1295
        %v1328 = vadd.f32 %v1228, %v1296
        %v1329 = vadd.f32 %v1229, %v1297
        %v1330 = vadd.f32 %v1230, %v1298
        %v1331 = vadd.f32 %v1231, %v1299
        %v1332 = vadd.f32 %v1232, %v1300
        %v1333 = vadd.f32 %v1233, %v1301
        %v1334 = vadd.f32 %v1234, %v1302
        %v1335 = vadd.f32 %v1235, %v1303
        %v1336 = vadd.f32 %v1236, %v1304
        %v1337 = vadd.f32 %v1237, %v1305
        %v1338 = vadd.f32 %v1238, %v1306
        %v1339 = vadd.f32 %v1239, %v1307
        %v1340 = vadd.f32 %v1240, %v1308
        %v1341 = vadd.f32 %v1241, %v1309
        %v1342 = vadd.f32 %v1242, %v1310
        %v1343 = vadd.f32 %v1243, %v1311
        %v1344 = vadd.f32 %v1244, %v1312
        %v1345 = vadd.f32 %v1245, %v1313
        %v1346 = vadd.f32 %v1246, %v1314
        %v1347 = vadd.f32 %v1247, %v1315
        %v1348 = vadd.f32 %v1248, %v1316
        %v1349 = vadd.f32 %v1249, %v1317
        %v1350 = vadd.f32 %v1250, %v1318
        %v1351 = vadd.f32 %v1251, %v1319
        %v1352 = vadd.f32 %v1252, %v1320
        %v1353 = vadd.f32 %v1253, %v1321
        %v1354 = vadd.f32 %v1254, %v1322
        %v1355 = vadd.f32 %v1255, %v1323
        %v1356 = vadd.f32 %v1256, %v1324
        %v1357 = vadd.f32 %v1257, %v1325
        %s1358 = scalar_lea.vmem [#allocation2], 48
        %v1359 = vld [vmem:[%s1358] sm:$0xff]
        %v1360 = vld [vmem:[%s1358 + $0x8] sm:$0xff]
        %v1361 = vld [vmem:[%s1358 + $0x18] sm:$0xff]
        %v1362 = vld [vmem:[%s1358 + $0x20] sm:$0xff]
        %v1363 = vld [vmem:[%s1358 + $0x30] sm:$0xff]
        %v1364 = vld [vmem:[%s1358 + $0x38] sm:$0xff]
        %v1365 = vld [vmem:[%s1358 + $0x48] sm:$0xff]
        %v1366 = vld [vmem:[%s1358 + $0x50] sm:$0xff]
        %v1367 = vld [vmem:[%s1358 + $0x60] sm:$0xff]
        %v1368 = vld [vmem:[%s1358 + $0x68] sm:$0xff]
        %v1369 = vld [vmem:[%s1358 + $0x78] sm:$0xff]
        %v1370 = vld [vmem:[%s1358 + $0x80] sm:$0xff]
        %v1371 = vld [vmem:[%s1358 + $0x90] sm:$0xff]
        %v1372 = vld [vmem:[%s1358 + $0x98] sm:$0xff]
        %v1373 = vld [vmem:[%s1358 + $0xa8] sm:$0xff]
        %v1374 = vld [vmem:[%s1358 + $0xb0] sm:$0xff]
        %v1375 = vld [vmem:[%s1358 + $0xc0] sm:$0xff]
        %v1376 = vld [vmem:[%s1358 + $0xc8] sm:$0xff]
        %v1377 = vld [vmem:[%s1358 + $0xd8] sm:$0xff]
        %v1378 = vld [vmem:[%s1358 + $0xe0] sm:$0xff]
        %v1379 = vld [vmem:[%s1358 + $0xf0] sm:$0xff]
        %v1380 = vld [vmem:[%s1358 + $0xf8] sm:$0xff]
        %v1381 = vld [vmem:[%s1358 + $0x108] sm:$0xff]
        %v1382 = vld [vmem:[%s1358 + $0x110] sm:$0xff]
        %v1383 = vld [vmem:[%s1358 + $0x120] sm:$0xff]
        %v1384 = vld [vmem:[%s1358 + $0x128] sm:$0xff]
        %v1385 = vld [vmem:[%s1358 + $0x138] sm:$0xff]
        %v1386 = vld [vmem:[%s1358 + $0x140] sm:$0xff]
        %v1387 = vld [vmem:[%s1358 + $0x150] sm:$0xff]
        %v1388 = vld [vmem:[%s1358 + $0x158] sm:$0xff]
        %v1389 = vld [vmem:[%s1358 + $0x168] sm:$0xff]
        %v1390 = vld [vmem:[%s1358 + $0x170] sm:$0xff]
        %v1391 = vlaneseq
        %v1392 = vshrl.u32 %v1391, 7
        %v1393 = vsub.s32 6, %v1392
        %v1394 = vrot.slane %v749, %v1393
        %v1395 = vmul.f32 %v1359, %v1394
        %v1396 = vmul.f32 %v1360, %v1394
        %v1397 = vmul.f32 %v1361, %v1394
        %v1398 = vmul.f32 %v1362, %v1394
        %v1399 = vmul.f32 %v1363, %v1394
        %v1400 = vmul.f32 %v1364, %v1394
        %v1401 = vmul.f32 %v1365, %v1394
        %v1402 = vmul.f32 %v1366, %v1394
        %v1403 = vmul.f32 %v1367, %v1394
        %v1404 = vmul.f32 %v1368, %v1394
        %v1405 = vmul.f32 %v1369, %v1394
        %v1406 = vmul.f32 %v1370, %v1394
        %v1407 = vmul.f32 %v1371, %v1394
        %v1408 = vmul.f32 %v1372, %v1394
        %v1409 = vmul.f32 %v1373, %v1394
        %v1410 = vmul.f32 %v1374, %v1394
        %v1411 = vmul.f32 %v1375, %v1394
        %v1412 = vmul.f32 %v1376, %v1394
        %v1413 = vmul.f32 %v1377, %v1394
        %v1414 = vmul.f32 %v1378, %v1394
        %v1415 = vmul.f32 %v1379, %v1394
        %v1416 = vmul.f32 %v1380, %v1394
        %v1417 = vmul.f32 %v1381, %v1394
        %v1418 = vmul.f32 %v1382, %v1394
        %v1419 = vmul.f32 %v1383, %v1394
        %v1420 = vmul.f32 %v1384, %v1394
        %v1421 = vmul.f32 %v1385, %v1394
        %v1422 = vmul.f32 %v1386, %v1394
        %v1423 = vmul.f32 %v1387, %v1394
        %v1424 = vmul.f32 %v1388, %v1394
        %v1425 = vmul.f32 %v1389, %v1394
        %v1426 = vmul.f32 %v1390, %v1394
        %v1427 = vadd.f32 %v1326, %v1395
        %v1428 = vadd.f32 %v1327, %v1396
        %v1429 = vadd.f32 %v1328, %v1397
        %v1430 = vadd.f32 %v1329, %v1398
        %v1431 = vadd.f32 %v1330, %v1399
        %v1432 = vadd.f32 %v1331, %v1400
        %v1433 = vadd.f32 %v1332, %v1401
        %v1434 = vadd.f32 %v1333, %v1402
        %v1435 = vadd.f32 %v1334, %v1403
        %v1436 = vadd.f32 %v1335, %v1404
        %v1437 = vadd.f32 %v1336, %v1405
        %v1438 = vadd.f32 %v1337, %v1406
        %v1439 = vadd.f32 %v1338, %v1407
        %v1440 = vadd.f32 %v1339, %v1408
        %v1441 = vadd.f32 %v1340, %v1409
        %v1442 = vadd.f32 %v1341, %v1410
        %v1443 = vadd.f32 %v1342, %v1411
        %v1444 = vadd.f32 %v1343, %v1412
        %v1445 = vadd.f32 %v1344, %v1413
        %v1446 = vadd.f32 %v1345, %v1414
        %v1447 = vadd.f32 %v1346, %v1415
        %v1448 = vadd.f32 %v1347, %v1416
        %v1449 = vadd.f32 %v1348, %v1417
        %v1450 = vadd.f32 %v1349, %v1418
        %v1451 = vadd.f32 %v1350, %v1419
        %v1452 = vadd.f32 %v1351, %v1420
        %v1453 = vadd.f32 %v1352, %v1421
        %v1454 = vadd.f32 %v1353, %v1422
        %v1455 = vadd.f32 %v1354, %v1423
        %v1456 = vadd.f32 %v1355, %v1424
        %v1457 = vadd.f32 %v1356, %v1425
        %v1458 = vadd.f32 %v1357, %v1426
        %v1459 = vld [vmem:[%s1358 + $0x1] sm:$0xff]
        %v1460 = vld [vmem:[%s1358 + $0x9] sm:$0xff]
        %v1461 = vld [vmem:[%s1358 + $0x19] sm:$0xff]
        %v1462 = vld [vmem:[%s1358 + $0x21] sm:$0xff]
        %v1463 = vld [vmem:[%s1358 + $0x31] sm:$0xff]
        %v1464 = vld [vmem:[%s1358 + $0x39] sm:$0xff]
        %v1465 = vld [vmem:[%s1358 + $0x49] sm:$0xff]
        %v1466 = vld [vmem:[%s1358 + $0x51] sm:$0xff]
        %v1467 = vld [vmem:[%s1358 + $0x61] sm:$0xff]
        %v1468 = vld [vmem:[%s1358 + $0x69] sm:$0xff]
        %v1469 = vld [vmem:[%s1358 + $0x79] sm:$0xff]
        %v1470 = vld [vmem:[%s1358 + $0x81] sm:$0xff]
        %v1471 = vld [vmem:[%s1358 + $0x91] sm:$0xff]
        %v1472 = vld [vmem:[%s1358 + $0x99] sm:$0xff]
        %v1473 = vld [vmem:[%s1358 + $0xa9] sm:$0xff]
        %v1474 = vld [vmem:[%s1358 + $0xb1] sm:$0xff]
        %v1475 = vld [vmem:[%s1358 + $0xc1] sm:$0xff]
        %v1476 = vld [vmem:[%s1358 + $0xc9] sm:$0xff]
        %v1477 = vld [vmem:[%s1358 + $0xd9] sm:$0xff]
        %v1478 = vld [vmem:[%s1358 + $0xe1] sm:$0xff]
        %v1479 = vld [vmem:[%s1358 + $0xf1] sm:$0xff]
        %v1480 = vld [vmem:[%s1358 + $0xf9] sm:$0xff]
        %v1481 = vld [vmem:[%s1358 + $0x109] sm:$0xff]
        %v1482 = vld [vmem:[%s1358 + $0x111] sm:$0xff]
        %v1483 = vld [vmem:[%s1358 + $0x121] sm:$0xff]
        %v1484 = vld [vmem:[%s1358 + $0x129] sm:$0xff]
        %v1485 = vld [vmem:[%s1358 + $0x139] sm:$0xff]
        %v1486 = vld [vmem:[%s1358 + $0x141] sm:$0xff]
        %v1487 = vld [vmem:[%s1358 + $0x151] sm:$0xff]
        %v1488 = vld [vmem:[%s1358 + $0x159] sm:$0xff]
        %v1489 = vld [vmem:[%s1358 + $0x169] sm:$0xff]
        %v1490 = vld [vmem:[%s1358 + $0x171] sm:$0xff]
        %v1491 = vlaneseq
        %v1492 = vshrl.u32 %v1491, 7
        %v1493 = vsub.s32 7, %v1492
        %v1494 = vrot.slane %v749, %v1493
        %v1495 = vmul.f32 %v1459, %v1494
        %v1496 = vmul.f32 %v1460, %v1494
        %v1497 = vmul.f32 %v1461, %v1494
        %v1498 = vmul.f32 %v1462, %v1494
        %v1499 = vmul.f32 %v1463, %v1494
        %v1500 = vmul.f32 %v1464, %v1494
        %v1501 = vmul.f32 %v1465, %v1494
        %v1502 = vmul.f32 %v1466, %v1494
        %v1503 = vmul.f32 %v1467, %v1494
        %v1504 = vmul.f32 %v1468, %v1494
        %v1505 = vmul.f32 %v1469, %v1494
        %v1506 = vmul.f32 %v1470, %v1494
        %v1507 = vmul.f32 %v1471, %v1494
        %v1508 = vmul.f32 %v1472, %v1494
        %v1509 = vmul.f32 %v1473, %v1494
        %v1510 = vmul.f32 %v1474, %v1494
        %v1511 = vmul.f32 %v1475, %v1494
        %v1512 = vmul.f32 %v1476, %v1494
        %v1513 = vmul.f32 %v1477, %v1494
        %v1514 = vmul.f32 %v1478, %v1494
        %v1515 = vmul.f32 %v1479, %v1494
        %v1516 = vmul.f32 %v1480, %v1494
        %v1517 = vmul.f32 %v1481, %v1494
        %v1518 = vmul.f32 %v1482, %v1494
        %v1519 = vmul.f32 %v1483, %v1494
        %v1520 = vmul.f32 %v1484, %v1494
        %v1521 = vmul.f32 %v1485, %v1494
        %v1522 = vmul.f32 %v1486, %v1494
        %v1523 = vmul.f32 %v1487, %v1494
        %v1524 = vmul.f32 %v1488, %v1494
        %v1525 = vmul.f32 %v1489, %v1494
        %v1526 = vmul.f32 %v1490, %v1494
        %v1527 = vadd.f32 %v1427, %v1495
        %v1528 = vadd.f32 %v1428, %v1496
        %v1529 = vadd.f32 %v1429, %v1497
        %v1530 = vadd.f32 %v1430, %v1498
        %v1531 = vadd.f32 %v1431, %v1499
        %v1532 = vadd.f32 %v1432, %v1500
        %v1533 = vadd.f32 %v1433, %v1501
        %v1534 = vadd.f32 %v1434, %v1502
        %v1535 = vadd.f32 %v1435, %v1503
        %v1536 = vadd.f32 %v1436, %v1504
        %v1537 = vadd.f32 %v1437, %v1505
        %v1538 = vadd.f32 %v1438, %v1506
        %v1539 = vadd.f32 %v1439, %v1507
        %v1540 = vadd.f32 %v1440, %v1508
        %v1541 = vadd.f32 %v1441, %v1509
        %v1542 = vadd.f32 %v1442, %v1510
        %v1543 = vadd.f32 %v1443, %v1511
        %v1544 = vadd.f32 %v1444, %v1512
        %v1545 = vadd.f32 %v1445, %v1513
        %v1546 = vadd.f32 %v1446, %v1514
        %v1547 = vadd.f32 %v1447, %v1515
        %v1548 = vadd.f32 %v1448, %v1516
        %v1549 = vadd.f32 %v1449, %v1517
        %v1550 = vadd.f32 %v1450, %v1518
        %v1551 = vadd.f32 %v1451, %v1519
        %v1552 = vadd.f32 %v1452, %v1520
        %v1553 = vadd.f32 %v1453, %v1521
        %v1554 = vadd.f32 %v1454, %v1522
        %v1555 = vadd.f32 %v1455, %v1523
        %v1556 = vadd.f32 %v1456, %v1524
        %v1557 = vadd.f32 %v1457, %v1525
        %v1558 = vadd.f32 %v1458, %v1526
        %v1559 = vld [vmem:[%s1358 + $0x2] sm:$0xff]
        %v1560 = vld [vmem:[%s1358 + $0xa] sm:$0xff]
        %v1561 = vld [vmem:[%s1358 + $0x1a] sm:$0xff]
        %v1562 = vld [vmem:[%s1358 + $0x22] sm:$0xff]
        %v1563 = vld [vmem:[%s1358 + $0x32] sm:$0xff]
        %v1564 = vld [vmem:[%s1358 + $0x3a] sm:$0xff]
        %v1565 = vld [vmem:[%s1358 + $0x4a] sm:$0xff]
        %v1566 = vld [vmem:[%s1358 + $0x52] sm:$0xff]
        %v1567 = vld [vmem:[%s1358 + $0x62] sm:$0xff]
        %v1568 = vld [vmem:[%s1358 + $0x6a] sm:$0xff]
        %v1569 = vld [vmem:[%s1358 + $0x7a] sm:$0xff]
        %v1570 = vld [vmem:[%s1358 + $0x82] sm:$0xff]
        %v1571 = vld [vmem:[%s1358 + $0x92] sm:$0xff]
        %v1572 = vld [vmem:[%s1358 + $0x9a] sm:$0xff]
        %v1573 = vld [vmem:[%s1358 + $0xaa] sm:$0xff]
        %v1574 = vld [vmem:[%s1358 + $0xb2] sm:$0xff]
        %v1575 = vld [vmem:[%s1358 + $0xc2] sm:$0xff]
        %v1576 = vld [vmem:[%s1358 + $0xca] sm:$0xff]
        %v1577 = vld [vmem:[%s1358 + $0xda] sm:$0xff]
        %v1578 = vld [vmem:[%s1358 + $0xe2] sm:$0xff]
        %v1579 = vld [vmem:[%s1358 + $0xf2] sm:$0xff]
        %v1580 = vld [vmem:[%s1358 + $0xfa] sm:$0xff]
        %v1581 = vld [vmem:[%s1358 + $0x10a] sm:$0xff]
        %v1582 = vld [vmem:[%s1358 + $0x112] sm:$0xff]
        %v1583 = vld [vmem:[%s1358 + $0x122] sm:$0xff]
        %v1584 = vld [vmem:[%s1358 + $0x12a] sm:$0xff]
        %v1585 = vld [vmem:[%s1358 + $0x13a] sm:$0xff]
        %v1586 = vld [vmem:[%s1358 + $0x142] sm:$0xff]
        %v1587 = vld [vmem:[%s1358 + $0x152] sm:$0xff]
        %v1588 = vld [vmem:[%s1358 + $0x15a] sm:$0xff]
        %v1589 = vld [vmem:[%s1358 + $0x16a] sm:$0xff]
        %v1590 = vld [vmem:[%s1358 + $0x172] sm:$0xff]
        %v1591 = vlaneseq
        %v1592 = vshrl.u32 %v1591, 7
        %v1593 = vsub.s32 0, %v1592
        %v1594 = vrot.slane %v750, %v1593
        %v1595 = vmul.f32 %v1559, %v1594
        %v1596 = vmul.f32 %v1560, %v1594
        %v1597 = vmul.f32 %v1561, %v1594
        %v1598 = vmul.f32 %v1562, %v1594
        %v1599 = vmul.f32 %v1563, %v1594
        %v1600 = vmul.f32 %v1564, %v1594
        %v1601 = vmul.f32 %v1565, %v1594
        %v1602 = vmul.f32 %v1566, %v1594
        %v1603 = vmul.f32 %v1567, %v1594
        %v1604 = vmul.f32 %v1568, %v1594
        %v1605 = vmul.f32 %v1569, %v1594
        %v1606 = vmul.f32 %v1570, %v1594
        %v1607 = vmul.f32 %v1571, %v1594
        %v1608 = vmul.f32 %v1572, %v1594
        %v1609 = vmul.f32 %v1573, %v1594
        %v1610 = vmul.f32 %v1574, %v1594
        %v1611 = vmul.f32 %v1575, %v1594
        %v1612 = vmul.f32 %v1576, %v1594
        %v1613 = vmul.f32 %v1577, %v1594
        %v1614 = vmul.f32 %v1578, %v1594
        %v1615 = vmul.f32 %v1579, %v1594
        %v1616 = vmul.f32 %v1580, %v1594
        %v1617 = vmul.f32 %v1581, %v1594
        %v1618 = vmul.f32 %v1582, %v1594
        %v1619 = vmul.f32 %v1583, %v1594
        %v1620 = vmul.f32 %v1584, %v1594
        %v1621 = vmul.f32 %v1585, %v1594
        %v1622 = vmul.f32 %v1586, %v1594
        %v1623 = vmul.f32 %v1587, %v1594
        %v1624 = vmul.f32 %v1588, %v1594
        %v1625 = vmul.f32 %v1589, %v1594
        %v1626 = vmul.f32 %v1590, %v1594
        %v1627 = vadd.f32 %v1527, %v1595
        %v1628 = vadd.f32 %v1528, %v1596
        %v1629 = vadd.f32 %v1529, %v1597
        %v1630 = vadd.f32 %v1530, %v1598
        %v1631 = vadd.f32 %v1531, %v1599
        %v1632 = vadd.f32 %v1532, %v1600
        %v1633 = vadd.f32 %v1533, %v1601
        %v1634 = vadd.f32 %v1534, %v1602
        %v1635 = vadd.f32 %v1535, %v1603
        %v1636 = vadd.f32 %v1536, %v1604
        %v1637 = vadd.f32 %v1537, %v1605
        %v1638 = vadd.f32 %v1538, %v1606
        %v1639 = vadd.f32 %v1539, %v1607
        %v1640 = vadd.f32 %v1540, %v1608
        %v1641 = vadd.f32 %v1541, %v1609
        %v1642 = vadd.f32 %v1542, %v1610
        %v1643 = vadd.f32 %v1543, %v1611
        %v1644 = vadd.f32 %v1544, %v1612
        %v1645 = vadd.f32 %v1545, %v1613
        %v1646 = vadd.f32 %v1546, %v1614
        %v1647 = vadd.f32 %v1547, %v1615
        %v1648 = vadd.f32 %v1548, %v1616
        %v1649 = vadd.f32 %v1549, %v1617
        %v1650 = vadd.f32 %v1550, %v1618
        %v1651 = vadd.f32 %v1551, %v1619
        %v1652 = vadd.f32 %v1552, %v1620
        %v1653 = vadd.f32 %v1553, %v1621
        %v1654 = vadd.f32 %v1554, %v1622
        %v1655 = vadd.f32 %v1555, %v1623
        %v1656 = vadd.f32 %v1556, %v1624
        %v1657 = vadd.f32 %v1557, %v1625
        %v1658 = vadd.f32 %v1558, %v1626
        %v1659 = vmul.f32 %v1627, 0.70710677
        %v1660 = vmul.f32 %v1628, 0.70710677
        %v1661 = vmul.f32 %v1629, 0.70710677
        %v1662 = vmul.f32 %v1630, 0.70710677
        %v1663 = vmul.f32 %v1631, 0.70710677
        %v1664 = vmul.f32 %v1632, 0.70710677
        %v1665 = vmul.f32 %v1633, 0.70710677
        %v1666 = vmul.f32 %v1634, 0.70710677
        %v1667 = vmul.f32 %v1635, 0.70710677
        %v1668 = vmul.f32 %v1636, 0.70710677
        %v1669 = vmul.f32 %v1637, 0.70710677
        %v1670 = vmul.f32 %v1638, 0.70710677
        %v1671 = vmul.f32 %v1639, 0.70710677
        %v1672 = vmul.f32 %v1640, 0.70710677
        %v1673 = vmul.f32 %v1641, 0.70710677
        %v1674 = vmul.f32 %v1642, 0.70710677
        %v1675 = vmul.f32 %v1643, 0.70710677
        %v1676 = vmul.f32 %v1644, 0.70710677
        %v1677 = vmul.f32 %v1645, 0.70710677
        %v1678 = vmul.f32 %v1646, 0.70710677
        %v1679 = vmul.f32 %v1647, 0.70710677
        %v1680 = vmul.f32 %v1648, 0.70710677
        %v1681 = vmul.f32 %v1649, 0.70710677
        %v1682 = vmul.f32 %v1650, 0.70710677
        %v1683 = vmul.f32 %v1651, 0.70710677
        %v1684 = vmul.f32 %v1652, 0.70710677
        %v1685 = vmul.f32 %v1653, 0.70710677
        %v1686 = vmul.f32 %v1654, 0.70710677
        %v1687 = vmul.f32 %v1655, 0.70710677
        %v1688 = vmul.f32 %v1656, 0.70710677
        %v1689 = vmul.f32 %v1657, 0.70710677
        %v1690 = vmul.f32 %v1658, 0.70710677
        %v1691 = vand.u32 2147483647, %v1659
        %v1692 = vand.u32 2147483647, %v1660
        %v1693 = vand.u32 2147483647, %v1661
        %v1694 = vand.u32 2147483647, %v1662
        %v1695 = vand.u32 2147483647, %v1663
        %v1696 = vand.u32 2147483647, %v1664
        %v1697 = vand.u32 2147483647, %v1665
        %v1698 = vand.u32 2147483647, %v1666
        %v1699 = vand.u32 2147483647, %v1667
        %v1700 = vand.u32 2147483647, %v1668
        %v1701 = vand.u32 2147483647, %v1669
        %v1702 = vand.u32 2147483647, %v1670
        %v1703 = vand.u32 2147483647, %v1671
        %v1704 = vand.u32 2147483647, %v1672
        %v1705 = vand.u32 2147483647, %v1673
        %v1706 = vand.u32 2147483647, %v1674
        %v1707 = vand.u32 2147483647, %v1675
        %v1708 = vand.u32 2147483647, %v1676
        %v1709 = vand.u32 2147483647, %v1677
        %v1710 = vand.u32 2147483647, %v1678
        %v1711 = vand.u32 2147483647, %v1679
        %v1712 = vand.u32 2147483647, %v1680
        %v1713 = vand.u32 2147483647, %v1681
        %v1714 = vand.u32 2147483647, %v1682
        %v1715 = vand.u32 2147483647, %v1683
        %v1716 = vand.u32 2147483647, %v1684
        %v1717 = vand.u32 2147483647, %v1685
        %v1718 = vand.u32 2147483647, %v1686
        %v1719 = vand.u32 2147483647, %v1687
        %v1720 = vand.u32 2147483647, %v1688
        %v1721 = vand.u32 2147483647, %v1689
        %v1722 = vand.u32 2147483647, %v1690
        %v1723 = vmul.f32 %v1691, 0.3275911
        %v1724 = vmul.f32 %v1692, 0.3275911
        %v1725 = vmul.f32 %v1693, 0.3275911
        %v1726 = vmul.f32 %v1694, 0.3275911
        %v1727 = vmul.f32 %v1695, 0.3275911
        %v1728 = vmul.f32 %v1696, 0.3275911
        %v1729 = vmul.f32 %v1697, 0.3275911
        %v1730 = vmul.f32 %v1698, 0.3275911
        %v1731 = vmul.f32 %v1699, 0.3275911
        %v1732 = vmul.f32 %v1700, 0.3275911
        %v1733 = vmul.f32 %v1701, 0.3275911
        %v1734 = vmul.f32 %v1702, 0.3275911
        %v1735 = vmul.f32 %v1703, 0.3275911
        %v1736 = vmul.f32 %v1704, 0.3275911
        %v1737 = vmul.f32 %v1705, 0.3275911
        %v1738 = vmul.f32 %v1706, 0.3275911
        %v1739 = vmul.f32 %v1707, 0.3275911
        %v1740 = vmul.f32 %v1708, 0.3275911
        %v1741 = vmul.f32 %v1709, 0.3275911
        %v1742 = vmul.f32 %v1710, 0.3275911
        %v1743 = vmul.f32 %v1711, 0.3275911
        %v1744 = vmul.f32 %v1712, 0.3275911
        %v1745 = vmul.f32 %v1713, 0.3275911
        %v1746 = vmul.f32 %v1714, 0.3275911
        %v1747 = vmul.f32 %v1715, 0.3275911
        %v1748 = vmul.f32 %v1716, 0.3275911
        %v1749 = vmul.f32 %v1717, 0.3275911
        %v1750 = vmul.f32 %v1718, 0.3275911
        %v1751 = vmul.f32 %v1719, 0.3275911
        %v1752 = vmul.f32 %v1720, 0.3275911
        %v1753 = vmul.f32 %v1721, 0.3275911
        %v1754 = vmul.f32 %v1722, 0.3275911
        %v1755 = vadd.f32 %v1723, 1.0
        %v1756 = vadd.f32 %v1724, 1.0
        %v1757 = vadd.f32 %v1725, 1.0
        %v1758 = vadd.f32 %v1726, 1.0
        %v1759 = vadd.f32 %v1727, 1.0
        %v1760 = vadd.f32 %v1728, 1.0
        %v1761 = vadd.f32 %v1729, 1.0
        %v1762 = vadd.f32 %v1730, 1.0
        %v1763 = vadd.f32 %v1731, 1.0
        %v1764 = vadd.f32 %v1732, 1.0
        %v1765 = vadd.f32 %v1733, 1.0
        %v1766 = vadd.f32 %v1734, 1.0
        %v1767 = vadd.f32 %v1735, 1.0
        %v1768 = vadd.f32 %v1736, 1.0
        %v1769 = vadd.f32 %v1737, 1.0
        %v1770 = vadd.f32 %v1738, 1.0
        %v1771 = vadd.f32 %v1739, 1.0
        %v1772 = vadd.f32 %v1740, 1.0
        %v1773 = vadd.f32 %v1741, 1.0
        %v1774 = vadd.f32 %v1742, 1.0
        %v1775 = vadd.f32 %v1743, 1.0
        %v1776 = vadd.f32 %v1744, 1.0
        %v1777 = vadd.f32 %v1745, 1.0
        %v1778 = vadd.f32 %v1746, 1.0
        %v1779 = vadd.f32 %v1747, 1.0
        %v1780 = vadd.f32 %v1748, 1.0
        %v1781 = vadd.f32 %v1749, 1.0
        %v1782 = vadd.f32 %v1750, 1.0
        %v1783 = vadd.f32 %v1751, 1.0
        %v1784 = vadd.f32 %v1752, 1.0
        %v1785 = vadd.f32 %v1753, 1.0
        %v1786 = vadd.f32 %v1754, 1.0
        %v1787 = vrcp.pop %v1755
        %v1788 = vmul.f32 1.0, %v1787
        %v1789 = vrcp.pop %v1756
        %v1790 = vmul.f32 1.0, %v1789
        %v1791 = vrcp.pop %v1757
        %v1792 = vmul.f32 1.0, %v1791
        %v1793 = vrcp.pop %v1758
        %v1794 = vmul.f32 1.0, %v1793
        %v1795 = vrcp.pop %v1759
        %v1796 = vmul.f32 1.0, %v1795
        %v1797 = vrcp.pop %v1760
        %v1798 = vmul.f32 1.0, %v1797
        %v1799 = vrcp.pop %v1761
        %v1800 = vmul.f32 1.0, %v1799
        %v1801 = vrcp.pop %v1762
        %v1802 = vmul.f32 1.0, %v1801
        %v1803 = vrcp.pop %v1763
        %v1804 = vmul.f32 1.0, %v1803
        %v1805 = vrcp.pop %v1764
        %v1806 = vmul.f32 1.0, %v1805
        %v1807 = vrcp.pop %v1765
        %v1808 = vmul.f32 1.0, %v1807
        %v1809 = vrcp.pop %v1766
        %v1810 = vmul.f32 1.0, %v1809
        %v1811 = vrcp.pop %v1767
        %v1812 = vmul.f32 1.0, %v1811
        %v1813 = vrcp.pop %v1768
        %v1814 = vmul.f32 1.0, %v1813
        %v1815 = vrcp.pop %v1769
        %v1816 = vmul.f32 1.0, %v1815
        %v1817 = vrcp.pop %v1770
        %v1818 = vmul.f32 1.0, %v1817
        %v1819 = vrcp.pop %v1771
        %v1820 = vmul.f32 1.0, %v1819
        %v1821 = vrcp.pop %v1772
        %v1822 = vmul.f32 1.0, %v1821
        %v1823 = vrcp.pop %v1773
        %v1824 = vmul.f32 1.0, %v1823
        %v1825 = vrcp.pop %v1774
        %v1826 = vmul.f32 1.0, %v1825
        %v1827 = vrcp.pop %v1775
        %v1828 = vmul.f32 1.0, %v1827
        %v1829 = vrcp.pop %v1776
        %v1830 = vmul.f32 1.0, %v1829
        %v1831 = vrcp.pop %v1777
        %v1832 = vmul.f32 1.0, %v1831
        %v1833 = vrcp.pop %v1778
        %v1834 = vmul.f32 1.0, %v1833
        %v1835 = vrcp.pop %v1779
        %v1836 = vmul.f32 1.0, %v1835
        %v1837 = vrcp.pop %v1780
        %v1838 = vmul.f32 1.0, %v1837
        %v1839 = vrcp.pop %v1781
        %v1840 = vmul.f32 1.0, %v1839
        %v1841 = vrcp.pop %v1782
        %v1842 = vmul.f32 1.0, %v1841
        %v1843 = vrcp.pop %v1783
        %v1844 = vmul.f32 1.0, %v1843
        %v1845 = vrcp.pop %v1784
        %v1846 = vmul.f32 1.0, %v1845
        %v1847 = vrcp.pop %v1785
        %v1848 = vmul.f32 1.0, %v1847
        %v1849 = vrcp.pop %v1786
        %v1850 = vmul.f32 1.0, %v1849
        %v1851 = vmul.f32 %v1788, 1.0614054
        %v1852 = vmul.f32 %v1790, 1.0614054
        %v1853 = vmul.f32 %v1792, 1.0614054
        %v1854 = vmul.f32 %v1794, 1.0614054
        %v1855 = vmul.f32 %v1796, 1.0614054
        %v1856 = vmul.f32 %v1798, 1.0614054
        %v1857 = vmul.f32 %v1800, 1.0614054
        %v1858 = vmul.f32 %v1802, 1.0614054
        %v1859 = vmul.f32 %v1804, 1.0614054
        %v1860 = vmul.f32 %v1806, 1.0614054
        %v1861 = vmul.f32 %v1808, 1.0614054
        %v1862 = vmul.f32 %v1810, 1.0614054
        %v1863 = vmul.f32 %v1812, 1.0614054
        %v1864 = vmul.f32 %v1814, 1.0614054
        %v1865 = vmul.f32 %v1816, 1.0614054
        %v1866 = vmul.f32 %v1818, 1.0614054
        %v1867 = vmul.f32 %v1820, 1.0614054
        %v1868 = vmul.f32 %v1822, 1.0614054
        %v1869 = vmul.f32 %v1824, 1.0614054
        %v1870 = vmul.f32 %v1826, 1.0614054
        %v1871 = vmul.f32 %v1828, 1.0614054
        %v1872 = vmul.f32 %v1830, 1.0614054
        %v1873 = vmul.f32 %v1832, 1.0614054
        %v1874 = vmul.f32 %v1834, 1.0614054
        %v1875 = vmul.f32 %v1836, 1.0614054
        %v1876 = vmul.f32 %v1838, 1.0614054
        %v1877 = vmul.f32 %v1840, 1.0614054
        %v1878 = vmul.f32 %v1842, 1.0614054
        %v1879 = vmul.f32 %v1844, 1.0614054
        %v1880 = vmul.f32 %v1846, 1.0614054
        %v1881 = vmul.f32 %v1848, 1.0614054
        %v1882 = vmul.f32 %v1850, 1.0614054
        %v1883 = vadd.f32 %v1851, -1.4531521
        %v1884 = vadd.f32 %v1852, -1.4531521
        %v1885 = vadd.f32 %v1853, -1.4531521
        %v1886 = vadd.f32 %v1854, -1.4531521
        %v1887 = vadd.f32 %v1855, -1.4531521
        %v1888 = vadd.f32 %v1856, -1.4531521
        %v1889 = vadd.f32 %v1857, -1.4531521
        %v1890 = vadd.f32 %v1858, -1.4531521
        %v1891 = vadd.f32 %v1859, -1.4531521
        %v1892 = vadd.f32 %v1860, -1.4531521
        %v1893 = vadd.f32 %v1861, -1.4531521
        %v1894 = vadd.f32 %v1862, -1.4531521
        %v1895 = vadd.f32 %v1863, -1.4531521
        %v1896 = vadd.f32 %v1864, -1.4531521
        %v1897 = vadd.f32 %v1865, -1.4531521
        %v1898 = vadd.f32 %v1866, -1.4531521
        %v1899 = vadd.f32 %v1867, -1.4531521
        %v1900 = vadd.f32 %v1868, -1.4531521
        %v1901 = vadd.f32 %v1869, -1.4531521
        %v1902 = vadd.f32 %v1870, -1.4531521
        %v1903 = vadd.f32 %v1871, -1.4531521
        %v1904 = vadd.f32 %v1872, -1.4531521
        %v1905 = vadd.f32 %v1873, -1.4531521
        %v1906 = vadd.f32 %v1874, -1.4531521
        %v1907 = vadd.f32 %v1875, -1.4531521
        %v1908 = vadd.f32 %v1876, -1.4531521
        %v1909 = vadd.f32 %v1877, -1.4531521
        %v1910 = vadd.f32 %v1878, -1.4531521
        %v1911 = vadd.f32 %v1879, -1.4531521
        %v1912 = vadd.f32 %v1880, -1.4531521
        %v1913 = vadd.f32 %v1881, -1.4531521
        %v1914 = vadd.f32 %v1882, -1.4531521
        %v1915 = vmul.f32 %v1788, %v1883
        %v1916 = vmul.f32 %v1790, %v1884
        %v1917 = vmul.f32 %v1792, %v1885
        %v1918 = vmul.f32 %v1794, %v1886
        %v1919 = vmul.f32 %v1796, %v1887
        %v1920 = vmul.f32 %v1798, %v1888
        %v1921 = vmul.f32 %v1800, %v1889
        %v1922 = vmul.f32 %v1802, %v1890
        %v1923 = vmul.f32 %v1804, %v1891
        %v1924 = vmul.f32 %v1806, %v1892
        %v1925 = vmul.f32 %v1808, %v1893
        %v1926 = vmul.f32 %v1810, %v1894
        %v1927 = vmul.f32 %v1812, %v1895
        %v1928 = vmul.f32 %v1814, %v1896
        %v1929 = vmul.f32 %v1816, %v1897
        %v1930 = vmul.f32 %v1818, %v1898
        %v1931 = vmul.f32 %v1820, %v1899
        %v1932 = vmul.f32 %v1822, %v1900
        %v1933 = vmul.f32 %v1824, %v1901
        %v1934 = vmul.f32 %v1826, %v1902
        %v1935 = vmul.f32 %v1828, %v1903
        %v1936 = vmul.f32 %v1830, %v1904
        %v1937 = vmul.f32 %v1832, %v1905
        %v1938 = vmul.f32 %v1834, %v1906
        %v1939 = vmul.f32 %v1836, %v1907
        %v1940 = vmul.f32 %v1838, %v1908
        %v1941 = vmul.f32 %v1840, %v1909
        %v1942 = vmul.f32 %v1842, %v1910
        %v1943 = vmul.f32 %v1844, %v1911
        %v1944 = vmul.f32 %v1846, %v1912
        %v1945 = vmul.f32 %v1848, %v1913
        %v1946 = vmul.f32 %v1850, %v1914
        %v1947 = vadd.f32 %v1915, 1.4214138
        %v1948 = vadd.f32 %v1916, 1.4214138
        %v1949 = vadd.f32 %v1917, 1.4214138
        %v1950 = vadd.f32 %v1918, 1.4214138
        %v1951 = vadd.f32 %v1919, 1.4214138
        %v1952 = vadd.f32 %v1920, 1.4214138
        %v1953 = vadd.f32 %v1921, 1.4214138
        %v1954 = vadd.f32 %v1922, 1.4214138
        %v1955 = vadd.f32 %v1923, 1.4214138
        %v1956 = vadd.f32 %v1924, 1.4214138
        %v1957 = vadd.f32 %v1925, 1.4214138
        %v1958 = vadd.f32 %v1926, 1.4214138
        %v1959 = vadd.f32 %v1927, 1.4214138
        %v1960 = vadd.f32 %v1928, 1.4214138
        %v1961 = vadd.f32 %v1929, 1.4214138
        %v1962 = vadd.f32 %v1930, 1.4214138
        %v1963 = vadd.f32 %v1931, 1.4214138
        %v1964 = vadd.f32 %v1932, 1.4214138
        %v1965 = vadd.f32 %v1933, 1.4214138
        %v1966 = vadd.f32 %v1934, 1.4214138
        %v1967 = vadd.f32 %v1935, 1.4214138
        %v1968 = vadd.f32 %v1936, 1.4214138
        %v1969 = vadd.f32 %v1937, 1.4214138
        %v1970 = vadd.f32 %v1938, 1.4214138
        %v1971 = vadd.f32 %v1939, 1.4214138
        %v1972 = vadd.f32 %v1940, 1.4214138
        %v1973 = vadd.f32 %v1941, 1.4214138
        %v1974 = vadd.f32 %v1942, 1.4214138
        %v1975 = vadd.f32 %v1943, 1.4214138
        %v1976 = vadd.f32 %v1944, 1.4214138
        %v1977 = vadd.f32 %v1945, 1.4214138
        %v1978 = vadd.f32 %v1946, 1.4214138
        %v1979 = vmul.f32 %v1788, %v1947
        %v1980 = vmul.f32 %v1790, %v1948
        %v1981 = vmul.f32 %v1792, %v1949
        %v1982 = vmul.f32 %v1794, %v1950
        %v1983 = vmul.f32 %v1796, %v1951
        %v1984 = vmul.f32 %v1798, %v1952
        %v1985 = vmul.f32 %v1800, %v1953
        %v1986 = vmul.f32 %v1802, %v1954
        %v1987 = vmul.f32 %v1804, %v1955
        %v1988 = vmul.f32 %v1806, %v1956
        %v1989 = vmul.f32 %v1808, %v1957
        %v1990 = vmul.f32 %v1810, %v1958
        %v1991 = vmul.f32 %v1812, %v1959
        %v1992 = vmul.f32 %v1814, %v1960
        %v1993 = vmul.f32 %v1816, %v1961
        %v1994 = vmul.f32 %v1818, %v1962
        %v1995 = vmul.f32 %v1820, %v1963
        %v1996 = vmul.f32 %v1822, %v1964
        %v1997 = vmul.f32 %v1824, %v1965
        %v1998 = vmul.f32 %v1826, %v1966
        %v1999 = vmul.f32 %v1828, %v1967
        %v2000 = vmul.f32 %v1830, %v1968
        %v2001 = vmul.f32 %v1832, %v1969
        %v2002 = vmul.f32 %v1834, %v1970
        %v2003 = vmul.f32 %v1836, %v1971
        %v2004 = vmul.f32 %v1838, %v1972
        %v2005 = vmul.f32 %v1840, %v1973
        %v2006 = vmul.f32 %v1842, %v1974
        %v2007 = vmul.f32 %v1844, %v1975
        %v2008 = vmul.f32 %v1846, %v1976
        %v2009 = vmul.f32 %v1848, %v1977
        %v2010 = vmul.f32 %v1850, %v1978
        %v2011 = vadd.f32 %v1979, -0.28449672
        %v2012 = vadd.f32 %v1980, -0.28449672
        %v2013 = vadd.f32 %v1981, -0.28449672
        %v2014 = vadd.f32 %v1982, -0.28449672
        %v2015 = vadd.f32 %v1983, -0.28449672
        %v2016 = vadd.f32 %v1984, -0.28449672
        %v2017 = vadd.f32 %v1985, -0.28449672
        %v2018 = vadd.f32 %v1986, -0.28449672
        %v2019 = vadd.f32 %v1987, -0.28449672
        %v2020 = vadd.f32 %v1988, -0.28449672
        %v2021 = vadd.f32 %v1989, -0.28449672
        %v2022 = vadd.f32 %v1990, -0.28449672
        %v2023 = vadd.f32 %v1991, -0.28449672
        %v2024 = vadd.f32 %v1992, -0.28449672
        %v2025 = vadd.f32 %v1993, -0.28449672
        %v2026 = vadd.f32 %v1994, -0.28449672
        %v2027 = vadd.f32 %v1995, -0.28449672
        %v2028 = vadd.f32 %v1996, -0.28449672
        %v2029 = vadd.f32 %v1997, -0.28449672
        %v2030 = vadd.f32 %v1998, -0.28449672
        %v2031 = vadd.f32 %v1999, -0.28449672
        %v2032 = vadd.f32 %v2000, -0.28449672
        %v2033 = vadd.f32 %v2001, -0.28449672
        %v2034 = vadd.f32 %v2002, -0.28449672
        %v2035 = vadd.f32 %v2003, -0.28449672
        %v2036 = vadd.f32 %v2004, -0.28449672
        %v2037 = vadd.f32 %v2005, -0.28449672
        %v2038 = vadd.f32 %v2006, -0.28449672
        %v2039 = vadd.f32 %v2007, -0.28449672
        %v2040 = vadd.f32 %v2008, -0.28449672
        %v2041 = vadd.f32 %v2009, -0.28449672
        %v2042 = vadd.f32 %v2010, -0.28449672
        %v2043 = vmul.f32 %v1788, %v2011
        %v2044 = vmul.f32 %v1790, %v2012
        %v2045 = vmul.f32 %v1792, %v2013
        %v2046 = vmul.f32 %v1794, %v2014
        %v2047 = vmul.f32 %v1796, %v2015
        %v2048 = vmul.f32 %v1798, %v2016
        %v2049 = vmul.f32 %v1800, %v2017
        %v2050 = vmul.f32 %v1802, %v2018
        %v2051 = vmul.f32 %v1804, %v2019
        %v2052 = vmul.f32 %v1806, %v2020
        %v2053 = vmul.f32 %v1808, %v2021
        %v2054 = vmul.f32 %v1810, %v2022
        %v2055 = vmul.f32 %v1812, %v2023
        %v2056 = vmul.f32 %v1814, %v2024
        %v2057 = vmul.f32 %v1816, %v2025
        %v2058 = vmul.f32 %v1818, %v2026
        %v2059 = vmul.f32 %v1820, %v2027
        %v2060 = vmul.f32 %v1822, %v2028
        %v2061 = vmul.f32 %v1824, %v2029
        %v2062 = vmul.f32 %v1826, %v2030
        %v2063 = vmul.f32 %v1828, %v2031
        %v2064 = vmul.f32 %v1830, %v2032
        %v2065 = vmul.f32 %v1832, %v2033
        %v2066 = vmul.f32 %v1834, %v2034
        %v2067 = vmul.f32 %v1836, %v2035
        %v2068 = vmul.f32 %v1838, %v2036
        %v2069 = vmul.f32 %v1840, %v2037
        %v2070 = vmul.f32 %v1842, %v2038
        %v2071 = vmul.f32 %v1844, %v2039
        %v2072 = vmul.f32 %v1846, %v2040
        %v2073 = vmul.f32 %v1848, %v2041
        %v2074 = vmul.f32 %v1850, %v2042
        %v2075 = vadd.f32 %v2043, 0.2548296
        %v2076 = vadd.f32 %v2044, 0.2548296
        %v2077 = vadd.f32 %v2045, 0.2548296
        %v2078 = vadd.f32 %v2046, 0.2548296
        %v2079 = vadd.f32 %v2047, 0.2548296
        %v2080 = vadd.f32 %v2048, 0.2548296
        %v2081 = vadd.f32 %v2049, 0.2548296
        %v2082 = vadd.f32 %v2050, 0.2548296
        %v2083 = vadd.f32 %v2051, 0.2548296
        %v2084 = vadd.f32 %v2052, 0.2548296
        %v2085 = vadd.f32 %v2053, 0.2548296
        %v2086 = vadd.f32 %v2054, 0.2548296
        %v2087 = vadd.f32 %v2055, 0.2548296
        %v2088 = vadd.f32 %v2056, 0.2548296
        %v2089 = vadd.f32 %v2057, 0.2548296
        %v2090 = vadd.f32 %v2058, 0.2548296
        %v2091 = vadd.f32 %v2059, 0.2548296
        %v2092 = vadd.f32 %v2060, 0.2548296
        %v2093 = vadd.f32 %v2061, 0.2548296
        %v2094 = vadd.f32 %v2062, 0.2548296
        %v2095 = vadd.f32 %v2063, 0.2548296
        %v2096 = vadd.f32 %v2064, 0.2548296
        %v2097 = vadd.f32 %v2065, 0.2548296
        %v2098 = vadd.f32 %v2066, 0.2548296
        %v2099 = vadd.f32 %v2067, 0.2548296
        %v2100 = vadd.f32 %v2068, 0.2548296
        %v2101 = vadd.f32 %v2069, 0.2548296
        %v2102 = vadd.f32 %v2070, 0.2548296
        %v2103 = vadd.f32 %v2071, 0.2548296
        %v2104 = vadd.f32 %v2072, 0.2548296
        %v2105 = vadd.f32 %v2073, 0.2548296
        %v2106 = vadd.f32 %v2074, 0.2548296
        %v2107 = vmul.f32 %v1788, %v2075
        %v2108 = vmul.f32 %v1790, %v2076
        %v2109 = vmul.f32 %v1792, %v2077
        %v2110 = vmul.f32 %v1794, %v2078
        %v2111 = vmul.f32 %v1796, %v2079
        %v2112 = vmul.f32 %v1798, %v2080
        %v2113 = vmul.f32 %v1800, %v2081
        %v2114 = vmul.f32 %v1802, %v2082
        %v2115 = vmul.f32 %v1804, %v2083
        %v2116 = vmul.f32 %v1806, %v2084
        %v2117 = vmul.f32 %v1808, %v2085
        %v2118 = vmul.f32 %v1810, %v2086
        %v2119 = vmul.f32 %v1812, %v2087
        %v2120 = vmul.f32 %v1814, %v2088
        %v2121 = vmul.f32 %v1816, %v2089
        %v2122 = vmul.f32 %v1818, %v2090
        %v2123 = vmul.f32 %v1820, %v2091
        %v2124 = vmul.f32 %v1822, %v2092
        %v2125 = vmul.f32 %v1824, %v2093
        %v2126 = vmul.f32 %v1826, %v2094
        %v2127 = vmul.f32 %v1828, %v2095
        %v2128 = vmul.f32 %v1830, %v2096
        %v2129 = vmul.f32 %v1832, %v2097
        %v2130 = vmul.f32 %v1834, %v2098
        %v2131 = vmul.f32 %v1836, %v2099
        %v2132 = vmul.f32 %v1838, %v2100
        %v2133 = vmul.f32 %v1840, %v2101
        %v2134 = vmul.f32 %v1842, %v2102
        %v2135 = vmul.f32 %v1844, %v2103
        %v2136 = vmul.f32 %v1846, %v2104
        %v2137 = vmul.f32 %v1848, %v2105
        %v2138 = vmul.f32 %v1850, %v2106
        %v2139 = vsub.f32 0.0, %v1691
        %v2140 = vsub.f32 0.0, %v1692
        %v2141 = vsub.f32 0.0, %v1693
        %v2142 = vsub.f32 0.0, %v1694
        %v2143 = vsub.f32 0.0, %v1695
        %v2144 = vsub.f32 0.0, %v1696
        %v2145 = vsub.f32 0.0, %v1697
        %v2146 = vsub.f32 0.0, %v1698
        %v2147 = vsub.f32 0.0, %v1699
        %v2148 = vsub.f32 0.0, %v1700
        %v2149 = vsub.f32 0.0, %v1701
        %v2150 = vsub.f32 0.0, %v1702
        %v2151 = vsub.f32 0.0, %v1703
        %v2152 = vsub.f32 0.0, %v1704
        %v2153 = vsub.f32 0.0, %v1705
        %v2154 = vsub.f32 0.0, %v1706
        %v2155 = vsub.f32 0.0, %v1707
        %v2156 = vsub.f32 0.0, %v1708
        %v2157 = vsub.f32 0.0, %v1709
        %v2158 = vsub.f32 0.0, %v1710
        %v2159 = vsub.f32 0.0, %v1711
        %v2160 = vsub.f32 0.0, %v1712
        %v2161 = vsub.f32 0.0, %v1713
        %v2162 = vsub.f32 0.0, %v1714
        %v2163 = vsub.f32 0.0, %v1715
        %v2164 = vsub.f32 0.0, %v1716
        %v2165 = vsub.f32 0.0, %v1717
        %v2166 = vsub.f32 0.0, %v1718
        %v2167 = vsub.f32 0.0, %v1719
        %v2168 = vsub.f32 0.0, %v1720
        %v2169 = vsub.f32 0.0, %v1721
        %v2170 = vsub.f32 0.0, %v1722
        %v2171 = vmul.f32 %v2139, %v1691
        %v2172 = vmul.f32 %v2140, %v1692
        %v2173 = vmul.f32 %v2141, %v1693
        %v2174 = vmul.f32 %v2142, %v1694
        %v2175 = vmul.f32 %v2143, %v1695
        %v2176 = vmul.f32 %v2144, %v1696
        %v2177 = vmul.f32 %v2145, %v1697
        %v2178 = vmul.f32 %v2146, %v1698
        %v2179 = vmul.f32 %v2147, %v1699
        %v2180 = vmul.f32 %v2148, %v1700
        %v2181 = vmul.f32 %v2149, %v1701
        %v2182 = vmul.f32 %v2150, %v1702
        %v2183 = vmul.f32 %v2151, %v1703
        %v2184 = vmul.f32 %v2152, %v1704
        %v2185 = vmul.f32 %v2153, %v1705
        %v2186 = vmul.f32 %v2154, %v1706
        %v2187 = vmul.f32 %v2155, %v1707
        %v2188 = vmul.f32 %v2156, %v1708
        %v2189 = vmul.f32 %v2157, %v1709
        %v2190 = vmul.f32 %v2158, %v1710
        %v2191 = vmul.f32 %v2159, %v1711
        %v2192 = vmul.f32 %v2160, %v1712
        %v2193 = vmul.f32 %v2161, %v1713
        %v2194 = vmul.f32 %v2162, %v1714
        %v2195 = vmul.f32 %v2163, %v1715
        %v2196 = vmul.f32 %v2164, %v1716
        %v2197 = vmul.f32 %v2165, %v1717
        %v2198 = vmul.f32 %v2166, %v1718
        %v2199 = vmul.f32 %v2167, %v1719
        %v2200 = vmul.f32 %v2168, %v1720
        %v2201 = vmul.f32 %v2169, %v1721
        %v2202 = vmul.f32 %v2170, %v1722
        %v2203 = vmul.f32 %v2171, 1.442695
        %v2204 = vpow.pop %v2203
        %v2205 = vmul.f32 %v2172, 1.442695
        %v2206 = vpow.pop %v2205
        %v2207 = vmul.f32 %v2173, 1.442695
        %v2208 = vpow.pop %v2207
        %v2209 = vmul.f32 %v2174, 1.442695
        %v2210 = vpow.pop %v2209
        %v2211 = vmul.f32 %v2175, 1.442695
        %v2212 = vpow.pop %v2211
        %v2213 = vmul.f32 %v2176, 1.442695
        %v2214 = vpow.pop %v2213
        %v2215 = vmul.f32 %v2177, 1.442695
        %v2216 = vpow.pop %v2215
        %v2217 = vmul.f32 %v2178, 1.442695
        %v2218 = vpow.pop %v2217
        %v2219 = vmul.f32 %v2179, 1.442695
        %v2220 = vpow.pop %v2219
        %v2221 = vmul.f32 %v2180, 1.442695
        %v2222 = vpow.pop %v2221
        %v2223 = vmul.f32 %v2181, 1.442695
        %v2224 = vpow.pop %v2223
        %v2225 = vmul.f32 %v2182, 1.442695
        %v2226 = vpow.pop %v2225
        %v2227 = vmul.f32 %v2183, 1.442695
        %v2228 = vpow.pop %v2227
        %v2229 = vmul.f32 %v2184, 1.442695
        %v2230 = vpow.pop %v2229
        %v2231 = vmul.f32 %v2185, 1.442695
        %v2232 = vpow.pop %v2231
        %v2233 = vmul.f32 %v2186, 1.442695
        %v2234 = vpow.pop %v2233
        %v2235 = vmul.f32 %v2187, 1.442695
        %v2236 = vpow.pop %v2235
        %v2237 = vmul.f32 %v2188, 1.442695
        %v2238 = vpow.pop %v2237
        %v2239 = vmul.f32 %v2189, 1.442695
        %v2240 = vpow.pop %v2239
        %v2241 = vmul.f32 %v2190, 1.442695
        %v2242 = vpow.pop %v2241
        %v2243 = vmul.f32 %v2191, 1.442695
        %v2244 = vpow.pop %v2243
        %v2245 = vmul.f32 %v2192, 1.442695
        %v2246 = vpow.pop %v2245
        %v2247 = vmul.f32 %v2193, 1.442695
        %v2248 = vpow.pop %v2247
        %v2249 = vmul.f32 %v2194, 1.442695
        %v2250 = vpow.pop %v2249
        %v2251 = vmul.f32 %v2195, 1.442695
        %v2252 = vpow.pop %v2251
        %v2253 = vmul.f32 %v2196, 1.442695
        %v2254 = vpow.pop %v2253
        %v2255 = vmul.f32 %v2197, 1.442695
        %v2256 = vpow.pop %v2255
        %v2257 = vmul.f32 %v2198, 1.442695
        %v2258 = vpow.pop %v2257
        %v2259 = vmul.f32 %v2199, 1.442695
        %v2260 = vpow.pop %v2259
        %v2261 = vmul.f32 %v2200, 1.442695
        %v2262 = vpow.pop %v2261
        %v2263 = vmul.f32 %v2201, 1.442695
        %v2264 = vpow.pop %v2263
        %v2265 = vmul.f32 %v2202, 1.442695
        %v2266 = vpow.pop %v2265
        %v2267 = vmul.f32 %v2107, %v2204
        %v2268 = vmul.f32 %v2108, %v2206
        %v2269 = vmul.f32 %v2109, %v2208
        %v2270 = vmul.f32 %v2110, %v2210
        %v2271 = vmul.f32 %v2111, %v2212
        %v2272 = vmul.f32 %v2112, %v2214
        %v2273 = vmul.f32 %v2113, %v2216
        %v2274 = vmul.f32 %v2114, %v2218
        %v2275 = vmul.f32 %v2115, %v2220
        %v2276 = vmul.f32 %v2116, %v2222
        %v2277 = vmul.f32 %v2117, %v2224
        %v2278 = vmul.f32 %v2118, %v2226
        %v2279 = vmul.f32 %v2119, %v2228
        %v2280 = vmul.f32 %v2120, %v2230
        %v2281 = vmul.f32 %v2121, %v2232
        %v2282 = vmul.f32 %v2122, %v2234
        %v2283 = vmul.f32 %v2123, %v2236
        %v2284 = vmul.f32 %v2124, %v2238
        %v2285 = vmul.f32 %v2125, %v2240
        %v2286 = vmul.f32 %v2126, %v2242
        %v2287 = vmul.f32 %v2127, %v2244
        %v2288 = vmul.f32 %v2128, %v2246
        %v2289 = vmul.f32 %v2129, %v2248
        %v2290 = vmul.f32 %v2130, %v2250
        %v2291 = vmul.f32 %v2131, %v2252
        %v2292 = vmul.f32 %v2132, %v2254
        %v2293 = vmul.f32 %v2133, %v2256
        %v2294 = vmul.f32 %v2134, %v2258
        %v2295 = vmul.f32 %v2135, %v2260
        %v2296 = vmul.f32 %v2136, %v2262
        %v2297 = vmul.f32 %v2137, %v2264
        %v2298 = vmul.f32 %v2138, %v2266
        %v2299 = vsub.f32 1.0, %v2267
        %v2300 = vsub.f32 1.0, %v2268
        %v2301 = vsub.f32 1.0, %v2269
        %v2302 = vsub.f32 1.0, %v2270
        %v2303 = vsub.f32 1.0, %v2271
        %v2304 = vsub.f32 1.0, %v2272
        %v2305 = vsub.f32 1.0, %v2273
        %v2306 = vsub.f32 1.0, %v2274
        %v2307 = vsub.f32 1.0, %v2275
        %v2308 = vsub.f32 1.0, %v2276
        %v2309 = vsub.f32 1.0, %v2277
        %v2310 = vsub.f32 1.0, %v2278
        %v2311 = vsub.f32 1.0, %v2279
        %v2312 = vsub.f32 1.0, %v2280
        %v2313 = vsub.f32 1.0, %v2281
        %v2314 = vsub.f32 1.0, %v2282
        %v2315 = vsub.f32 1.0, %v2283
        %v2316 = vsub.f32 1.0, %v2284
        %v2317 = vsub.f32 1.0, %v2285
        %v2318 = vsub.f32 1.0, %v2286
        %v2319 = vsub.f32 1.0, %v2287
        %v2320 = vsub.f32 1.0, %v2288
        %v2321 = vsub.f32 1.0, %v2289
        %v2322 = vsub.f32 1.0, %v2290
        %v2323 = vsub.f32 1.0, %v2291
        %v2324 = vsub.f32 1.0, %v2292
        %v2325 = vsub.f32 1.0, %v2293
        %v2326 = vsub.f32 1.0, %v2294
        %v2327 = vsub.f32 1.0, %v2295
        %v2328 = vsub.f32 1.0, %v2296
        %v2329 = vsub.f32 1.0, %v2297
        %v2330 = vsub.f32 1.0, %v2298
        %vm2331 = vcmp.ge.f32.partialorder %v1659, 0.0
        %vm2332 = vcmp.ge.f32.partialorder %v1660, 0.0
        %vm2333 = vcmp.ge.f32.partialorder %v1661, 0.0
        %vm2334 = vcmp.ge.f32.partialorder %v1662, 0.0
        %vm2335 = vcmp.ge.f32.partialorder %v1663, 0.0
        %vm2336 = vcmp.ge.f32.partialorder %v1664, 0.0
        %vm2337 = vcmp.ge.f32.partialorder %v1665, 0.0
        %vm2338 = vcmp.ge.f32.partialorder %v1666, 0.0
        %vm2339 = vcmp.ge.f32.partialorder %v1667, 0.0
        %vm2340 = vcmp.ge.f32.partialorder %v1668, 0.0
        %vm2341 = vcmp.ge.f32.partialorder %v1669, 0.0
        %vm2342 = vcmp.ge.f32.partialorder %v1670, 0.0
        %vm2343 = vcmp.ge.f32.partialorder %v1671, 0.0
        %vm2344 = vcmp.ge.f32.partialorder %v1672, 0.0
        %vm2345 = vcmp.ge.f32.partialorder %v1673, 0.0
        %vm2346 = vcmp.ge.f32.partialorder %v1674, 0.0
        %vm2347 = vcmp.ge.f32.partialorder %v1675, 0.0
        %vm2348 = vcmp.ge.f32.partialorder %v1676, 0.0
        %vm2349 = vcmp.ge.f32.partialorder %v1677, 0.0
        %vm2350 = vcmp.ge.f32.partialorder %v1678, 0.0
        %vm2351 = vcmp.ge.f32.partialorder %v1679, 0.0
        %vm2352 = vcmp.ge.f32.partialorder %v1680, 0.0
        %vm2353 = vcmp.ge.f32.partialorder %v1681, 0.0
        %vm2354 = vcmp.ge.f32.partialorder %v1682, 0.0
        %vm2355 = vcmp.ge.f32.partialorder %v1683, 0.0
        %vm2356 = vcmp.ge.f32.partialorder %v1684, 0.0
        %vm2357 = vcmp.ge.f32.partialorder %v1685, 0.0
        %vm2358 = vcmp.ge.f32.partialorder %v1686, 0.0
        %vm2359 = vcmp.ge.f32.partialorder %v1687, 0.0
        %vm2360 = vcmp.ge.f32.partialorder %v1688, 0.0
        %vm2361 = vcmp.ge.f32.partialorder %v1689, 0.0
        %vm2362 = vcmp.ge.f32.partialorder %v1690, 0.0
        %v2363 = vsub.f32 0.0, %v2299
        %v2364 = vsub.f32 0.0, %v2300
        %v2365 = vsub.f32 0.0, %v2301
        %v2366 = vsub.f32 0.0, %v2302
        %v2367 = vsub.f32 0.0, %v2303
        %v2368 = vsub.f32 0.0, %v2304
        %v2369 = vsub.f32 0.0, %v2305
        %v2370 = vsub.f32 0.0, %v2306
        %v2371 = vsub.f32 0.0, %v2307
        %v2372 = vsub.f32 0.0, %v2308
        %v2373 = vsub.f32 0.0, %v2309
        %v2374 = vsub.f32 0.0, %v2310
        %v2375 = vsub.f32 0.0, %v2311
        %v2376 = vsub.f32 0.0, %v2312
        %v2377 = vsub.f32 0.0, %v2313
        %v2378 = vsub.f32 0.0, %v2314
        %v2379 = vsub.f32 0.0, %v2315
        %v2380 = vsub.f32 0.0, %v2316
        %v2381 = vsub.f32 0.0, %v2317
        %v2382 = vsub.f32 0.0, %v2318
        %v2383 = vsub.f32 0.0, %v2319
        %v2384 = vsub.f32 0.0, %v2320
        %v2385 = vsub.f32 0.0, %v2321
        %v2386 = vsub.f32 0.0, %v2322
        %v2387 = vsub.f32 0.0, %v2323
        %v2388 = vsub.f32 0.0, %v2324
        %v2389 = vsub.f32 0.0, %v2325
        %v2390 = vsub.f32 0.0, %v2326
        %v2391 = vsub.f32 0.0, %v2327
        %v2392 = vsub.f32 0.0, %v2328
        %v2393 = vsub.f32 0.0, %v2329
        %v2394 = vsub.f32 0.0, %v2330
        %v2395 = vsel %vm2331, %v2299, %v2363
        %v2396 = vsel %vm2332, %v2300, %v2364
        %v2397 = vsel %vm2333, %v2301, %v2365
        %v2398 = vsel %vm2334, %v2302, %v2366
        %v2399 = vsel %vm2335, %v2303, %v2367
        %v2400 = vsel %vm2336, %v2304, %v2368
        %v2401 = vsel %vm2337, %v2305, %v2369
        %v2402 = vsel %vm2338, %v2306, %v2370
        %v2403 = vsel %vm2339, %v2307, %v2371
        %v2404 = vsel %vm2340, %v2308, %v2372
        %v2405 = vsel %vm2341, %v2309, %v2373
        %v2406 = vsel %vm2342, %v2310, %v2374
        %v2407 = vsel %vm2343, %v2311, %v2375
        %v2408 = vsel %vm2344, %v2312, %v2376
        %v2409 = vsel %vm2345, %v2313, %v2377
        %v2410 = vsel %vm2346, %v2314, %v2378
        %v2411 = vsel %vm2347, %v2315, %v2379
        %v2412 = vsel %vm2348, %v2316, %v2380
        %v2413 = vsel %vm2349, %v2317, %v2381
        %v2414 = vsel %vm2350, %v2318, %v2382
        %v2415 = vsel %vm2351, %v2319, %v2383
        %v2416 = vsel %vm2352, %v2320, %v2384
        %v2417 = vsel %vm2353, %v2321, %v2385
        %v2418 = vsel %vm2354, %v2322, %v2386
        %v2419 = vsel %vm2355, %v2323, %v2387
        %v2420 = vsel %vm2356, %v2324, %v2388
        %v2421 = vsel %vm2357, %v2325, %v2389
        %v2422 = vsel %vm2358, %v2326, %v2390
        %v2423 = vsel %vm2359, %v2327, %v2391
        %v2424 = vsel %vm2360, %v2328, %v2392
        %v2425 = vsel %vm2361, %v2329, %v2393
        %v2426 = vsel %vm2362, %v2330, %v2394
        %v2427 = vmul.f32 %v1627, 0.5
        %v2428 = vmul.f32 %v1628, 0.5
        %v2429 = vmul.f32 %v1629, 0.5
        %v2430 = vmul.f32 %v1630, 0.5
        %v2431 = vmul.f32 %v1631, 0.5
        %v2432 = vmul.f32 %v1632, 0.5
        %v2433 = vmul.f32 %v1633, 0.5
        %v2434 = vmul.f32 %v1634, 0.5
        %v2435 = vmul.f32 %v1635, 0.5
        %v2436 = vmul.f32 %v1636, 0.5
        %v2437 = vmul.f32 %v1637, 0.5
        %v2438 = vmul.f32 %v1638, 0.5
        %v2439 = vmul.f32 %v1639, 0.5
        %v2440 = vmul.f32 %v1640, 0.5
        %v2441 = vmul.f32 %v1641, 0.5
        %v2442 = vmul.f32 %v1642, 0.5
        %v2443 = vmul.f32 %v1643, 0.5
        %v2444 = vmul.f32 %v1644, 0.5
        %v2445 = vmul.f32 %v1645, 0.5
        %v2446 = vmul.f32 %v1646, 0.5
        %v2447 = vmul.f32 %v1647, 0.5
        %v2448 = vmul.f32 %v1648, 0.5
        %v2449 = vmul.f32 %v1649, 0.5
        %v2450 = vmul.f32 %v1650, 0.5
        %v2451 = vmul.f32 %v1651, 0.5
        %v2452 = vmul.f32 %v1652, 0.5
        %v2453 = vmul.f32 %v1653, 0.5
        %v2454 = vmul.f32 %v1654, 0.5
        %v2455 = vmul.f32 %v1655, 0.5
        %v2456 = vmul.f32 %v1656, 0.5
        %v2457 = vmul.f32 %v1657, 0.5
        %v2458 = vmul.f32 %v1658, 0.5
        %v2459 = vadd.f32 %v2395, 1.0
        %v2460 = vadd.f32 %v2396, 1.0
        %v2461 = vadd.f32 %v2397, 1.0
        %v2462 = vadd.f32 %v2398, 1.0
        %v2463 = vadd.f32 %v2399, 1.0
        %v2464 = vadd.f32 %v2400, 1.0
        %v2465 = vadd.f32 %v2401, 1.0
        %v2466 = vadd.f32 %v2402, 1.0
        %v2467 = vadd.f32 %v2403, 1.0
        %v2468 = vadd.f32 %v2404, 1.0
        %v2469 = vadd.f32 %v2405, 1.0
        %v2470 = vadd.f32 %v2406, 1.0
        %v2471 = vadd.f32 %v2407, 1.0
        %v2472 = vadd.f32 %v2408, 1.0
        %v2473 = vadd.f32 %v2409, 1.0
        %v2474 = vadd.f32 %v2410, 1.0
        %v2475 = vadd.f32 %v2411, 1.0
        %v2476 = vadd.f32 %v2412, 1.0
        %v2477 = vadd.f32 %v2413, 1.0
        %v2478 = vadd.f32 %v2414, 1.0
        %v2479 = vadd.f32 %v2415, 1.0
        %v2480 = vadd.f32 %v2416, 1.0
        %v2481 = vadd.f32 %v2417, 1.0
        %v2482 = vadd.f32 %v2418, 1.0
        %v2483 = vadd.f32 %v2419, 1.0
        %v2484 = vadd.f32 %v2420, 1.0
        %v2485 = vadd.f32 %v2421, 1.0
        %v2486 = vadd.f32 %v2422, 1.0
        %v2487 = vadd.f32 %v2423, 1.0
        %v2488 = vadd.f32 %v2424, 1.0
        %v2489 = vadd.f32 %v2425, 1.0
        %v2490 = vadd.f32 %v2426, 1.0
        %v2491 = vmul.f32 %v2427, %v2459
        %v2492 = vmul.f32 %v2428, %v2460
        %v2493 = vmul.f32 %v2429, %v2461
        %v2494 = vmul.f32 %v2430, %v2462
        %v2495 = vmul.f32 %v2431, %v2463
        %v2496 = vmul.f32 %v2432, %v2464
        %v2497 = vmul.f32 %v2433, %v2465
        %v2498 = vmul.f32 %v2434, %v2466
        %v2499 = vmul.f32 %v2435, %v2467
        %v2500 = vmul.f32 %v2436, %v2468
        %v2501 = vmul.f32 %v2437, %v2469
        %v2502 = vmul.f32 %v2438, %v2470
        %v2503 = vmul.f32 %v2439, %v2471
        %v2504 = vmul.f32 %v2440, %v2472
        %v2505 = vmul.f32 %v2441, %v2473
        %v2506 = vmul.f32 %v2442, %v2474
        %v2507 = vmul.f32 %v2443, %v2475
        %v2508 = vmul.f32 %v2444, %v2476
        %v2509 = vmul.f32 %v2445, %v2477
        %v2510 = vmul.f32 %v2446, %v2478
        %v2511 = vmul.f32 %v2447, %v2479
        %v2512 = vmul.f32 %v2448, %v2480
        %v2513 = vmul.f32 %v2449, %v2481
        %v2514 = vmul.f32 %v2450, %v2482
        %v2515 = vmul.f32 %v2451, %v2483
        %v2516 = vmul.f32 %v2452, %v2484
        %v2517 = vmul.f32 %v2453, %v2485
        %v2518 = vmul.f32 %v2454, %v2486
        %v2519 = vmul.f32 %v2455, %v2487
        %v2520 = vmul.f32 %v2456, %v2488
        %v2521 = vmul.f32 %v2457, %v2489
        %v2522 = vmul.f32 %v2458, %v2490
        %2555 = vrot.lane.b32.xlu0 %v1627, 64
        %v2556 = vpop.permute.xlu0 %2555
        %2557 = vrot.lane.b32.xlu0 %v1628, 64
        %v2558 = vpop.permute.xlu0 %2557
        %2559 = vrot.lane.b32.xlu0 %v1629, 64
        %v2560 = vpop.permute.xlu0 %2559
        %2561 = vrot.lane.b32.xlu0 %v1630, 64
        %v2562 = vpop.permute.xlu0 %2561
        %2563 = vrot.lane.b32.xlu0 %v1631, 64
        %v2564 = vpop.permute.xlu0 %2563
        %2565 = vrot.lane.b32.xlu0 %v1632, 64
        %v2566 = vpop.permute.xlu0 %2565
        %2567 = vrot.lane.b32.xlu0 %v1633, 64
        %v2568 = vpop.permute.xlu0 %2567
        %2569 = vrot.lane.b32.xlu0 %v1634, 64
        %v2570 = vpop.permute.xlu0 %2569
        %2571 = vrot.lane.b32.xlu0 %v1635, 64
        %v2572 = vpop.permute.xlu0 %2571
        %2573 = vrot.lane.b32.xlu0 %v1636, 64
        %v2574 = vpop.permute.xlu0 %2573
        %2575 = vrot.lane.b32.xlu0 %v1637, 64
        %v2576 = vpop.permute.xlu0 %2575
        %2577 = vrot.lane.b32.xlu0 %v1638, 64
        %v2578 = vpop.permute.xlu0 %2577
        %2579 = vrot.lane.b32.xlu0 %v1639, 64
        %v2580 = vpop.permute.xlu0 %2579
        %2581 = vrot.lane.b32.xlu0 %v1640, 64
        %v2582 = vpop.permute.xlu0 %2581
        %2583 = vrot.lane.b32.xlu0 %v1641, 64
        %v2584 = vpop.permute.xlu0 %2583
        %2585 = vrot.lane.b32.xlu0 %v1642, 64
        %v2586 = vpop.permute.xlu0 %2585
        %2587 = vrot.lane.b32.xlu0 %v1643, 64
        %v2588 = vpop.permute.xlu0 %2587
        %2589 = vrot.lane.b32.xlu0 %v1644, 64
        %v2590 = vpop.permute.xlu0 %2589
        %2591 = vrot.lane.b32.xlu0 %v1645, 64
        %v2592 = vpop.permute.xlu0 %2591
        %2593 = vrot.lane.b32.xlu0 %v1646, 64
        %v2594 = vpop.permute.xlu0 %2593
        %2595 = vrot.lane.b32.xlu0 %v1647, 64
        %v2596 = vpop.permute.xlu0 %2595
        %2597 = vrot.lane.b32.xlu0 %v1648, 64
        %v2598 = vpop.permute.xlu0 %2597
        %2599 = vrot.lane.b32.xlu0 %v1649, 64
        %v2600 = vpop.permute.xlu0 %2599
        %2601 = vrot.lane.b32.xlu0 %v1650, 64
        %v2602 = vpop.permute.xlu0 %2601
        %2603 = vrot.lane.b32.xlu0 %v1651, 64
        %v2604 = vpop.permute.xlu0 %2603
        %2605 = vrot.lane.b32.xlu0 %v1652, 64
        %v2606 = vpop.permute.xlu0 %2605
        %2607 = vrot.lane.b32.xlu0 %v1653, 64
        %v2608 = vpop.permute.xlu0 %2607
        %2609 = vrot.lane.b32.xlu0 %v1654, 64
        %v2610 = vpop.permute.xlu0 %2609
        %2611 = vrot.lane.b32.xlu0 %v1655, 64
        %v2612 = vpop.permute.xlu0 %2611
        %2613 = vrot.lane.b32.xlu0 %v1656, 64
        %v2614 = vpop.permute.xlu0 %2613
        %2615 = vrot.lane.b32.xlu0 %v1657, 64
        %v2616 = vpop.permute.xlu0 %2615
        %2617 = vrot.lane.b32.xlu0 %v1658, 64
        %v2618 = vpop.permute.xlu0 %2617
        %v2651 = vmul.f32 %v2491, %v2556
        %v2652 = vmul.f32 %v2492, %v2558
        %v2653 = vmul.f32 %v2493, %v2560
        %v2654 = vmul.f32 %v2494, %v2562
        %v2655 = vmul.f32 %v2495, %v2564
        %v2656 = vmul.f32 %v2496, %v2566
        %v2657 = vmul.f32 %v2497, %v2568
        %v2658 = vmul.f32 %v2498, %v2570
        %v2659 = vmul.f32 %v2499, %v2572
        %v2660 = vmul.f32 %v2500, %v2574
        %v2661 = vmul.f32 %v2501, %v2576
        %v2662 = vmul.f32 %v2502, %v2578
        %v2663 = vmul.f32 %v2503, %v2580
        %v2664 = vmul.f32 %v2504, %v2582
        %v2665 = vmul.f32 %v2505, %v2584
        %v2666 = vmul.f32 %v2506, %v2586
        %v2667 = vmul.f32 %v2507, %v2588
        %v2668 = vmul.f32 %v2508, %v2590
        %v2669 = vmul.f32 %v2509, %v2592
        %v2670 = vmul.f32 %v2510, %v2594
        %v2671 = vmul.f32 %v2511, %v2596
        %v2672 = vmul.f32 %v2512, %v2598
        %v2673 = vmul.f32 %v2513, %v2600
        %v2674 = vmul.f32 %v2514, %v2602
        %v2675 = vmul.f32 %v2515, %v2604
        %v2676 = vmul.f32 %v2516, %v2606
        %v2677 = vmul.f32 %v2517, %v2608
        %v2678 = vmul.f32 %v2518, %v2610
        %v2679 = vmul.f32 %v2519, %v2612
        %v2680 = vmul.f32 %v2520, %v2614
        %v2681 = vmul.f32 %v2521, %v2616
        %v2682 = vmul.f32 %v2522, %v2618
        %v2683 = vld [vmem:[%s5] sm:$0xff]
        %v2684 = vld [vmem:[%s5 + $0x8] sm:$0xff]
        %v2685 = vld [vmem:[%s5 + $0x10] sm:$0xff]
        %v2686 = vld [vmem:[%s5 + $0x18] sm:$0xff]
        %v2687 = vld [vmem:[%s5 + $0x20] sm:$0xff]
        %v2688 = vld [vmem:[%s5 + $0x28] sm:$0xff]
        %v2689 = vld [vmem:[%s5 + $0x30] sm:$0xff]
        %v2690 = vld [vmem:[%s5 + $0x38] sm:$0xff]
        %v2691 = vld [vmem:[%s6] sm:$0x1]
        %v2693 = vlaneseq
        %v2694 = vshrl.u32 %v2693, 7
        %v2695 = vsub.s32 0, %v2694
        %v2696 = vrot.slane %v2691, %v2695
        %vm2698 = vcmask 523264
        %v2700 = vsel %vm2698, %v2651, 0
        %v2703 = vsel %vm2698, %v2652, 0
        %v2706 = vsel %vm2698, %v2653, 0
        %v2709 = vsel %vm2698, %v2654, 0
        %v2712 = vsel %vm2698, %v2655, 0
        %v2715 = vsel %vm2698, %v2656, 0
        %v2718 = vsel %vm2698, %v2657, 0
        %v2721 = vsel %vm2698, %v2658, 0
        %v2724 = vsel %vm2698, %v2659, 0
        %v2727 = vsel %vm2698, %v2660, 0
        %v2730 = vsel %vm2698, %v2661, 0
        %v2733 = vsel %vm2698, %v2662, 0
        %v2736 = vsel %vm2698, %v2663, 0
        %v2739 = vsel %vm2698, %v2664, 0
        %v2742 = vsel %vm2698, %v2665, 0
        %v2745 = vsel %vm2698, %v2666, 0
        %v2748 = vsel %vm2698, %v2667, 0
        %v2751 = vsel %vm2698, %v2668, 0
        %v2754 = vsel %vm2698, %v2669, 0
        %v2757 = vsel %vm2698, %v2670, 0
        %v2760 = vsel %vm2698, %v2671, 0
        %v2763 = vsel %vm2698, %v2672, 0
        %v2766 = vsel %vm2698, %v2673, 0
        %v2769 = vsel %vm2698, %v2674, 0
        %v2772 = vsel %vm2698, %v2675, 0
        %v2775 = vsel %vm2698, %v2676, 0
        %v2778 = vsel %vm2698, %v2677, 0
        %v2781 = vsel %vm2698, %v2678, 0
        %v2784 = vsel %vm2698, %v2679, 0
        %v2787 = vsel %vm2698, %v2680, 0
        %v2790 = vsel %vm2698, %v2681, 0
        %v2793 = vsel %vm2698, %v2682, 0
        %2795 = vmatprep.subr.mxu0 0.0
        %2796 = vmatpush1.msra.mxu0 0.0
        %2797 = vmatprep.subr.mxu0 0.0
        %2798 = vmatpush1.msra.mxu0 0.0
        %2799 = vmatprep.subr.mxu0 0.0
        %2800 = vmatpush1.msra.mxu0 0.0
        %2801 = vmatprep.subr.mxu0 0.0
        %2802 = vmatpush1.msra.mxu0 0.0
        %2803 = vmatprep.subr.mxu0 0.0
        %2804 = vmatpush1.msra.mxu0 0.0
        %2805 = vmatprep.subr.mxu0 0.0
        %2806 = vmatpush1.msra.mxu0 0.0
        %2807 = vmatprep.subr.mxu0 0.0
        %2808 = vmatpush1.msra.mxu0 0.0
        %2809 = vmatprep.subr.mxu0 0.0
        %2810 = vmatpush1.msra.mxu0 0.0
        %2811 = vmatprep.subr.mxu0 0.0
        %2812 = vmatpush1.msra.mxu0 %v2690
        %2813 = vmatprep.subr.mxu0 0.0
        %2814 = vmatpush1.msra.mxu0 %v2689
        %2815 = vmatprep.subr.mxu0 0.0
        %2816 = vmatpush1.msra.mxu0 %v2688
        %2817 = vmatprep.subr.mxu0 0.0
        %2818 = vmatpush1.msra.mxu0 %v2687
        %2819 = vmatprep.subr.mxu0 0.0
        %2820 = vmatpush1.msra.mxu0 %v2686
        %2821 = vmatprep.subr.mxu0 0.0
        %2822 = vmatpush1.msra.mxu0 %v2685
        %2823 = vmatprep.subr.mxu0 0.0
        %2824 = vmatpush1.msra.mxu0 %v2684
        %2825 = vmatprep.subr.mxu0 0.0
        %2826 = vmatpush1.msra.mxu0 %v2683
        %2827 = vmatprep.subr.mxu0 0.0
        %2828 = vmatpush2.msra.mxu0 0.0
        %2829 = vmatprep.subr.mxu0 0.0
        %2830 = vmatpush2.msra.mxu0 0.0
        %2831 = vmatprep.subr.mxu0 0.0
        %2832 = vmatpush2.msra.mxu0 0.0
        %2833 = vmatprep.subr.mxu0 0.0
        %2834 = vmatpush2.msra.mxu0 0.0
        %2835 = vmatprep.subr.mxu0 0.0
        %2836 = vmatpush2.msra.mxu0 0.0
        %2837 = vmatprep.subr.mxu0 0.0
        %2838 = vmatpush2.msra.mxu0 0.0
        %2839 = vmatprep.subr.mxu0 0.0
        %2840 = vmatpush2.msra.mxu0 0.0
        %2841 = vmatprep.subr.mxu0 0.0
        %2842 = vmatpush2.msra.mxu0 0.0
        %2843 = vmatprep.subr.mxu0 0.0
        %2844 = vmatpush2.msra.mxu0 0.0
        %2845 = vmatprep.subr.mxu0 0.0
        %2846 = vmatpush2.msra.mxu0 0.0
        %2847 = vmatprep.subr.mxu0 0.0
        %2848 = vmatpush2.msra.mxu0 0.0
        %2849 = vmatprep.subr.mxu0 0.0
        %2850 = vmatpush2.msra.mxu0 0.0
        %2851 = vmatprep.subr.mxu0 0.0
        %2852 = vmatpush2.msra.mxu0 0.0
        %2853 = vmatprep.subr.mxu0 0.0
        %2854 = vmatpush2.msra.mxu0 0.0
        %2855 = vmatprep.subr.mxu0 0.0
        %2856 = vmatpush2.msra.mxu0 0.0
        %2857 = vmatprep.subr.mxu0 0.0
        %2858 = vmatpush2.msra.mxu0 0.0
        %2859 = vmatprep.mubr.f32.mxu0 0.0
        %2860 = vmatmul.mubr.f32.gmra.mxu0 %v2700
        %v2861 = vpop.f32.mrf.mxu0
        %v2862 = vadd.f32 %v2696, %v2861
        %v2863 = vpop.f32.mrf.mxu0
        %2864 = vmatprep.mubr.f32.mxu0 0.0
        %2865 = vmatmul.mubr.f32.gmra.mxu0 %v2703
        %v2866 = vpop.f32.mrf.mxu0
        %v2867 = vadd.f32 %v2696, %v2866
        %v2868 = vpop.f32.mrf.mxu0
        %2869 = vmatprep.mubr.f32.mxu0 0.0
        %2870 = vmatmul.mubr.f32.gmra.mxu0 %v2706
        %v2871 = vpop.f32.mrf.mxu0
        %v2872 = vadd.f32 %v2696, %v2871
        %v2873 = vpop.f32.mrf.mxu0
        %2874 = vmatprep.mubr.f32.mxu0 0.0
        %2875 = vmatmul.mubr.f32.gmra.mxu0 %v2709
        %v2876 = vpop.f32.mrf.mxu0
        %v2877 = vadd.f32 %v2696, %v2876
        %v2878 = vpop.f32.mrf.mxu0
        %2879 = vmatprep.mubr.f32.mxu0 0.0
        %2880 = vmatmul.mubr.f32.gmra.mxu0 %v2712
        %v2881 = vpop.f32.mrf.mxu0
        %v2882 = vadd.f32 %v2696, %v2881
        %v2883 = vpop.f32.mrf.mxu0
        %2884 = vmatprep.mubr.f32.mxu0 0.0
        %2885 = vmatmul.mubr.f32.gmra.mxu0 %v2715
        %v2886 = vpop.f32.mrf.mxu0
        %v2887 = vadd.f32 %v2696, %v2886
        %v2888 = vpop.f32.mrf.mxu0
        %2889 = vmatprep.mubr.f32.mxu0 0.0
        %2890 = vmatmul.mubr.f32.gmra.mxu0 %v2718
        %v2891 = vpop.f32.mrf.mxu0
        %v2892 = vadd.f32 %v2696, %v2891
        %v2893 = vpop.f32.mrf.mxu0
        %2894 = vmatprep.mubr.f32.mxu0 0.0
        %2895 = vmatmul.mubr.f32.gmra.mxu0 %v2721
        %v2896 = vpop.f32.mrf.mxu0
        %v2897 = vadd.f32 %v2696, %v2896
        %v2898 = vpop.f32.mrf.mxu0
        %2899 = vmatprep.mubr.f32.mxu0 0.0
        %2900 = vmatmul.mubr.f32.gmra.mxu0 %v2724
        %v2901 = vpop.f32.mrf.mxu0
        %v2902 = vadd.f32 %v2696, %v2901
        %v2903 = vpop.f32.mrf.mxu0
        %2904 = vmatprep.mubr.f32.mxu0 0.0
        %2905 = vmatmul.mubr.f32.gmra.mxu0 %v2727
        %v2906 = vpop.f32.mrf.mxu0
        %v2907 = vadd.f32 %v2696, %v2906
        %v2908 = vpop.f32.mrf.mxu0
        %2909 = vmatprep.mubr.f32.mxu0 0.0
        %2910 = vmatmul.mubr.f32.gmra.mxu0 %v2730
        %v2911 = vpop.f32.mrf.mxu0
        %v2912 = vadd.f32 %v2696, %v2911
        %v2913 = vpop.f32.mrf.mxu0
        %2914 = vmatprep.mubr.f32.mxu0 0.0
        %2915 = vmatmul.mubr.f32.gmra.mxu0 %v2733
        %v2916 = vpop.f32.mrf.mxu0
        %v2917 = vadd.f32 %v2696, %v2916
        %v2918 = vpop.f32.mrf.mxu0
        %2919 = vmatprep.mubr.f32.mxu0 0.0
        %2920 = vmatmul.mubr.f32.gmra.mxu0 %v2736
        %v2921 = vpop.f32.mrf.mxu0
        %v2922 = vadd.f32 %v2696, %v2921
        %v2923 = vpop.f32.mrf.mxu0
        %2924 = vmatprep.mubr.f32.mxu0 0.0
        %2925 = vmatmul.mubr.f32.gmra.mxu0 %v2739
        %v2926 = vpop.f32.mrf.mxu0
        %v2927 = vadd.f32 %v2696, %v2926
        %v2928 = vpop.f32.mrf.mxu0
        %2929 = vmatprep.mubr.f32.mxu0 0.0
        %2930 = vmatmul.mubr.f32.gmra.mxu0 %v2742
        %v2931 = vpop.f32.mrf.mxu0
        %v2932 = vadd.f32 %v2696, %v2931
        %v2933 = vpop.f32.mrf.mxu0
        %2934 = vmatprep.mubr.f32.mxu0 0.0
        %2935 = vmatmul.mubr.f32.gmra.mxu0 %v2745
        %v2936 = vpop.f32.mrf.mxu0
        %v2937 = vadd.f32 %v2696, %v2936
        %v2938 = vpop.f32.mrf.mxu0
        %2939 = vmatprep.mubr.f32.mxu0 0.0
        %2940 = vmatmul.mubr.f32.gmra.mxu0 %v2748
        %v2941 = vpop.f32.mrf.mxu0
        %v2942 = vadd.f32 %v2696, %v2941
        %v2943 = vpop.f32.mrf.mxu0
        %2944 = vmatprep.mubr.f32.mxu0 0.0
        %2945 = vmatmul.mubr.f32.gmra.mxu0 %v2751
        %v2946 = vpop.f32.mrf.mxu0
        %v2947 = vadd.f32 %v2696, %v2946
        %v2948 = vpop.f32.mrf.mxu0
        %2949 = vmatprep.mubr.f32.mxu0 0.0
        %2950 = vmatmul.mubr.f32.gmra.mxu0 %v2754
        %v2951 = vpop.f32.mrf.mxu0
        %v2952 = vadd.f32 %v2696, %v2951
        %v2953 = vpop.f32.mrf.mxu0
        %2954 = vmatprep.mubr.f32.mxu0 0.0
        %2955 = vmatmul.mubr.f32.gmra.mxu0 %v2757
        %v2956 = vpop.f32.mrf.mxu0
        %v2957 = vadd.f32 %v2696, %v2956
        %v2958 = vpop.f32.mrf.mxu0
        %2959 = vmatprep.mubr.f32.mxu0 0.0
        %2960 = vmatmul.mubr.f32.gmra.mxu0 %v2760
        %v2961 = vpop.f32.mrf.mxu0
        %v2962 = vadd.f32 %v2696, %v2961
        %v2963 = vpop.f32.mrf.mxu0
        %2964 = vmatprep.mubr.f32.mxu0 0.0
        %2965 = vmatmul.mubr.f32.gmra.mxu0 %v2763
        %v2966 = vpop.f32.mrf.mxu0
        %v2967 = vadd.f32 %v2696, %v2966
        %v2968 = vpop.f32.mrf.mxu0
        %2969 = vmatprep.mubr.f32.mxu0 0.0
        %2970 = vmatmul.mubr.f32.gmra.mxu0 %v2766
        %v2971 = vpop.f32.mrf.mxu0
        %v2972 = vadd.f32 %v2696, %v2971
        %v2973 = vpop.f32.mrf.mxu0
        %2974 = vmatprep.mubr.f32.mxu0 0.0
        %2975 = vmatmul.mubr.f32.gmra.mxu0 %v2769
        %v2976 = vpop.f32.mrf.mxu0
        %v2977 = vadd.f32 %v2696, %v2976
        %v2978 = vpop.f32.mrf.mxu0
        %2979 = vmatprep.mubr.f32.mxu0 0.0
        %2980 = vmatmul.mubr.f32.gmra.mxu0 %v2772
        %v2981 = vpop.f32.mrf.mxu0
        %v2982 = vadd.f32 %v2696, %v2981
        %v2983 = vpop.f32.mrf.mxu0
        %2984 = vmatprep.mubr.f32.mxu0 0.0
        %2985 = vmatmul.mubr.f32.gmra.mxu0 %v2775
        %v2986 = vpop.f32.mrf.mxu0
        %v2987 = vadd.f32 %v2696, %v2986
        %v2988 = vpop.f32.mrf.mxu0
        %2989 = vmatprep.mubr.f32.mxu0 0.0
        %2990 = vmatmul.mubr.f32.gmra.mxu0 %v2778
        %v2991 = vpop.f32.mrf.mxu0
        %v2992 = vadd.f32 %v2696, %v2991
        %v2993 = vpop.f32.mrf.mxu0
        %2994 = vmatprep.mubr.f32.mxu0 0.0
        %2995 = vmatmul.mubr.f32.gmra.mxu0 %v2781
        %v2996 = vpop.f32.mrf.mxu0
        %v2997 = vadd.f32 %v2696, %v2996
        %v2998 = vpop.f32.mrf.mxu0
        %2999 = vmatprep.mubr.f32.mxu0 0.0
        %3000 = vmatmul.mubr.f32.gmra.mxu0 %v2784
        %v3001 = vpop.f32.mrf.mxu0
        %v3002 = vadd.f32 %v2696, %v3001
        %v3003 = vpop.f32.mrf.mxu0
        %3004 = vmatprep.mubr.f32.mxu0 0.0
        %3005 = vmatmul.mubr.f32.gmra.mxu0 %v2787
        %v3006 = vpop.f32.mrf.mxu0
        %v3007 = vadd.f32 %v2696, %v3006
        %v3008 = vpop.f32.mrf.mxu0
        %3009 = vmatprep.mubr.f32.mxu0 0.0
        %3010 = vmatmul.mubr.f32.gmra.mxu0 %v2790
        %v3011 = vpop.f32.mrf.mxu0
        %v3012 = vadd.f32 %v2696, %v3011
        %v3013 = vpop.f32.mrf.mxu0
        %3014 = vmatprep.mubr.f32.mxu0 0.0
        %3015 = vmatmul.mubr.f32.gmra.mxu0 %v2793
        %v3016 = vpop.f32.mrf.mxu0
        %v3017 = vadd.f32 %v2696, %v3016
        %v3018 = vpop.f32.mrf.mxu0
        %3019 = vdwg.mxu0
        %3020 = vst.msk [vmem:[%s296] sm:$0xff] %vm340, %v2862
        %3021 = vst.msk [vmem:[%s296 + $0x8] sm:$0xff] %vm340, %v2867
        %3022 = vst.msk [vmem:[%s296 + $0x10] sm:$0xff] %vm340, %v2872
        %3023 = vst.msk [vmem:[%s296 + $0x18] sm:$0xff] %vm340, %v2877
        %3024 = vst.msk [vmem:[%s296 + $0x20] sm:$0xff] %vm340, %v2882
        %3025 = vst.msk [vmem:[%s296 + $0x28] sm:$0xff] %vm340, %v2887
        %3026 = vst.msk [vmem:[%s296 + $0x30] sm:$0xff] %vm340, %v2892
        %3027 = vst.msk [vmem:[%s296 + $0x38] sm:$0xff] %vm340, %v2897
        %3028 = vst.msk [vmem:[%s296 + $0x40] sm:$0xff] %vm340, %v2902
        %3029 = vst.msk [vmem:[%s296 + $0x48] sm:$0xff] %vm340, %v2907
        %3030 = vst.msk [vmem:[%s296 + $0x50] sm:$0xff] %vm340, %v2912
        %3031 = vst.msk [vmem:[%s296 + $0x58] sm:$0xff] %vm340, %v2917
        %3032 = vst.msk [vmem:[%s296 + $0x60] sm:$0xff] %vm340, %v2922
        %3033 = vst.msk [vmem:[%s296 + $0x68] sm:$0xff] %vm340, %v2927
        %3034 = vst.msk [vmem:[%s296 + $0x70] sm:$0xff] %vm340, %v2932
        %3035 = vst.msk [vmem:[%s296 + $0x78] sm:$0xff] %vm340, %v2937
        %3036 = vst.msk [vmem:[%s296 + $0x80] sm:$0xff] %vm340, %v2942
        %3037 = vst.msk [vmem:[%s296 + $0x88] sm:$0xff] %vm340, %v2947
        %3038 = vst.msk [vmem:[%s296 + $0x90] sm:$0xff] %vm340, %v2952
        %3039 = vst.msk [vmem:[%s296 + $0x98] sm:$0xff] %vm340, %v2957
        %3040 = vst.msk [vmem:[%s296 + $0xa0] sm:$0xff] %vm340, %v2962
        %3041 = vst.msk [vmem:[%s296 + $0xa8] sm:$0xff] %vm340, %v2967
        %3042 = vst.msk [vmem:[%s296 + $0xb0] sm:$0xff] %vm340, %v2972
        %3043 = vst.msk [vmem:[%s296 + $0xb8] sm:$0xff] %vm340, %v2977
        %3044 = vst.msk [vmem:[%s296 + $0xc0] sm:$0xff] %vm340, %v2982
        %3045 = vst.msk [vmem:[%s296 + $0xc8] sm:$0xff] %vm340, %v2987
        %3046 = vst.msk [vmem:[%s296 + $0xd0] sm:$0xff] %vm340, %v2992
        %3047 = vst.msk [vmem:[%s296 + $0xd8] sm:$0xff] %vm340, %v2997
        %3048 = vst.msk [vmem:[%s296 + $0xe0] sm:$0xff] %vm340, %v3002
        %3049 = vst.msk [vmem:[%s296 + $0xe8] sm:$0xff] %vm340, %v3007
        %3050 = vst.msk [vmem:[%s296 + $0xf0] sm:$0xff] %vm340, %v3012
        %3051 = vst.msk [vmem:[%s296 + $0xf8] sm:$0xff] %vm340, %v3017
        %s3052 = sand.u32 %s184, 1
        %s3053 = scalar_lea.sflag [#allocation5], %s3052
        %s3054 = sand.u32 %s184, 1
        %s3055 = smul.addr %s3054, 256
        %s3056 = scalar_lea.vmem [#allocation6], %s3055
        // Predicated region
        $region53: #{feed_forward.1} parent=47 // pred_check
          %p3057 = pneg %p194
        $region54: #{feed_forward.1} parent=47 // pred_check_branch
          %3059 = sbr.rel (%p3057) target = $region56
        $region55: #{feed_forward.1} parent=47 // pred_region
          %s3061 = ssub.s32 4096, 4096
          %3062 = vsyncadd %s3053, %s3061
          %s3063 = smul.addr %s24, 32
          %s3064 = smul.addr %s3063, 128
          %s3065 = scalar_lea.hbm %s7, %s3064
          %s3066 = sshll.u32 %s3056, 4
          %s3067 = int_to_ptr.vmem [resolvable:$true] %s3066
          %3072 = dma.vmem_to_hbm [thread:$0]  %s3067, 4096, %s3065, %s3053, 128, 128, 8
        $region56: #{feed_forward.1} parent=47 // pred_fallthru
          _
      $region48: #{feed_forward.1} parent=5 // pred_fallthru
        _
      %p3073 = scmp.le.s32.totalorder 2, %s19
      // Predicated region
      $region57: #{feed_forward.1} parent=5 // pred_check
        %p3074 = pneg %p3073
      $region58: #{feed_forward.1} parent=5 // pred_check_branch
        %3076 = sbr.rel (%p3074) target = $region60
      $region59: #{feed_forward.1} parent=5 // pred_region
        %s3077 = ssub.s32 %s19, 2
        // Predicated region
        $region61: #{feed_forward.1} parent=59 // pred_check
          %p3078 = pneg %p200
        $region62: #{feed_forward.1} parent=59 // pred_check_branch
          %3080 = sbr.rel (%p3078) target = $region64
        $region63: #{feed_forward.1} parent=59 // pred_region
          %s3081 = sand.u32 %s185, 1
          %s3082 = scalar_lea.sflag [#allocation5], %s3081
          %s3083 = sand.u32 %s185, 1
          %s3084 = smul.addr %s3083, 256
          %s3085 = scalar_lea.vmem [#allocation6], %s3084
          %3086 = dma.done %s3082, 4096
        $region64: #{feed_forward.1} parent=59 // pred_fallthru
          _
      $region60: #{feed_forward.1} parent=5 // pred_fallthru
        _
    $region6: #{feed_forward.1} parent=1 // loop_footer
      %s23 = sadd.s32 1, %s19
    $region7: #{feed_forward.1} parent=1 // loop_footer_branch
      %18 = sbr.rel target = $region3
    $region8: #{feed_forward.1} parent=1 // loop_exit
      _
    %3087 = vsyncpa [#allocation4], 1
    %s3088 = scalar_lea.sflag [#allocation4], 1
    %3089 = vsyncpa %s3088, 1
    %3090 = vsyncpa [#allocation5], 1
    %s3091 = scalar_lea.sflag [#allocation5], 1
    %3092 = vsyncpa %s3091, 1

</llo_original>
